<compile_context>
chip_gen: v7x
topology: tpu7x:2x2x1
jax: 0.10.0
libtpu: 0.0.40
codegen_flags: <defaults>
</compile_context>

<pallas_src>
import jax
import jax.numpy as jnp
import numpy as np
from jax.experimental import pallas as pl
from jax.experimental.pallas import tpu as pltpu

EPS = 1e-5  # BatchNorm2d default eps


def _round_up(x, m):
    return ((x + m - 1) // m) * m


# ---------------------------------------------------------------------------
# Fused kernel factory.
# Layout: x is (B, S, L, D) = (batch, sentences=channels, words=H, emb dim=W);
# packed activations keep all C output channels side by side on the lane axis
# (last dim = C*D, output channel co occupies lanes [co*D, (co+1)*D)).
# ---------------------------------------------------------------------------
def _make_pjfnn_kernel(B, L, D, Cg, K1g, K2g, Cj, K1j, K2j, PW):

    def packed_bn_relu(acc, gamma, beta, ind, ind_t, n_per_chan):
        # acc: (B, H, C*D); gamma/beta: (1, C); ind: (C*D, C); ind_t: (C, C*D)
        s = jnp.sum(jnp.sum(acc, axis=1, keepdims=True),
                    axis=0, keepdims=True)[0]                         # (1, C*D)
        ss = jnp.sum(jnp.sum(acc * acc, axis=1, keepdims=True),
                     axis=0, keepdims=True)[0]                        # (1, C*D)
        # collapse each D-lane group to per-channel stats on the MXU
        s_c = jnp.dot(s, ind, preferred_element_type=jnp.float32)     # (1, C)
        ss_c = jnp.dot(ss, ind, preferred_element_type=jnp.float32)   # (1, C)
        inv_n = 1.0 / n_per_chan
        mu = s_c * inv_n
        var = jnp.maximum(ss_c * inv_n - mu * mu, 0.0)   # clamp: cancellation guard
        sc = gamma * jax.lax.rsqrt(var + EPS)
        sh = beta - sc * mu
        # broadcast per-channel scale/shift back to the packed lane layout (MXU)
        sc_l = jnp.dot(sc, ind_t, preferred_element_type=jnp.float32)  # (1, C*D)
        sh_l = jnp.dot(sh, ind_t, preferred_element_type=jnp.float32)  # (1, C*D)
        return jnp.maximum(acc * sc_l + sh_l, 0.0)

    def branch(x_ref, w1_ref, w2_ref, bn_ref, ind_ref, indt_ref, C, K1, K2, method):
        CD = C * D
        H1 = L - K1 + 1          # after conv1 (kernel (K1, 1))
        H2 = H1 // 2             # after MaxPool2d((2, 1))
        H3 = H2 - K2 + 1         # after conv2 (kernel (K2, 1))
        assert H1 >= 2 and H3 >= 1, "sentence length too short for conv stack"

        ind = ind_ref[...]
        ind_t = indt_ref[...]
        gamma1, beta1 = bn_ref[0:1, :], bn_ref[1:2, :]
        gamma2, beta2 = bn_ref[2:3, :], bn_ref[3:4, :]

        # ---- stage 1: conv1, all output channels at once (lane packed) ----
        # (conv bias omitted: exact no-op under training-mode BatchNorm)
        acc1 = None
        for ci in range(C):
            xt = jnp.concatenate([x_ref[:, ci, :, :]] * C, axis=2)    # (B,L,CD)
            for dh in range(K1):
                r = ci * K1 + dh
                term = w1_ref[r:r + 1, :] * xt[:, dh:dh + H1, :]
                acc1 = term if acc1 is None else acc1 + term          # (B,H1,CD)

        z1 = packed_bn_relu(acc1, gamma1, beta1, ind, ind_t, float(B * H1 * D))

        # ---- MaxPool2d((2,1)): pairwise max, then ONE packed compaction ----
        pm_dil = jnp.maximum(z1[:, 0:H1 - 1, :], z1[:, 1:H1, :])      # (B,H1-1,CD)
        if H2 == 1:
            pm = pm_dil[:, 0:1, :]
        else:
            pm = jnp.concatenate(
                [pm_dil[:, 2 * p:2 * p + 1, :] for p in range(H2)], axis=1)  # (B,H2,CD)

        # ---- stage 2: conv2 with contiguous taps -> exactly H3 rows ----
        acc2 = None
        for ci in range(C):
            seg = pm[:, :, ci * D:(ci + 1) * D]                       # (B,H2,D)
            xt = jnp.concatenate([seg] * C, axis=2)                   # (B,H2,CD)
            for dh in range(K2):
                r = ci * K2 + dh
                term = w2_ref[r:r + 1, :] * xt[:, dh:dh + H3, :]
                acc2 = term if acc2 is None else acc2 + term          # (B,H3,CD)

        z2 = packed_bn_relu(acc2, gamma2, beta2, ind, ind_t, float(B * H3 * D))

        # ---- AdaptiveMaxPool((1, D)) over rows, packed ----
        zp = jnp.max(z2, axis=1)                                      # (B, CD)

        # ---- cross-sentence (channel) pooling across the C lane groups ----
        out = zp[:, 0:D]
        if method == "max":
            for co in range(1, C):
                out = jnp.maximum(out, zp[:, co * D:(co + 1) * D])
        else:  # mean
            for co in range(1, C):
                out = out + zp[:, co * D:(co + 1) * D]
            out = out * (1.0 / C)
        return out                                                    # (B, D)

    def kernel(gx_ref, gw1_ref, gw2_ref, gbn_ref, gind_ref, gindt_ref,
               jx_ref, jw1_ref, jw2_ref, jbn_ref, jind_ref, jindt_ref,
               mw1_ref, mb1_ref, mw2_ref, mb2_ref,
               out_ref):
        gfeat = branch(gx_ref, gw1_ref, gw2_ref, gbn_ref, gind_ref, gindt_ref,
                       Cg, K1g, K2g, "max")
        jfeat = branch(jx_ref, jw1_ref, jw2_ref, jbn_ref, jind_ref, jindt_ref,
                       Cj, K1j, K2j, "mean")

        # MLP head: relu((g*j) @ W1 + b1) @ w2 + b2
        x = gfeat * jfeat                                             # (B, D)
        h = jnp.dot(x, mw1_ref[...], preferred_element_type=jnp.float32)
        h = jnp.maximum(h + mb1_ref[...], 0.0)
        score = (jnp.sum(h * mw2_ref[...], axis=1, keepdims=True)
                 + mb2_ref[0])                                        # (B, 1)

        # single lane-dense output slab: [gfeat | jfeat | score | zero pad]
        pieces = [gfeat, jfeat, score]
        pad = PW - (2 * D + 1)
        if pad > 0:
            pieces.append(jnp.zeros((B, pad), jnp.float32))
        out_ref[...] = jnp.concatenate(pieces, axis=1)                # (B, PW)

    return kernel


# ---------------------------------------------------------------------------
# Wrapper-side layout plumbing (tiny constant re-shapes, no compute hoisting)
# ---------------------------------------------------------------------------
def _lane_weights(w, D):
    """(C_out, C_in, K) -> (C_in*K, C_out*D): row ci*K+dh holds w[co, ci, dh]
    broadcast across the D lanes of output-channel segment co."""
    C, _, K = w.shape
    wt = jnp.transpose(w, (1, 2, 0)).reshape(C * K, C)
    return jnp.repeat(wt, D, axis=1).astype(jnp.float32)


def _indicators(C, D):
    """One-hot block matrices mapping packed lanes <-> channels."""
    ind = np.zeros((C * D, C), np.float32)
    for c in range(C):
        ind[c * D:(c + 1) * D, c] = 1.0
    return jnp.asarray(ind), jnp.asarray(np.ascontiguousarray(ind.T))


def pjfnn_forward(geek_ids, job_ids, params):
    emb = params["emb"]
    # TODO(synk): embedding gather stays in plain JAX (data-dependent gather);
    # move in-kernel via scalar-prefetched ids + DMA at production sizes.
    geek_x = jnp.take(emb, geek_ids, axis=0)   # (B, Sg, L, D)
    job_x = jnp.take(emb, job_ids, axis=0)     # (B, Sj, L, D)

    B, Cg, L, D = geek_x.shape
    Cj = job_x.shape[1]
    gw1, _gb1, gg1, gbe1, gw2, _gb2, gg2, gbe2 = params["geek"]
    jw1, _jb1, jg1, jbe1, jw2, _jb2, jg2, jbe2 = params["job"]
    mw1, mb1, mw2, mb2 = params["mlp"]
    K1g, K2g = gw1.shape[2], gw2.shape[2]
    K1j, K2j = jw1.shape[2], jw2.shape[2]

    PW = _round_up(2 * D + 1, 128)             # lane-dense packed output width
    kernel = _make_pjfnn_kernel(B, L, D, Cg, K1g, K2g, Cj, K1j, K2j, PW)
    gind, gind_t = _indicators(Cg, D)
    jind, jind_t = _indicators(Cj, D)

    vmem = lambda: pl.BlockSpec(memory_space=pltpu.MemorySpace.VMEM)
    smem = lambda: pl.BlockSpec(memory_space=pltpu.MemorySpace.SMEM)

    packed = pl.pallas_call(
        kernel,
        out_shape=jax.ShapeDtypeStruct((B, PW), jnp.float32),
        in_specs=[vmem() for _ in range(15)] + [smem()],
        out_specs=vmem(),
    )(geek_x, _lane_weights(gw1, D), _lane_weights(gw2, D),
      jnp.stack([gg1, gbe1, gg2, gbe2], axis=0), gind, gind_t,
      job_x, _lane_weights(jw1, D), _lane_weights(jw2, D),
      jnp.stack([jg1, jbe1, jg2, jbe2], axis=0), jind, jind_t,
      mw1, mb1.reshape(1, D), mw2.reshape(1, D), mb2)

    gfeat = packed[:, 0:D]
    jfeat = packed[:, D:2 * D]
    score = packed[:, 2 * D]
    return score, gfeat, jfeat


# ---------------------------------------------------------------------------
# Deterministic parameter init (shapes mirror the torch module)
# ---------------------------------------------------------------------------
def init_params(key, word_num, dim, s_geek, s_job):
    ks = jax.random.split(key, 7)

    def nrm(k, shape, scale=0.2):
        return scale * jax.random.normal(k, shape, jnp.float32)

    emb = nrm(ks[0], (word_num, dim), 0.5).at[0].set(0.0)   # padding_idx=0

    def textcnn(kbase, C, K1, K2):
        kk = jax.random.split(kbase, 8)
        return (nrm(kk[0], (C, C, K1)), nrm(kk[1], (C,), 0.1),
                1.0 + nrm(kk[2], (C,), 0.1), nrm(kk[3], (C,), 0.1),
                nrm(kk[4], (C, C, K2)), nrm(kk[5], (C,), 0.1),
                1.0 + nrm(kk[6], (C,), 0.1), nrm(kk[7], (C,), 0.1))

    geek_p = textcnn(ks[1], s_geek, 5, 3)   # kernel_size=[(5,1),(3,1)]
    job_p = textcnn(ks[2], s_job, 5, 5)     # kernel_size=[(5,1),(5,1)]
    mlp_p = (nrm(ks[3], (dim, dim)), nrm(ks[4], (dim,), 0.1),
             nrm(ks[5], (dim,)), nrm(ks[6], (1,), 0.1))
    return {"emb": emb, "geek": geek_p, "job": job_p, "mlp": mlp_p}


# ---------------------------------------------------------------------------
# Pure-JAX reference (for correctness check; includes the conv biases, which
# cancel exactly under training-mode BatchNorm)
# ---------------------------------------------------------------------------
def ref_textcnn(x, params, method):
    w1, b1, g1, be1, w2, b2, g2, be2 = params

    def conv_bn_relu(x, w, b, g, be):
        K = w.shape[2]
        H = x.shape[2] - K + 1
        cols = jnp.stack([x[:, :, dh:dh + H, :] for dh in range(K)], axis=2)
        y = jnp.einsum("ock,nckhd->nohd", w, cols) + b[None, :, None, None]
        mu = y.mean(axis=(0, 2, 3), keepdims=True)
        var = ((y - mu) ** 2).mean(axis=(0, 2, 3), keepdims=True)
        z = (g[None, :, None, None] * (y - mu) / jnp.sqrt(var + EPS)
             + be[None, :, None, None])
        return jnp.maximum(z, 0.0)

    z = conv_bn_relu(x, w1, b1, g1, be1)
    B, C, H1, D = z.shape
    H2 = H1 // 2
    z = z[:, :, :2 * H2, :].reshape(B, C, H2, 2, D).max(axis=3)
    z = conv_bn_relu(z, w2, b2, g2, be2)
    z = z.max(axis=2)                                  # (B, C, D)
    return z.max(axis=1) if method == "max" else z.mean(axis=1)


def ref_mlp(g, j, mlp_params):
    w1, b1, w2, b2 = mlp_params
    h = jnp.maximum((g * j) @ w1 + b1, 0.0)
    return h @ w2 + b2[0]


# ---------------------------------------------------------------------------
if __name__ == "__main__":
    key = jax.random.PRNGKey(0)
    B, D, L = 2, 32, 16              # batch, emb dim, sentence length (words)
    S_GEEK, S_JOB, WORD_NUM = 3, 4, 50
    kp, kg, kj = jax.random.split(key, 3)
    params = init_params(kp, WORD_NUM, D, S_GEEK, S_JOB)
    geek_ids = jax.random.randint(kg, (B, S_GEEK, L), 0, WORD_NUM, jnp.int32)
    job_ids = jax.random.randint(kj, (B, S_JOB, L), 0, WORD_NUM, jnp.int32)

    score, gfeat, jfeat = pjfnn_forward(geek_ids, job_ids, params)
    jax.block_until_ready((score, gfeat, jfeat))

    # reference check
    gx = jnp.take(params["emb"], geek_ids, axis=0)
    jx = jnp.take(params["emb"], job_ids, axis=0)
    rg = ref_textcnn(gx, params["geek"], "max")
    rj = ref_textcnn(jx, params["job"], "mean")
    rs = ref_mlp(rg, rj, params["mlp"])
    assert jnp.allclose(gfeat, rg, atol=1e-3, rtol=1e-3)
    assert jnp.allclose(jfeat, rj, atol=1e-3, rtol=1e-3)
    assert jnp.allclose(score, rs, atol=1e-3, rtol=1e-3)
    print("KERNEL_OK")
</pallas_src>

<mosaic_0001>
module attributes {stable_mosaic.version = 11 : i64} {
  func.func @kernel(%arg0: memref<2x3x16x32xf32, #tpu.memory_space<vmem>>, %arg1: memref<15x96xf32, #tpu.memory_space<vmem>>, %arg2: memref<9x96xf32, #tpu.memory_space<vmem>>, %arg3: memref<4x3xf32, #tpu.memory_space<vmem>>, %arg4: memref<96x3xf32, #tpu.memory_space<vmem>>, %arg5: memref<3x96xf32, #tpu.memory_space<vmem>>, %arg6: memref<2x4x16x32xf32, #tpu.memory_space<vmem>>, %arg7: memref<20x128xf32, #tpu.memory_space<vmem>>, %arg8: memref<20x128xf32, #tpu.memory_space<vmem>>, %arg9: memref<4x4xf32, #tpu.memory_space<vmem>>, %arg10: memref<128x4xf32, #tpu.memory_space<vmem>>, %arg11: memref<4x128xf32, #tpu.memory_space<vmem>>, %arg12: memref<32x32xf32, #tpu.memory_space<vmem>>, %arg13: memref<1x32xf32, #tpu.memory_space<vmem>>, %arg14: memref<1x32xf32, #tpu.memory_space<vmem>>, %arg15: memref<1xf32, #tpu.memory_space<smem>>, %arg16: memref<2x128xf32, #tpu.memory_space<vmem>>) attributes {dimension_semantics = [], scalar_prefetch = 0 : i64, scratch_operands = 0 : i64, tpu.core_type = #tpu.core_type<tc>} {
    %c0 = arith.constant 0 : index
    %c0_0 = arith.constant 0 : index
    %0 = vector.load %arg4[%c0, %c0_0] : memref<96x3xf32, #tpu.memory_space<vmem>>, vector<96x3xf32>
    %c0_1 = arith.constant 0 : index
    %c0_2 = arith.constant 0 : index
    %1 = vector.load %arg5[%c0_1, %c0_2] : memref<3x96xf32, #tpu.memory_space<vmem>>, vector<3x96xf32>
    %c0_3 = arith.constant 0 : index
    %c0_4 = arith.constant 0 : index
    %2 = vector.load %arg3[%c0_3, %c0_4] : memref<4x3xf32, #tpu.memory_space<vmem>>, vector<1x3xf32>
    %c1 = arith.constant 1 : index
    %c0_5 = arith.constant 0 : index
    %3 = vector.load %arg3[%c1, %c0_5] : memref<4x3xf32, #tpu.memory_space<vmem>>, vector<1x3xf32>
    %c2 = arith.constant 2 : index
    %c0_6 = arith.constant 0 : index
    %4 = vector.load %arg3[%c2, %c0_6] : memref<4x3xf32, #tpu.memory_space<vmem>>, vector<1x3xf32>
    %c3 = arith.constant 3 : index
    %c0_7 = arith.constant 0 : index
    %5 = vector.load %arg3[%c3, %c0_7] : memref<4x3xf32, #tpu.memory_space<vmem>>, vector<1x3xf32>
    %c0_8 = arith.constant 0 : index
    %c0_9 = arith.constant 0 : index
    %c0_10 = arith.constant 0 : index
    %c0_11 = arith.constant 0 : index
    %6 = vector.load %arg0[%c0_8, %c0_9, %c0_10, %c0_11] : memref<2x3x16x32xf32, #tpu.memory_space<vmem>>, vector<2x1x16x32xf32>
    %7 = vector.shape_cast %6 : vector<2x1x16x32xf32> to vector<2x16x32xf32>
    %8 = tpu.concatenate %7, %7, %7 in 2 : vector<2x16x32xf32>, vector<2x16x32xf32>, vector<2x16x32xf32> -> vector<2x16x96xf32>
    %c0_12 = arith.constant 0 : index
    %c0_13 = arith.constant 0 : index
    %9 = vector.load %arg1[%c0_12, %c0_13] : memref<15x96xf32, #tpu.memory_space<vmem>>, vector<1x96xf32>
    %10 = vector.extract_strided_slice %8 {offsets = [0, 0, 0], sizes = [2, 12, 96], strides = [1, 1, 1]} : vector<2x16x96xf32> to vector<2x12x96xf32>
    %11 = vector.shape_cast %9 : vector<1x96xf32> to vector<1x1x96xf32>
    %12 = vector.broadcast %11 : vector<1x1x96xf32> to vector<2x12x96xf32>
    %13 = arith.mulf %12, %10 : vector<2x12x96xf32>
    %c1_14 = arith.constant 1 : index
    %c0_15 = arith.constant 0 : index
    %14 = vector.load %arg1[%c1_14, %c0_15] : memref<15x96xf32, #tpu.memory_space<vmem>>, vector<1x96xf32>
    %15 = vector.extract_strided_slice %8 {offsets = [0, 1, 0], sizes = [2, 12, 96], strides = [1, 1, 1]} : vector<2x16x96xf32> to vector<2x12x96xf32>
    %16 = vector.shape_cast %14 : vector<1x96xf32> to vector<1x1x96xf32>
    %17 = vector.broadcast %16 : vector<1x1x96xf32> to vector<2x12x96xf32>
    %18 = arith.mulf %17, %15 : vector<2x12x96xf32>
    %19 = arith.addf %13, %18 : vector<2x12x96xf32>
    %c2_16 = arith.constant 2 : index
    %c0_17 = arith.constant 0 : index
    %20 = vector.load %arg1[%c2_16, %c0_17] : memref<15x96xf32, #tpu.memory_space<vmem>>, vector<1x96xf32>
    %21 = vector.extract_strided_slice %8 {offsets = [0, 2, 0], sizes = [2, 12, 96], strides = [1, 1, 1]} : vector<2x16x96xf32> to vector<2x12x96xf32>
    %22 = vector.shape_cast %20 : vector<1x96xf32> to vector<1x1x96xf32>
    %23 = vector.broadcast %22 : vector<1x1x96xf32> to vector<2x12x96xf32>
    %24 = arith.mulf %23, %21 : vector<2x12x96xf32>
    %25 = arith.addf %19, %24 : vector<2x12x96xf32>
    %c3_18 = arith.constant 3 : index
    %c0_19 = arith.constant 0 : index
    %26 = vector.load %arg1[%c3_18, %c0_19] : memref<15x96xf32, #tpu.memory_space<vmem>>, vector<1x96xf32>
    %27 = vector.extract_strided_slice %8 {offsets = [0, 3, 0], sizes = [2, 12, 96], strides = [1, 1, 1]} : vector<2x16x96xf32> to vector<2x12x96xf32>
    %28 = vector.shape_cast %26 : vector<1x96xf32> to vector<1x1x96xf32>
    %29 = vector.broadcast %28 : vector<1x1x96xf32> to vector<2x12x96xf32>
    %30 = arith.mulf %29, %27 : vector<2x12x96xf32>
    %31 = arith.addf %25, %30 : vector<2x12x96xf32>
    %c4 = arith.constant 4 : index
    %c0_20 = arith.constant 0 : index
    %32 = vector.load %arg1[%c4, %c0_20] : memref<15x96xf32, #tpu.memory_space<vmem>>, vector<1x96xf32>
    %33 = vector.extract_strided_slice %8 {offsets = [0, 4, 0], sizes = [2, 12, 96], strides = [1, 1, 1]} : vector<2x16x96xf32> to vector<2x12x96xf32>
    %34 = vector.shape_cast %32 : vector<1x96xf32> to vector<1x1x96xf32>
    %35 = vector.broadcast %34 : vector<1x1x96xf32> to vector<2x12x96xf32>
    %36 = arith.mulf %35, %33 : vector<2x12x96xf32>
    %37 = arith.addf %31, %36 : vector<2x12x96xf32>
    %c0_21 = arith.constant 0 : index
    %c1_22 = arith.constant 1 : index
    %c0_23 = arith.constant 0 : index
    %c0_24 = arith.constant 0 : index
    %38 = vector.load %arg0[%c0_21, %c1_22, %c0_23, %c0_24] : memref<2x3x16x32xf32, #tpu.memory_space<vmem>>, vector<2x1x16x32xf32>
    %39 = vector.shape_cast %38 : vector<2x1x16x32xf32> to vector<2x16x32xf32>
    %40 = tpu.concatenate %39, %39, %39 in 2 : vector<2x16x32xf32>, vector<2x16x32xf32>, vector<2x16x32xf32> -> vector<2x16x96xf32>
    %c5 = arith.constant 5 : index
    %c0_25 = arith.constant 0 : index
    %41 = vector.load %arg1[%c5, %c0_25] : memref<15x96xf32, #tpu.memory_space<vmem>>, vector<1x96xf32>
    %42 = vector.extract_strided_slice %40 {offsets = [0, 0, 0], sizes = [2, 12, 96], strides = [1, 1, 1]} : vector<2x16x96xf32> to vector<2x12x96xf32>
    %43 = vector.shape_cast %41 : vector<1x96xf32> to vector<1x1x96xf32>
    %44 = vector.broadcast %43 : vector<1x1x96xf32> to vector<2x12x96xf32>
    %45 = arith.mulf %44, %42 : vector<2x12x96xf32>
    %46 = arith.addf %37, %45 : vector<2x12x96xf32>
    %c6 = arith.constant 6 : index
    %c0_26 = arith.constant 0 : index
    %47 = vector.load %arg1[%c6, %c0_26] : memref<15x96xf32, #tpu.memory_space<vmem>>, vector<1x96xf32>
    %48 = vector.extract_strided_slice %40 {offsets = [0, 1, 0], sizes = [2, 12, 96], strides = [1, 1, 1]} : vector<2x16x96xf32> to vector<2x12x96xf32>
    %49 = vector.shape_cast %47 : vector<1x96xf32> to vector<1x1x96xf32>
    %50 = vector.broadcast %49 : vector<1x1x96xf32> to vector<2x12x96xf32>
    %51 = arith.mulf %50, %48 : vector<2x12x96xf32>
    %52 = arith.addf %46, %51 : vector<2x12x96xf32>
    %c7 = arith.constant 7 : index
    %c0_27 = arith.constant 0 : index
    %53 = vector.load %arg1[%c7, %c0_27] : memref<15x96xf32, #tpu.memory_space<vmem>>, vector<1x96xf32>
    %54 = vector.extract_strided_slice %40 {offsets = [0, 2, 0], sizes = [2, 12, 96], strides = [1, 1, 1]} : vector<2x16x96xf32> to vector<2x12x96xf32>
    %55 = vector.shape_cast %53 : vector<1x96xf32> to vector<1x1x96xf32>
    %56 = vector.broadcast %55 : vector<1x1x96xf32> to vector<2x12x96xf32>
    %57 = arith.mulf %56, %54 : vector<2x12x96xf32>
    %58 = arith.addf %52, %57 : vector<2x12x96xf32>
    %c8 = arith.constant 8 : index
    %c0_28 = arith.constant 0 : index
    %59 = vector.load %arg1[%c8, %c0_28] : memref<15x96xf32, #tpu.memory_space<vmem>>, vector<1x96xf32>
    %60 = vector.extract_strided_slice %40 {offsets = [0, 3, 0], sizes = [2, 12, 96], strides = [1, 1, 1]} : vector<2x16x96xf32> to vector<2x12x96xf32>
    %61 = vector.shape_cast %59 : vector<1x96xf32> to vector<1x1x96xf32>
    %62 = vector.broadcast %61 : vector<1x1x96xf32> to vector<2x12x96xf32>
    %63 = arith.mulf %62, %60 : vector<2x12x96xf32>
    %64 = arith.addf %58, %63 : vector<2x12x96xf32>
    %c9 = arith.constant 9 : index
    %c0_29 = arith.constant 0 : index
    %65 = vector.load %arg1[%c9, %c0_29] : memref<15x96xf32, #tpu.memory_space<vmem>>, vector<1x96xf32>
    %66 = vector.extract_strided_slice %40 {offsets = [0, 4, 0], sizes = [2, 12, 96], strides = [1, 1, 1]} : vector<2x16x96xf32> to vector<2x12x96xf32>
    %67 = vector.shape_cast %65 : vector<1x96xf32> to vector<1x1x96xf32>
    %68 = vector.broadcast %67 : vector<1x1x96xf32> to vector<2x12x96xf32>
    %69 = arith.mulf %68, %66 : vector<2x12x96xf32>
    %70 = arith.addf %64, %69 : vector<2x12x96xf32>
    %c0_30 = arith.constant 0 : index
    %c2_31 = arith.constant 2 : index
    %c0_32 = arith.constant 0 : index
    %c0_33 = arith.constant 0 : index
    %71 = vector.load %arg0[%c0_30, %c2_31, %c0_32, %c0_33] : memref<2x3x16x32xf32, #tpu.memory_space<vmem>>, vector<2x1x16x32xf32>
    %72 = vector.shape_cast %71 : vector<2x1x16x32xf32> to vector<2x16x32xf32>
    %73 = tpu.concatenate %72, %72, %72 in 2 : vector<2x16x32xf32>, vector<2x16x32xf32>, vector<2x16x32xf32> -> vector<2x16x96xf32>
    %c10 = arith.constant 10 : index
    %c0_34 = arith.constant 0 : index
    %74 = vector.load %arg1[%c10, %c0_34] : memref<15x96xf32, #tpu.memory_space<vmem>>, vector<1x96xf32>
    %75 = vector.extract_strided_slice %73 {offsets = [0, 0, 0], sizes = [2, 12, 96], strides = [1, 1, 1]} : vector<2x16x96xf32> to vector<2x12x96xf32>
    %76 = vector.shape_cast %74 : vector<1x96xf32> to vector<1x1x96xf32>
    %77 = vector.broadcast %76 : vector<1x1x96xf32> to vector<2x12x96xf32>
    %78 = arith.mulf %77, %75 : vector<2x12x96xf32>
    %79 = arith.addf %70, %78 : vector<2x12x96xf32>
    %c11 = arith.constant 11 : index
    %c0_35 = arith.constant 0 : index
    %80 = vector.load %arg1[%c11, %c0_35] : memref<15x96xf32, #tpu.memory_space<vmem>>, vector<1x96xf32>
    %81 = vector.extract_strided_slice %73 {offsets = [0, 1, 0], sizes = [2, 12, 96], strides = [1, 1, 1]} : vector<2x16x96xf32> to vector<2x12x96xf32>
    %82 = vector.shape_cast %80 : vector<1x96xf32> to vector<1x1x96xf32>
    %83 = vector.broadcast %82 : vector<1x1x96xf32> to vector<2x12x96xf32>
    %84 = arith.mulf %83, %81 : vector<2x12x96xf32>
    %85 = arith.addf %79, %84 : vector<2x12x96xf32>
    %c12 = arith.constant 12 : index
    %c0_36 = arith.constant 0 : index
    %86 = vector.load %arg1[%c12, %c0_36] : memref<15x96xf32, #tpu.memory_space<vmem>>, vector<1x96xf32>
    %87 = vector.extract_strided_slice %73 {offsets = [0, 2, 0], sizes = [2, 12, 96], strides = [1, 1, 1]} : vector<2x16x96xf32> to vector<2x12x96xf32>
    %88 = vector.shape_cast %86 : vector<1x96xf32> to vector<1x1x96xf32>
    %89 = vector.broadcast %88 : vector<1x1x96xf32> to vector<2x12x96xf32>
    %90 = arith.mulf %89, %87 : vector<2x12x96xf32>
    %91 = arith.addf %85, %90 : vector<2x12x96xf32>
    %c13 = arith.constant 13 : index
    %c0_37 = arith.constant 0 : index
    %92 = vector.load %arg1[%c13, %c0_37] : memref<15x96xf32, #tpu.memory_space<vmem>>, vector<1x96xf32>
    %93 = vector.extract_strided_slice %73 {offsets = [0, 3, 0], sizes = [2, 12, 96], strides = [1, 1, 1]} : vector<2x16x96xf32> to vector<2x12x96xf32>
    %94 = vector.shape_cast %92 : vector<1x96xf32> to vector<1x1x96xf32>
    %95 = vector.broadcast %94 : vector<1x1x96xf32> to vector<2x12x96xf32>
    %96 = arith.mulf %95, %93 : vector<2x12x96xf32>
    %97 = arith.addf %91, %96 : vector<2x12x96xf32>
    %c14 = arith.constant 14 : index
    %c0_38 = arith.constant 0 : index
    %98 = vector.load %arg1[%c14, %c0_38] : memref<15x96xf32, #tpu.memory_space<vmem>>, vector<1x96xf32>
    %99 = vector.extract_strided_slice %73 {offsets = [0, 4, 0], sizes = [2, 12, 96], strides = [1, 1, 1]} : vector<2x16x96xf32> to vector<2x12x96xf32>
    %100 = vector.shape_cast %98 : vector<1x96xf32> to vector<1x1x96xf32>
    %101 = vector.broadcast %100 : vector<1x1x96xf32> to vector<2x12x96xf32>
    %102 = arith.mulf %101, %99 : vector<2x12x96xf32>
    %103 = arith.addf %97, %102 : vector<2x12x96xf32>
    %cst = arith.constant dense<0.000000e+00> : vector<2x96xf32>
    %104 = vector.multi_reduction <add>, %103, %cst [1] : vector<2x12x96xf32> to vector<2x96xf32>
    %105 = vector.shape_cast %104 : vector<2x96xf32> to vector<2x1x96xf32>
    %cst_39 = arith.constant dense<0.000000e+00> : vector<1x96xf32>
    %106 = vector.multi_reduction <add>, %105, %cst_39 [0] : vector<2x1x96xf32> to vector<1x96xf32>
    %107 = vector.shape_cast %106 : vector<1x96xf32> to vector<1x1x96xf32>
    %108 = vector.shape_cast %107 : vector<1x1x96xf32> to vector<1x96xf32>
    %109 = arith.mulf %103, %103 : vector<2x12x96xf32>
    %cst_40 = arith.constant dense<0.000000e+00> : vector<2x96xf32>
    %110 = vector.multi_reduction <add>, %109, %cst_40 [1] : vector<2x12x96xf32> to vector<2x96xf32>
    %111 = vector.shape_cast %110 : vector<2x96xf32> to vector<2x1x96xf32>
    %cst_41 = arith.constant dense<0.000000e+00> : vector<1x96xf32>
    %112 = vector.multi_reduction <add>, %111, %cst_41 [0] : vector<2x1x96xf32> to vector<1x96xf32>
    %113 = vector.shape_cast %112 : vector<1x96xf32> to vector<1x1x96xf32>
    %114 = vector.shape_cast %113 : vector<1x1x96xf32> to vector<1x96xf32>
    %cst_42 = arith.constant dense<0.000000e+00> : vector<1x3xf32>
    %115 = tpu.matmul %108, %0, %cst_42 {dimension_numbers = #tpu.dot_dimension_numbers<[1], [0], [0], [1], [0, 0, 1, 1], [], []>} : vector<1x96xf32>, vector<96x3xf32>, vector<1x3xf32> -> vector<1x3xf32>
    %cst_43 = arith.constant dense<0.000000e+00> : vector<1x3xf32>
    %116 = tpu.matmul %114, %0, %cst_43 {dimension_numbers = #tpu.dot_dimension_numbers<[1], [0], [0], [1], [0, 0, 1, 1], [], []>} : vector<1x96xf32>, vector<96x3xf32>, vector<1x3xf32> -> vector<1x3xf32>
    %cst_44 = arith.constant 0.00130208337 : f32
    %117 = vector.broadcast %cst_44 : f32 to vector<1x3xf32>
    %118 = arith.mulf %115, %117 : vector<1x3xf32>
    %cst_45 = arith.constant 0.00130208337 : f32
    %119 = vector.broadcast %cst_45 : f32 to vector<1x3xf32>
    %120 = arith.mulf %116, %119 : vector<1x3xf32>
    %121 = arith.mulf %118, %118 : vector<1x3xf32>
    %122 = arith.subf %120, %121 : vector<1x3xf32>
    %cst_46 = arith.constant 0.000000e+00 : f32
    %123 = vector.broadcast %cst_46 : f32 to vector<1x3xf32>
    %124 = arith.maximumf %122, %123 : vector<1x3xf32>
    %cst_47 = arith.constant 9.99999974E-6 : f32
    %125 = vector.broadcast %cst_47 : f32 to vector<1x3xf32>
    %126 = arith.addf %124, %125 : vector<1x3xf32>
    %127 = math.rsqrt %126 : vector<1x3xf32>
    %128 = arith.mulf %2, %127 : vector<1x3xf32>
    %129 = arith.mulf %128, %118 : vector<1x3xf32>
    %130 = arith.subf %3, %129 : vector<1x3xf32>
    %cst_48 = arith.constant dense<0.000000e+00> : vector<1x96xf32>
    %131 = tpu.matmul %128, %1, %cst_48 {dimension_numbers = #tpu.dot_dimension_numbers<[1], [0], [0], [1], [0, 0, 1, 1], [], []>} : vector<1x3xf32>, vector<3x96xf32>, vector<1x96xf32> -> vector<1x96xf32>
    %cst_49 = arith.constant dense<0.000000e+00> : vector<1x96xf32>
    %132 = tpu.matmul %130, %1, %cst_49 {dimension_numbers = #tpu.dot_dimension_numbers<[1], [0], [0], [1], [0, 0, 1, 1], [], []>} : vector<1x3xf32>, vector<3x96xf32>, vector<1x96xf32> -> vector<1x96xf32>
    %133 = vector.shape_cast %131 : vector<1x96xf32> to vector<1x1x96xf32>
    %134 = vector.broadcast %133 : vector<1x1x96xf32> to vector<2x12x96xf32>
    %135 = arith.mulf %103, %134 : vector<2x12x96xf32>
    %136 = vector.shape_cast %132 : vector<1x96xf32> to vector<1x1x96xf32>
    %137 = vector.broadcast %136 : vector<1x1x96xf32> to vector<2x12x96xf32>
    %138 = arith.addf %135, %137 : vector<2x12x96xf32>
    %cst_50 = arith.constant 0.000000e+00 : f32
    %139 = vector.broadcast %cst_50 : f32 to vector<2x12x96xf32>
    %140 = arith.maximumf %138, %139 : vector<2x12x96xf32>
    %141 = vector.extract_strided_slice %140 {offsets = [0, 0, 0], sizes = [2, 11, 96], strides = [1, 1, 1]} : vector<2x12x96xf32> to vector<2x11x96xf32>
    %142 = vector.extract_strided_slice %140 {offsets = [0, 1, 0], sizes = [2, 11, 96], strides = [1, 1, 1]} : vector<2x12x96xf32> to vector<2x11x96xf32>
    %143 = arith.maximumf %141, %142 : vector<2x11x96xf32>
    %144 = vector.extract_strided_slice %143 {offsets = [0, 0, 0], sizes = [2, 1, 96], strides = [1, 1, 1]} : vector<2x11x96xf32> to vector<2x1x96xf32>
    %145 = vector.extract_strided_slice %143 {offsets = [0, 2, 0], sizes = [2, 1, 96], strides = [1, 1, 1]} : vector<2x11x96xf32> to vector<2x1x96xf32>
    %146 = vector.extract_strided_slice %143 {offsets = [0, 4, 0], sizes = [2, 1, 96], strides = [1, 1, 1]} : vector<2x11x96xf32> to vector<2x1x96xf32>
    %147 = vector.extract_strided_slice %143 {offsets = [0, 6, 0], sizes = [2, 1, 96], strides = [1, 1, 1]} : vector<2x11x96xf32> to vector<2x1x96xf32>
    %148 = vector.extract_strided_slice %143 {offsets = [0, 8, 0], sizes = [2, 1, 96], strides = [1, 1, 1]} : vector<2x11x96xf32> to vector<2x1x96xf32>
    %149 = vector.extract_strided_slice %143 {offsets = [0, 10, 0], sizes = [2, 1, 96], strides = [1, 1, 1]} : vector<2x11x96xf32> to vector<2x1x96xf32>
    %150 = tpu.concatenate %144, %145, %146, %147, %148, %149 in 1 : vector<2x1x96xf32>, vector<2x1x96xf32>, vector<2x1x96xf32>, vector<2x1x96xf32>, vector<2x1x96xf32>, vector<2x1x96xf32> -> vector<2x6x96xf32>
    %151 = vector.extract_strided_slice %150 {offsets = [0, 0, 0], sizes = [2, 6, 32], strides = [1, 1, 1]} : vector<2x6x96xf32> to vector<2x6x32xf32>
    %152 = tpu.concatenate %151, %151, %151 in 2 : vector<2x6x32xf32>, vector<2x6x32xf32>, vector<2x6x32xf32> -> vector<2x6x96xf32>
    %c0_51 = arith.constant 0 : index
    %c0_52 = arith.constant 0 : index
    %153 = vector.load %arg2[%c0_51, %c0_52] : memref<9x96xf32, #tpu.memory_space<vmem>>, vector<1x96xf32>
    %154 = vector.extract_strided_slice %152 {offsets = [0, 0, 0], sizes = [2, 4, 96], strides = [1, 1, 1]} : vector<2x6x96xf32> to vector<2x4x96xf32>
    %155 = vector.shape_cast %153 : vector<1x96xf32> to vector<1x1x96xf32>
    %156 = vector.broadcast %155 : vector<1x1x96xf32> to vector<2x4x96xf32>
    %157 = arith.mulf %156, %154 : vector<2x4x96xf32>
    %c1_53 = arith.constant 1 : index
    %c0_54 = arith.constant 0 : index
    %158 = vector.load %arg2[%c1_53, %c0_54] : memref<9x96xf32, #tpu.memory_space<vmem>>, vector<1x96xf32>
    %159 = vector.extract_strided_slice %152 {offsets = [0, 1, 0], sizes = [2, 4, 96], strides = [1, 1, 1]} : vector<2x6x96xf32> to vector<2x4x96xf32>
    %160 = vector.shape_cast %158 : vector<1x96xf32> to vector<1x1x96xf32>
    %161 = vector.broadcast %160 : vector<1x1x96xf32> to vector<2x4x96xf32>
    %162 = arith.mulf %161, %159 : vector<2x4x96xf32>
    %163 = arith.addf %157, %162 : vector<2x4x96xf32>
    %c2_55 = arith.constant 2 : index
    %c0_56 = arith.constant 0 : index
    %164 = vector.load %arg2[%c2_55, %c0_56] : memref<9x96xf32, #tpu.memory_space<vmem>>, vector<1x96xf32>
    %165 = vector.extract_strided_slice %152 {offsets = [0, 2, 0], sizes = [2, 4, 96], strides = [1, 1, 1]} : vector<2x6x96xf32> to vector<2x4x96xf32>
    %166 = vector.shape_cast %164 : vector<1x96xf32> to vector<1x1x96xf32>
    %167 = vector.broadcast %166 : vector<1x1x96xf32> to vector<2x4x96xf32>
    %168 = arith.mulf %167, %165 : vector<2x4x96xf32>
    %169 = arith.addf %163, %168 : vector<2x4x96xf32>
    %170 = vector.extract_strided_slice %150 {offsets = [0, 0, 32], sizes = [2, 6, 32], strides = [1, 1, 1]} : vector<2x6x96xf32> to vector<2x6x32xf32>
    %171 = tpu.concatenate %170, %170, %170 in 2 : vector<2x6x32xf32>, vector<2x6x32xf32>, vector<2x6x32xf32> -> vector<2x6x96xf32>
    %c3_57 = arith.constant 3 : index
    %c0_58 = arith.constant 0 : index
    %172 = vector.load %arg2[%c3_57, %c0_58] : memref<9x96xf32, #tpu.memory_space<vmem>>, vector<1x96xf32>
    %173 = vector.extract_strided_slice %171 {offsets = [0, 0, 0], sizes = [2, 4, 96], strides = [1, 1, 1]} : vector<2x6x96xf32> to vector<2x4x96xf32>
    %174 = vector.shape_cast %172 : vector<1x96xf32> to vector<1x1x96xf32>
    %175 = vector.broadcast %174 : vector<1x1x96xf32> to vector<2x4x96xf32>
    %176 = arith.mulf %175, %173 : vector<2x4x96xf32>
    %177 = arith.addf %169, %176 : vector<2x4x96xf32>
    %c4_59 = arith.constant 4 : index
    %c0_60 = arith.constant 0 : index
    %178 = vector.load %arg2[%c4_59, %c0_60] : memref<9x96xf32, #tpu.memory_space<vmem>>, vector<1x96xf32>
    %179 = vector.extract_strided_slice %171 {offsets = [0, 1, 0], sizes = [2, 4, 96], strides = [1, 1, 1]} : vector<2x6x96xf32> to vector<2x4x96xf32>
    %180 = vector.shape_cast %178 : vector<1x96xf32> to vector<1x1x96xf32>
    %181 = vector.broadcast %180 : vector<1x1x96xf32> to vector<2x4x96xf32>
    %182 = arith.mulf %181, %179 : vector<2x4x96xf32>
    %183 = arith.addf %177, %182 : vector<2x4x96xf32>
    %c5_61 = arith.constant 5 : index
    %c0_62 = arith.constant 0 : index
    %184 = vector.load %arg2[%c5_61, %c0_62] : memref<9x96xf32, #tpu.memory_space<vmem>>, vector<1x96xf32>
    %185 = vector.extract_strided_slice %171 {offsets = [0, 2, 0], sizes = [2, 4, 96], strides = [1, 1, 1]} : vector<2x6x96xf32> to vector<2x4x96xf32>
    %186 = vector.shape_cast %184 : vector<1x96xf32> to vector<1x1x96xf32>
    %187 = vector.broadcast %186 : vector<1x1x96xf32> to vector<2x4x96xf32>
    %188 = arith.mulf %187, %185 : vector<2x4x96xf32>
    %189 = arith.addf %183, %188 : vector<2x4x96xf32>
    %190 = vector.extract_strided_slice %150 {offsets = [0, 0, 64], sizes = [2, 6, 32], strides = [1, 1, 1]} : vector<2x6x96xf32> to vector<2x6x32xf32>
    %191 = tpu.concatenate %190, %190, %190 in 2 : vector<2x6x32xf32>, vector<2x6x32xf32>, vector<2x6x32xf32> -> vector<2x6x96xf32>
    %c6_63 = arith.constant 6 : index
    %c0_64 = arith.constant 0 : index
    %192 = vector.load %arg2[%c6_63, %c0_64] : memref<9x96xf32, #tpu.memory_space<vmem>>, vector<1x96xf32>
    %193 = vector.extract_strided_slice %191 {offsets = [0, 0, 0], sizes = [2, 4, 96], strides = [1, 1, 1]} : vector<2x6x96xf32> to vector<2x4x96xf32>
    %194 = vector.shape_cast %192 : vector<1x96xf32> to vector<1x1x96xf32>
    %195 = vector.broadcast %194 : vector<1x1x96xf32> to vector<2x4x96xf32>
    %196 = arith.mulf %195, %193 : vector<2x4x96xf32>
    %197 = arith.addf %189, %196 : vector<2x4x96xf32>
    %c7_65 = arith.constant 7 : index
    %c0_66 = arith.constant 0 : index
    %198 = vector.load %arg2[%c7_65, %c0_66] : memref<9x96xf32, #tpu.memory_space<vmem>>, vector<1x96xf32>
    %199 = vector.extract_strided_slice %191 {offsets = [0, 1, 0], sizes = [2, 4, 96], strides = [1, 1, 1]} : vector<2x6x96xf32> to vector<2x4x96xf32>
    %200 = vector.shape_cast %198 : vector<1x96xf32> to vector<1x1x96xf32>
    %201 = vector.broadcast %200 : vector<1x1x96xf32> to vector<2x4x96xf32>
    %202 = arith.mulf %201, %199 : vector<2x4x96xf32>
    %203 = arith.addf %197, %202 : vector<2x4x96xf32>
    %c8_67 = arith.constant 8 : index
    %c0_68 = arith.constant 0 : index
    %204 = vector.load %arg2[%c8_67, %c0_68] : memref<9x96xf32, #tpu.memory_space<vmem>>, vector<1x96xf32>
    %205 = vector.extract_strided_slice %191 {offsets = [0, 2, 0], sizes = [2, 4, 96], strides = [1, 1, 1]} : vector<2x6x96xf32> to vector<2x4x96xf32>
    %206 = vector.shape_cast %204 : vector<1x96xf32> to vector<1x1x96xf32>
    %207 = vector.broadcast %206 : vector<1x1x96xf32> to vector<2x4x96xf32>
    %208 = arith.mulf %207, %205 : vector<2x4x96xf32>
    %209 = arith.addf %203, %208 : vector<2x4x96xf32>
    %cst_69 = arith.constant dense<0.000000e+00> : vector<2x96xf32>
    %210 = vector.multi_reduction <add>, %209, %cst_69 [1] : vector<2x4x96xf32> to vector<2x96xf32>
    %211 = vector.shape_cast %210 : vector<2x96xf32> to vector<2x1x96xf32>
    %cst_70 = arith.constant dense<0.000000e+00> : vector<1x96xf32>
    %212 = vector.multi_reduction <add>, %211, %cst_70 [0] : vector<2x1x96xf32> to vector<1x96xf32>
    %213 = vector.shape_cast %212 : vector<1x96xf32> to vector<1x1x96xf32>
    %214 = vector.shape_cast %213 : vector<1x1x96xf32> to vector<1x96xf32>
    %215 = arith.mulf %209, %209 : vector<2x4x96xf32>
    %cst_71 = arith.constant dense<0.000000e+00> : vector<2x96xf32>
    %216 = vector.multi_reduction <add>, %215, %cst_71 [1] : vector<2x4x96xf32> to vector<2x96xf32>
    %217 = vector.shape_cast %216 : vector<2x96xf32> to vector<2x1x96xf32>
    %cst_72 = arith.constant dense<0.000000e+00> : vector<1x96xf32>
    %218 = vector.multi_reduction <add>, %217, %cst_72 [0] : vector<2x1x96xf32> to vector<1x96xf32>
    %219 = vector.shape_cast %218 : vector<1x96xf32> to vector<1x1x96xf32>
    %220 = vector.shape_cast %219 : vector<1x1x96xf32> to vector<1x96xf32>
    %cst_73 = arith.constant dense<0.000000e+00> : vector<1x3xf32>
    %221 = tpu.matmul %214, %0, %cst_73 {dimension_numbers = #tpu.dot_dimension_numbers<[1], [0], [0], [1], [0, 0, 1, 1], [], []>} : vector<1x96xf32>, vector<96x3xf32>, vector<1x3xf32> -> vector<1x3xf32>
    %cst_74 = arith.constant dense<0.000000e+00> : vector<1x3xf32>
    %222 = tpu.matmul %220, %0, %cst_74 {dimension_numbers = #tpu.dot_dimension_numbers<[1], [0], [0], [1], [0, 0, 1, 1], [], []>} : vector<1x96xf32>, vector<96x3xf32>, vector<1x3xf32> -> vector<1x3xf32>
    %cst_75 = arith.constant 3.906250e-03 : f32
    %223 = vector.broadcast %cst_75 : f32 to vector<1x3xf32>
    %224 = arith.mulf %221, %223 : vector<1x3xf32>
    %cst_76 = arith.constant 3.906250e-03 : f32
    %225 = vector.broadcast %cst_76 : f32 to vector<1x3xf32>
    %226 = arith.mulf %222, %225 : vector<1x3xf32>
    %227 = arith.mulf %224, %224 : vector<1x3xf32>
    %228 = arith.subf %226, %227 : vector<1x3xf32>
    %cst_77 = arith.constant 0.000000e+00 : f32
    %229 = vector.broadcast %cst_77 : f32 to vector<1x3xf32>
    %230 = arith.maximumf %228, %229 : vector<1x3xf32>
    %cst_78 = arith.constant 9.99999974E-6 : f32
    %231 = vector.broadcast %cst_78 : f32 to vector<1x3xf32>
    %232 = arith.addf %230, %231 : vector<1x3xf32>
    %233 = math.rsqrt %232 : vector<1x3xf32>
    %234 = arith.mulf %4, %233 : vector<1x3xf32>
    %235 = arith.mulf %234, %224 : vector<1x3xf32>
    %236 = arith.subf %5, %235 : vector<1x3xf32>
    %cst_79 = arith.constant dense<0.000000e+00> : vector<1x96xf32>
    %237 = tpu.matmul %234, %1, %cst_79 {dimension_numbers = #tpu.dot_dimension_numbers<[1], [0], [0], [1], [0, 0, 1, 1], [], []>} : vector<1x3xf32>, vector<3x96xf32>, vector<1x96xf32> -> vector<1x96xf32>
    %cst_80 = arith.constant dense<0.000000e+00> : vector<1x96xf32>
    %238 = tpu.matmul %236, %1, %cst_80 {dimension_numbers = #tpu.dot_dimension_numbers<[1], [0], [0], [1], [0, 0, 1, 1], [], []>} : vector<1x3xf32>, vector<3x96xf32>, vector<1x96xf32> -> vector<1x96xf32>
    %239 = vector.shape_cast %237 : vector<1x96xf32> to vector<1x1x96xf32>
    %240 = vector.broadcast %239 : vector<1x1x96xf32> to vector<2x4x96xf32>
    %241 = arith.mulf %209, %240 : vector<2x4x96xf32>
    %242 = vector.shape_cast %238 : vector<1x96xf32> to vector<1x1x96xf32>
    %243 = vector.broadcast %242 : vector<1x1x96xf32> to vector<2x4x96xf32>
    %244 = arith.addf %241, %243 : vector<2x4x96xf32>
    %cst_81 = arith.constant 0.000000e+00 : f32
    %245 = vector.broadcast %cst_81 : f32 to vector<2x4x96xf32>
    %246 = arith.maximumf %244, %245 : vector<2x4x96xf32>
    %cst_82 = arith.constant dense<0xFF800000> : vector<2x96xf32>
    %247 = vector.multi_reduction <maximumf>, %246, %cst_82 [1] : vector<2x4x96xf32> to vector<2x96xf32>
    %248 = vector.extract_strided_slice %247 {offsets = [0, 0], sizes = [2, 32], strides = [1, 1]} : vector<2x96xf32> to vector<2x32xf32>
    %249 = vector.extract_strided_slice %247 {offsets = [0, 32], sizes = [2, 32], strides = [1, 1]} : vector<2x96xf32> to vector<2x32xf32>
    %250 = arith.maximumf %248, %249 : vector<2x32xf32>
    %251 = vector.extract_strided_slice %247 {offsets = [0, 64], sizes = [2, 32], strides = [1, 1]} : vector<2x96xf32> to vector<2x32xf32>
    %252 = arith.maximumf %250, %251 : vector<2x32xf32>
    %c0_83 = arith.constant 0 : index
    %c0_84 = arith.constant 0 : index
    %253 = vector.load %arg10[%c0_83, %c0_84] : memref<128x4xf32, #tpu.memory_space<vmem>>, vector<128x4xf32>
    %c0_85 = arith.constant 0 : index
    %c0_86 = arith.constant 0 : index
    %254 = vector.load %arg11[%c0_85, %c0_86] : memref<4x128xf32, #tpu.memory_space<vmem>>, vector<4x128xf32>
    %c0_87 = arith.constant 0 : index
    %c0_88 = arith.constant 0 : index
    %255 = vector.load %arg9[%c0_87, %c0_88] : memref<4x4xf32, #tpu.memory_space<vmem>>, vector<1x4xf32>
    %c1_89 = arith.constant 1 : index
    %c0_90 = arith.constant 0 : index
    %256 = vector.load %arg9[%c1_89, %c0_90] : memref<4x4xf32, #tpu.memory_space<vmem>>, vector<1x4xf32>
    %c2_91 = arith.constant 2 : index
    %c0_92 = arith.constant 0 : index
    %257 = vector.load %arg9[%c2_91, %c0_92] : memref<4x4xf32, #tpu.memory_space<vmem>>, vector<1x4xf32>
    %c3_93 = arith.constant 3 : index
    %c0_94 = arith.constant 0 : index
    %258 = vector.load %arg9[%c3_93, %c0_94] : memref<4x4xf32, #tpu.memory_space<vmem>>, vector<1x4xf32>
    %c0_95 = arith.constant 0 : index
    %c0_96 = arith.constant 0 : index
    %c0_97 = arith.constant 0 : index
    %c0_98 = arith.constant 0 : index
    %259 = vector.load %arg6[%c0_95, %c0_96, %c0_97, %c0_98] : memref<2x4x16x32xf32, #tpu.memory_space<vmem>>, vector<2x1x16x32xf32>
    %260 = vector.shape_cast %259 : vector<2x1x16x32xf32> to vector<2x16x32xf32>
    %261 = tpu.concatenate %260, %260, %260, %260 in 2 : vector<2x16x32xf32>, vector<2x16x32xf32>, vector<2x16x32xf32>, vector<2x16x32xf32> -> vector<2x16x128xf32>
    %c0_99 = arith.constant 0 : index
    %c0_100 = arith.constant 0 : index
    %262 = vector.load %arg7[%c0_99, %c0_100] : memref<20x128xf32, #tpu.memory_space<vmem>>, vector<1x128xf32>
    %263 = vector.extract_strided_slice %261 {offsets = [0, 0, 0], sizes = [2, 12, 128], strides = [1, 1, 1]} : vector<2x16x128xf32> to vector<2x12x128xf32>
    %264 = vector.shape_cast %262 : vector<1x128xf32> to vector<1x1x128xf32>
    %265 = vector.broadcast %264 : vector<1x1x128xf32> to vector<2x12x128xf32>
    %266 = arith.mulf %265, %263 : vector<2x12x128xf32>
    %c1_101 = arith.constant 1 : index
    %c0_102 = arith.constant 0 : index
    %267 = vector.load %arg7[%c1_101, %c0_102] : memref<20x128xf32, #tpu.memory_space<vmem>>, vector<1x128xf32>
    %268 = vector.extract_strided_slice %261 {offsets = [0, 1, 0], sizes = [2, 12, 128], strides = [1, 1, 1]} : vector<2x16x128xf32> to vector<2x12x128xf32>
    %269 = vector.shape_cast %267 : vector<1x128xf32> to vector<1x1x128xf32>
    %270 = vector.broadcast %269 : vector<1x1x128xf32> to vector<2x12x128xf32>
    %271 = arith.mulf %270, %268 : vector<2x12x128xf32>
    %272 = arith.addf %266, %271 : vector<2x12x128xf32>
    %c2_103 = arith.constant 2 : index
    %c0_104 = arith.constant 0 : index
    %273 = vector.load %arg7[%c2_103, %c0_104] : memref<20x128xf32, #tpu.memory_space<vmem>>, vector<1x128xf32>
    %274 = vector.extract_strided_slice %261 {offsets = [0, 2, 0], sizes = [2, 12, 128], strides = [1, 1, 1]} : vector<2x16x128xf32> to vector<2x12x128xf32>
    %275 = vector.shape_cast %273 : vector<1x128xf32> to vector<1x1x128xf32>
    %276 = vector.broadcast %275 : vector<1x1x128xf32> to vector<2x12x128xf32>
    %277 = arith.mulf %276, %274 : vector<2x12x128xf32>
    %278 = arith.addf %272, %277 : vector<2x12x128xf32>
    %c3_105 = arith.constant 3 : index
    %c0_106 = arith.constant 0 : index
    %279 = vector.load %arg7[%c3_105, %c0_106] : memref<20x128xf32, #tpu.memory_space<vmem>>, vector<1x128xf32>
    %280 = vector.extract_strided_slice %261 {offsets = [0, 3, 0], sizes = [2, 12, 128], strides = [1, 1, 1]} : vector<2x16x128xf32> to vector<2x12x128xf32>
    %281 = vector.shape_cast %279 : vector<1x128xf32> to vector<1x1x128xf32>
    %282 = vector.broadcast %281 : vector<1x1x128xf32> to vector<2x12x128xf32>
    %283 = arith.mulf %282, %280 : vector<2x12x128xf32>
    %284 = arith.addf %278, %283 : vector<2x12x128xf32>
    %c4_107 = arith.constant 4 : index
    %c0_108 = arith.constant 0 : index
    %285 = vector.load %arg7[%c4_107, %c0_108] : memref<20x128xf32, #tpu.memory_space<vmem>>, vector<1x128xf32>
    %286 = vector.extract_strided_slice %261 {offsets = [0, 4, 0], sizes = [2, 12, 128], strides = [1, 1, 1]} : vector<2x16x128xf32> to vector<2x12x128xf32>
    %287 = vector.shape_cast %285 : vector<1x128xf32> to vector<1x1x128xf32>
    %288 = vector.broadcast %287 : vector<1x1x128xf32> to vector<2x12x128xf32>
    %289 = arith.mulf %288, %286 : vector<2x12x128xf32>
    %290 = arith.addf %284, %289 : vector<2x12x128xf32>
    %c0_109 = arith.constant 0 : index
    %c1_110 = arith.constant 1 : index
    %c0_111 = arith.constant 0 : index
    %c0_112 = arith.constant 0 : index
    %291 = vector.load %arg6[%c0_109, %c1_110, %c0_111, %c0_112] : memref<2x4x16x32xf32, #tpu.memory_space<vmem>>, vector<2x1x16x32xf32>
    %292 = vector.shape_cast %291 : vector<2x1x16x32xf32> to vector<2x16x32xf32>
    %293 = tpu.concatenate %292, %292, %292, %292 in 2 : vector<2x16x32xf32>, vector<2x16x32xf32>, vector<2x16x32xf32>, vector<2x16x32xf32> -> vector<2x16x128xf32>
    %c5_113 = arith.constant 5 : index
    %c0_114 = arith.constant 0 : index
    %294 = vector.load %arg7[%c5_113, %c0_114] : memref<20x128xf32, #tpu.memory_space<vmem>>, vector<1x128xf32>
    %295 = vector.extract_strided_slice %293 {offsets = [0, 0, 0], sizes = [2, 12, 128], strides = [1, 1, 1]} : vector<2x16x128xf32> to vector<2x12x128xf32>
    %296 = vector.shape_cast %294 : vector<1x128xf32> to vector<1x1x128xf32>
    %297 = vector.broadcast %296 : vector<1x1x128xf32> to vector<2x12x128xf32>
    %298 = arith.mulf %297, %295 : vector<2x12x128xf32>
    %299 = arith.addf %290, %298 : vector<2x12x128xf32>
    %c6_115 = arith.constant 6 : index
    %c0_116 = arith.constant 0 : index
    %300 = vector.load %arg7[%c6_115, %c0_116] : memref<20x128xf32, #tpu.memory_space<vmem>>, vector<1x128xf32>
    %301 = vector.extract_strided_slice %293 {offsets = [0, 1, 0], sizes = [2, 12, 128], strides = [1, 1, 1]} : vector<2x16x128xf32> to vector<2x12x128xf32>
    %302 = vector.shape_cast %300 : vector<1x128xf32> to vector<1x1x128xf32>
    %303 = vector.broadcast %302 : vector<1x1x128xf32> to vector<2x12x128xf32>
    %304 = arith.mulf %303, %301 : vector<2x12x128xf32>
    %305 = arith.addf %299, %304 : vector<2x12x128xf32>
    %c7_117 = arith.constant 7 : index
    %c0_118 = arith.constant 0 : index
    %306 = vector.load %arg7[%c7_117, %c0_118] : memref<20x128xf32, #tpu.memory_space<vmem>>, vector<1x128xf32>
    %307 = vector.extract_strided_slice %293 {offsets = [0, 2, 0], sizes = [2, 12, 128], strides = [1, 1, 1]} : vector<2x16x128xf32> to vector<2x12x128xf32>
    %308 = vector.shape_cast %306 : vector<1x128xf32> to vector<1x1x128xf32>
    %309 = vector.broadcast %308 : vector<1x1x128xf32> to vector<2x12x128xf32>
    %310 = arith.mulf %309, %307 : vector<2x12x128xf32>
    %311 = arith.addf %305, %310 : vector<2x12x128xf32>
    %c8_119 = arith.constant 8 : index
    %c0_120 = arith.constant 0 : index
    %312 = vector.load %arg7[%c8_119, %c0_120] : memref<20x128xf32, #tpu.memory_space<vmem>>, vector<1x128xf32>
    %313 = vector.extract_strided_slice %293 {offsets = [0, 3, 0], sizes = [2, 12, 128], strides = [1, 1, 1]} : vector<2x16x128xf32> to vector<2x12x128xf32>
    %314 = vector.shape_cast %312 : vector<1x128xf32> to vector<1x1x128xf32>
    %315 = vector.broadcast %314 : vector<1x1x128xf32> to vector<2x12x128xf32>
    %316 = arith.mulf %315, %313 : vector<2x12x128xf32>
    %317 = arith.addf %311, %316 : vector<2x12x128xf32>
    %c9_121 = arith.constant 9 : index
    %c0_122 = arith.constant 0 : index
    %318 = vector.load %arg7[%c9_121, %c0_122] : memref<20x128xf32, #tpu.memory_space<vmem>>, vector<1x128xf32>
    %319 = vector.extract_strided_slice %293 {offsets = [0, 4, 0], sizes = [2, 12, 128], strides = [1, 1, 1]} : vector<2x16x128xf32> to vector<2x12x128xf32>
    %320 = vector.shape_cast %318 : vector<1x128xf32> to vector<1x1x128xf32>
    %321 = vector.broadcast %320 : vector<1x1x128xf32> to vector<2x12x128xf32>
    %322 = arith.mulf %321, %319 : vector<2x12x128xf32>
    %323 = arith.addf %317, %322 : vector<2x12x128xf32>
    %c0_123 = arith.constant 0 : index
    %c2_124 = arith.constant 2 : index
    %c0_125 = arith.constant 0 : index
    %c0_126 = arith.constant 0 : index
    %324 = vector.load %arg6[%c0_123, %c2_124, %c0_125, %c0_126] : memref<2x4x16x32xf32, #tpu.memory_space<vmem>>, vector<2x1x16x32xf32>
    %325 = vector.shape_cast %324 : vector<2x1x16x32xf32> to vector<2x16x32xf32>
    %326 = tpu.concatenate %325, %325, %325, %325 in 2 : vector<2x16x32xf32>, vector<2x16x32xf32>, vector<2x16x32xf32>, vector<2x16x32xf32> -> vector<2x16x128xf32>
    %c10_127 = arith.constant 10 : index
    %c0_128 = arith.constant 0 : index
    %327 = vector.load %arg7[%c10_127, %c0_128] : memref<20x128xf32, #tpu.memory_space<vmem>>, vector<1x128xf32>
    %328 = vector.extract_strided_slice %326 {offsets = [0, 0, 0], sizes = [2, 12, 128], strides = [1, 1, 1]} : vector<2x16x128xf32> to vector<2x12x128xf32>
    %329 = vector.shape_cast %327 : vector<1x128xf32> to vector<1x1x128xf32>
    %330 = vector.broadcast %329 : vector<1x1x128xf32> to vector<2x12x128xf32>
    %331 = arith.mulf %330, %328 : vector<2x12x128xf32>
    %332 = arith.addf %323, %331 : vector<2x12x128xf32>
    %c11_129 = arith.constant 11 : index
    %c0_130 = arith.constant 0 : index
    %333 = vector.load %arg7[%c11_129, %c0_130] : memref<20x128xf32, #tpu.memory_space<vmem>>, vector<1x128xf32>
    %334 = vector.extract_strided_slice %326 {offsets = [0, 1, 0], sizes = [2, 12, 128], strides = [1, 1, 1]} : vector<2x16x128xf32> to vector<2x12x128xf32>
    %335 = vector.shape_cast %333 : vector<1x128xf32> to vector<1x1x128xf32>
    %336 = vector.broadcast %335 : vector<1x1x128xf32> to vector<2x12x128xf32>
    %337 = arith.mulf %336, %334 : vector<2x12x128xf32>
    %338 = arith.addf %332, %337 : vector<2x12x128xf32>
    %c12_131 = arith.constant 12 : index
    %c0_132 = arith.constant 0 : index
    %339 = vector.load %arg7[%c12_131, %c0_132] : memref<20x128xf32, #tpu.memory_space<vmem>>, vector<1x128xf32>
    %340 = vector.extract_strided_slice %326 {offsets = [0, 2, 0], sizes = [2, 12, 128], strides = [1, 1, 1]} : vector<2x16x128xf32> to vector<2x12x128xf32>
    %341 = vector.shape_cast %339 : vector<1x128xf32> to vector<1x1x128xf32>
    %342 = vector.broadcast %341 : vector<1x1x128xf32> to vector<2x12x128xf32>
    %343 = arith.mulf %342, %340 : vector<2x12x128xf32>
    %344 = arith.addf %338, %343 : vector<2x12x128xf32>
    %c13_133 = arith.constant 13 : index
    %c0_134 = arith.constant 0 : index
    %345 = vector.load %arg7[%c13_133, %c0_134] : memref<20x128xf32, #tpu.memory_space<vmem>>, vector<1x128xf32>
    %346 = vector.extract_strided_slice %326 {offsets = [0, 3, 0], sizes = [2, 12, 128], strides = [1, 1, 1]} : vector<2x16x128xf32> to vector<2x12x128xf32>
    %347 = vector.shape_cast %345 : vector<1x128xf32> to vector<1x1x128xf32>
    %348 = vector.broadcast %347 : vector<1x1x128xf32> to vector<2x12x128xf32>
    %349 = arith.mulf %348, %346 : vector<2x12x128xf32>
    %350 = arith.addf %344, %349 : vector<2x12x128xf32>
    %c14_135 = arith.constant 14 : index
    %c0_136 = arith.constant 0 : index
    %351 = vector.load %arg7[%c14_135, %c0_136] : memref<20x128xf32, #tpu.memory_space<vmem>>, vector<1x128xf32>
    %352 = vector.extract_strided_slice %326 {offsets = [0, 4, 0], sizes = [2, 12, 128], strides = [1, 1, 1]} : vector<2x16x128xf32> to vector<2x12x128xf32>
    %353 = vector.shape_cast %351 : vector<1x128xf32> to vector<1x1x128xf32>
    %354 = vector.broadcast %353 : vector<1x1x128xf32> to vector<2x12x128xf32>
    %355 = arith.mulf %354, %352 : vector<2x12x128xf32>
    %356 = arith.addf %350, %355 : vector<2x12x128xf32>
    %c0_137 = arith.constant 0 : index
    %c3_138 = arith.constant 3 : index
    %c0_139 = arith.constant 0 : index
    %c0_140 = arith.constant 0 : index
    %357 = vector.load %arg6[%c0_137, %c3_138, %c0_139, %c0_140] : memref<2x4x16x32xf32, #tpu.memory_space<vmem>>, vector<2x1x16x32xf32>
    %358 = vector.shape_cast %357 : vector<2x1x16x32xf32> to vector<2x16x32xf32>
    %359 = tpu.concatenate %358, %358, %358, %358 in 2 : vector<2x16x32xf32>, vector<2x16x32xf32>, vector<2x16x32xf32>, vector<2x16x32xf32> -> vector<2x16x128xf32>
    %c15 = arith.constant 15 : index
    %c0_141 = arith.constant 0 : index
    %360 = vector.load %arg7[%c15, %c0_141] : memref<20x128xf32, #tpu.memory_space<vmem>>, vector<1x128xf32>
    %361 = vector.extract_strided_slice %359 {offsets = [0, 0, 0], sizes = [2, 12, 128], strides = [1, 1, 1]} : vector<2x16x128xf32> to vector<2x12x128xf32>
    %362 = vector.shape_cast %360 : vector<1x128xf32> to vector<1x1x128xf32>
    %363 = vector.broadcast %362 : vector<1x1x128xf32> to vector<2x12x128xf32>
    %364 = arith.mulf %363, %361 : vector<2x12x128xf32>
    %365 = arith.addf %356, %364 : vector<2x12x128xf32>
    %c16 = arith.constant 16 : index
    %c0_142 = arith.constant 0 : index
    %366 = vector.load %arg7[%c16, %c0_142] : memref<20x128xf32, #tpu.memory_space<vmem>>, vector<1x128xf32>
    %367 = vector.extract_strided_slice %359 {offsets = [0, 1, 0], sizes = [2, 12, 128], strides = [1, 1, 1]} : vector<2x16x128xf32> to vector<2x12x128xf32>
    %368 = vector.shape_cast %366 : vector<1x128xf32> to vector<1x1x128xf32>
    %369 = vector.broadcast %368 : vector<1x1x128xf32> to vector<2x12x128xf32>
    %370 = arith.mulf %369, %367 : vector<2x12x128xf32>
    %371 = arith.addf %365, %370 : vector<2x12x128xf32>
    %c17 = arith.constant 17 : index
    %c0_143 = arith.constant 0 : index
    %372 = vector.load %arg7[%c17, %c0_143] : memref<20x128xf32, #tpu.memory_space<vmem>>, vector<1x128xf32>
    %373 = vector.extract_strided_slice %359 {offsets = [0, 2, 0], sizes = [2, 12, 128], strides = [1, 1, 1]} : vector<2x16x128xf32> to vector<2x12x128xf32>
    %374 = vector.shape_cast %372 : vector<1x128xf32> to vector<1x1x128xf32>
    %375 = vector.broadcast %374 : vector<1x1x128xf32> to vector<2x12x128xf32>
    %376 = arith.mulf %375, %373 : vector<2x12x128xf32>
    %377 = arith.addf %371, %376 : vector<2x12x128xf32>
    %c18 = arith.constant 18 : index
    %c0_144 = arith.constant 0 : index
    %378 = vector.load %arg7[%c18, %c0_144] : memref<20x128xf32, #tpu.memory_space<vmem>>, vector<1x128xf32>
    %379 = vector.extract_strided_slice %359 {offsets = [0, 3, 0], sizes = [2, 12, 128], strides = [1, 1, 1]} : vector<2x16x128xf32> to vector<2x12x128xf32>
    %380 = vector.shape_cast %378 : vector<1x128xf32> to vector<1x1x128xf32>
    %381 = vector.broadcast %380 : vector<1x1x128xf32> to vector<2x12x128xf32>
    %382 = arith.mulf %381, %379 : vector<2x12x128xf32>
    %383 = arith.addf %377, %382 : vector<2x12x128xf32>
    %c19 = arith.constant 19 : index
    %c0_145 = arith.constant 0 : index
    %384 = vector.load %arg7[%c19, %c0_145] : memref<20x128xf32, #tpu.memory_space<vmem>>, vector<1x128xf32>
    %385 = vector.extract_strided_slice %359 {offsets = [0, 4, 0], sizes = [2, 12, 128], strides = [1, 1, 1]} : vector<2x16x128xf32> to vector<2x12x128xf32>
    %386 = vector.shape_cast %384 : vector<1x128xf32> to vector<1x1x128xf32>
    %387 = vector.broadcast %386 : vector<1x1x128xf32> to vector<2x12x128xf32>
    %388 = arith.mulf %387, %385 : vector<2x12x128xf32>
    %389 = arith.addf %383, %388 : vector<2x12x128xf32>
    %cst_146 = arith.constant dense<0.000000e+00> : vector<2x128xf32>
    %390 = vector.multi_reduction <add>, %389, %cst_146 [1] : vector<2x12x128xf32> to vector<2x128xf32>
    %391 = vector.shape_cast %390 : vector<2x128xf32> to vector<2x1x128xf32>
    %cst_147 = arith.constant dense<0.000000e+00> : vector<1x128xf32>
    %392 = vector.multi_reduction <add>, %391, %cst_147 [0] : vector<2x1x128xf32> to vector<1x128xf32>
    %393 = vector.shape_cast %392 : vector<1x128xf32> to vector<1x1x128xf32>
    %394 = vector.shape_cast %393 : vector<1x1x128xf32> to vector<1x128xf32>
    %395 = arith.mulf %389, %389 : vector<2x12x128xf32>
    %cst_148 = arith.constant dense<0.000000e+00> : vector<2x128xf32>
    %396 = vector.multi_reduction <add>, %395, %cst_148 [1] : vector<2x12x128xf32> to vector<2x128xf32>
    %397 = vector.shape_cast %396 : vector<2x128xf32> to vector<2x1x128xf32>
    %cst_149 = arith.constant dense<0.000000e+00> : vector<1x128xf32>
    %398 = vector.multi_reduction <add>, %397, %cst_149 [0] : vector<2x1x128xf32> to vector<1x128xf32>
    %399 = vector.shape_cast %398 : vector<1x128xf32> to vector<1x1x128xf32>
    %400 = vector.shape_cast %399 : vector<1x1x128xf32> to vector<1x128xf32>
    %cst_150 = arith.constant dense<0.000000e+00> : vector<1x4xf32>
    %401 = tpu.matmul %394, %253, %cst_150 {dimension_numbers = #tpu.dot_dimension_numbers<[1], [0], [0], [1], [0, 0, 1, 1], [], []>} : vector<1x128xf32>, vector<128x4xf32>, vector<1x4xf32> -> vector<1x4xf32>
    %cst_151 = arith.constant dense<0.000000e+00> : vector<1x4xf32>
    %402 = tpu.matmul %400, %253, %cst_151 {dimension_numbers = #tpu.dot_dimension_numbers<[1], [0], [0], [1], [0, 0, 1, 1], [], []>} : vector<1x128xf32>, vector<128x4xf32>, vector<1x4xf32> -> vector<1x4xf32>
    %cst_152 = arith.constant 0.00130208337 : f32
    %403 = vector.broadcast %cst_152 : f32 to vector<1x4xf32>
    %404 = arith.mulf %401, %403 : vector<1x4xf32>
    %cst_153 = arith.constant 0.00130208337 : f32
    %405 = vector.broadcast %cst_153 : f32 to vector<1x4xf32>
    %406 = arith.mulf %402, %405 : vector<1x4xf32>
    %407 = arith.mulf %404, %404 : vector<1x4xf32>
    %408 = arith.subf %406, %407 : vector<1x4xf32>
    %cst_154 = arith.constant 0.000000e+00 : f32
    %409 = vector.broadcast %cst_154 : f32 to vector<1x4xf32>
    %410 = arith.maximumf %408, %409 : vector<1x4xf32>
    %cst_155 = arith.constant 9.99999974E-6 : f32
    %411 = vector.broadcast %cst_155 : f32 to vector<1x4xf32>
    %412 = arith.addf %410, %411 : vector<1x4xf32>
    %413 = math.rsqrt %412 : vector<1x4xf32>
    %414 = arith.mulf %255, %413 : vector<1x4xf32>
    %415 = arith.mulf %414, %404 : vector<1x4xf32>
    %416 = arith.subf %256, %415 : vector<1x4xf32>
    %cst_156 = arith.constant dense<0.000000e+00> : vector<1x128xf32>
    %417 = tpu.matmul %414, %254, %cst_156 {dimension_numbers = #tpu.dot_dimension_numbers<[1], [0], [0], [1], [0, 0, 1, 1], [], []>} : vector<1x4xf32>, vector<4x128xf32>, vector<1x128xf32> -> vector<1x128xf32>
    %cst_157 = arith.constant dense<0.000000e+00> : vector<1x128xf32>
    %418 = tpu.matmul %416, %254, %cst_157 {dimension_numbers = #tpu.dot_dimension_numbers<[1], [0], [0], [1], [0, 0, 1, 1], [], []>} : vector<1x4xf32>, vector<4x128xf32>, vector<1x128xf32> -> vector<1x128xf32>
    %419 = vector.shape_cast %417 : vector<1x128xf32> to vector<1x1x128xf32>
    %420 = vector.broadcast %419 : vector<1x1x128xf32> to vector<2x12x128xf32>
    %421 = arith.mulf %389, %420 : vector<2x12x128xf32>
    %422 = vector.shape_cast %418 : vector<1x128xf32> to vector<1x1x128xf32>
    %423 = vector.broadcast %422 : vector<1x1x128xf32> to vector<2x12x128xf32>
    %424 = arith.addf %421, %423 : vector<2x12x128xf32>
    %cst_158 = arith.constant 0.000000e+00 : f32
    %425 = vector.broadcast %cst_158 : f32 to vector<2x12x128xf32>
    %426 = arith.maximumf %424, %425 : vector<2x12x128xf32>
    %427 = vector.extract_strided_slice %426 {offsets = [0, 0, 0], sizes = [2, 11, 128], strides = [1, 1, 1]} : vector<2x12x128xf32> to vector<2x11x128xf32>
    %428 = vector.extract_strided_slice %426 {offsets = [0, 1, 0], sizes = [2, 11, 128], strides = [1, 1, 1]} : vector<2x12x128xf32> to vector<2x11x128xf32>
    %429 = arith.maximumf %427, %428 : vector<2x11x128xf32>
    %430 = vector.extract_strided_slice %429 {offsets = [0, 0, 0], sizes = [2, 1, 128], strides = [1, 1, 1]} : vector<2x11x128xf32> to vector<2x1x128xf32>
    %431 = vector.extract_strided_slice %429 {offsets = [0, 2, 0], sizes = [2, 1, 128], strides = [1, 1, 1]} : vector<2x11x128xf32> to vector<2x1x128xf32>
    %432 = vector.extract_strided_slice %429 {offsets = [0, 4, 0], sizes = [2, 1, 128], strides = [1, 1, 1]} : vector<2x11x128xf32> to vector<2x1x128xf32>
    %433 = vector.extract_strided_slice %429 {offsets = [0, 6, 0], sizes = [2, 1, 128], strides = [1, 1, 1]} : vector<2x11x128xf32> to vector<2x1x128xf32>
    %434 = vector.extract_strided_slice %429 {offsets = [0, 8, 0], sizes = [2, 1, 128], strides = [1, 1, 1]} : vector<2x11x128xf32> to vector<2x1x128xf32>
    %435 = vector.extract_strided_slice %429 {offsets = [0, 10, 0], sizes = [2, 1, 128], strides = [1, 1, 1]} : vector<2x11x128xf32> to vector<2x1x128xf32>
    %436 = tpu.concatenate %430, %431, %432, %433, %434, %435 in 1 : vector<2x1x128xf32>, vector<2x1x128xf32>, vector<2x1x128xf32>, vector<2x1x128xf32>, vector<2x1x128xf32>, vector<2x1x128xf32> -> vector<2x6x128xf32>
    %437 = vector.extract_strided_slice %436 {offsets = [0, 0, 0], sizes = [2, 6, 32], strides = [1, 1, 1]} : vector<2x6x128xf32> to vector<2x6x32xf32>
    %438 = tpu.concatenate %437, %437, %437, %437 in 2 : vector<2x6x32xf32>, vector<2x6x32xf32>, vector<2x6x32xf32>, vector<2x6x32xf32> -> vector<2x6x128xf32>
    %c0_159 = arith.constant 0 : index
    %c0_160 = arith.constant 0 : index
    %439 = vector.load %arg8[%c0_159, %c0_160] : memref<20x128xf32, #tpu.memory_space<vmem>>, vector<1x128xf32>
    %440 = vector.extract_strided_slice %438 {offsets = [0, 0, 0], sizes = [2, 2, 128], strides = [1, 1, 1]} : vector<2x6x128xf32> to vector<2x2x128xf32>
    %441 = vector.shape_cast %439 : vector<1x128xf32> to vector<1x1x128xf32>
    %442 = vector.broadcast %441 : vector<1x1x128xf32> to vector<2x2x128xf32>
    %443 = arith.mulf %442, %440 : vector<2x2x128xf32>
    %c1_161 = arith.constant 1 : index
    %c0_162 = arith.constant 0 : index
    %444 = vector.load %arg8[%c1_161, %c0_162] : memref<20x128xf32, #tpu.memory_space<vmem>>, vector<1x128xf32>
    %445 = vector.extract_strided_slice %438 {offsets = [0, 1, 0], sizes = [2, 2, 128], strides = [1, 1, 1]} : vector<2x6x128xf32> to vector<2x2x128xf32>
    %446 = vector.shape_cast %444 : vector<1x128xf32> to vector<1x1x128xf32>
    %447 = vector.broadcast %446 : vector<1x1x128xf32> to vector<2x2x128xf32>
    %448 = arith.mulf %447, %445 : vector<2x2x128xf32>
    %449 = arith.addf %443, %448 : vector<2x2x128xf32>
    %c2_163 = arith.constant 2 : index
    %c0_164 = arith.constant 0 : index
    %450 = vector.load %arg8[%c2_163, %c0_164] : memref<20x128xf32, #tpu.memory_space<vmem>>, vector<1x128xf32>
    %451 = vector.extract_strided_slice %438 {offsets = [0, 2, 0], sizes = [2, 2, 128], strides = [1, 1, 1]} : vector<2x6x128xf32> to vector<2x2x128xf32>
    %452 = vector.shape_cast %450 : vector<1x128xf32> to vector<1x1x128xf32>
    %453 = vector.broadcast %452 : vector<1x1x128xf32> to vector<2x2x128xf32>
    %454 = arith.mulf %453, %451 : vector<2x2x128xf32>
    %455 = arith.addf %449, %454 : vector<2x2x128xf32>
    %c3_165 = arith.constant 3 : index
    %c0_166 = arith.constant 0 : index
    %456 = vector.load %arg8[%c3_165, %c0_166] : memref<20x128xf32, #tpu.memory_space<vmem>>, vector<1x128xf32>
    %457 = vector.extract_strided_slice %438 {offsets = [0, 3, 0], sizes = [2, 2, 128], strides = [1, 1, 1]} : vector<2x6x128xf32> to vector<2x2x128xf32>
    %458 = vector.shape_cast %456 : vector<1x128xf32> to vector<1x1x128xf32>
    %459 = vector.broadcast %458 : vector<1x1x128xf32> to vector<2x2x128xf32>
    %460 = arith.mulf %459, %457 : vector<2x2x128xf32>
    %461 = arith.addf %455, %460 : vector<2x2x128xf32>
    %c4_167 = arith.constant 4 : index
    %c0_168 = arith.constant 0 : index
    %462 = vector.load %arg8[%c4_167, %c0_168] : memref<20x128xf32, #tpu.memory_space<vmem>>, vector<1x128xf32>
    %463 = vector.extract_strided_slice %438 {offsets = [0, 4, 0], sizes = [2, 2, 128], strides = [1, 1, 1]} : vector<2x6x128xf32> to vector<2x2x128xf32>
    %464 = vector.shape_cast %462 : vector<1x128xf32> to vector<1x1x128xf32>
    %465 = vector.broadcast %464 : vector<1x1x128xf32> to vector<2x2x128xf32>
    %466 = arith.mulf %465, %463 : vector<2x2x128xf32>
    %467 = arith.addf %461, %466 : vector<2x2x128xf32>
    %468 = vector.extract_strided_slice %436 {offsets = [0, 0, 32], sizes = [2, 6, 32], strides = [1, 1, 1]} : vector<2x6x128xf32> to vector<2x6x32xf32>
    %469 = tpu.concatenate %468, %468, %468, %468 in 2 : vector<2x6x32xf32>, vector<2x6x32xf32>, vector<2x6x32xf32>, vector<2x6x32xf32> -> vector<2x6x128xf32>
    %c5_169 = arith.constant 5 : index
    %c0_170 = arith.constant 0 : index
    %470 = vector.load %arg8[%c5_169, %c0_170] : memref<20x128xf32, #tpu.memory_space<vmem>>, vector<1x128xf32>
    %471 = vector.extract_strided_slice %469 {offsets = [0, 0, 0], sizes = [2, 2, 128], strides = [1, 1, 1]} : vector<2x6x128xf32> to vector<2x2x128xf32>
    %472 = vector.shape_cast %470 : vector<1x128xf32> to vector<1x1x128xf32>
    %473 = vector.broadcast %472 : vector<1x1x128xf32> to vector<2x2x128xf32>
    %474 = arith.mulf %473, %471 : vector<2x2x128xf32>
    %475 = arith.addf %467, %474 : vector<2x2x128xf32>
    %c6_171 = arith.constant 6 : index
    %c0_172 = arith.constant 0 : index
    %476 = vector.load %arg8[%c6_171, %c0_172] : memref<20x128xf32, #tpu.memory_space<vmem>>, vector<1x128xf32>
    %477 = vector.extract_strided_slice %469 {offsets = [0, 1, 0], sizes = [2, 2, 128], strides = [1, 1, 1]} : vector<2x6x128xf32> to vector<2x2x128xf32>
    %478 = vector.shape_cast %476 : vector<1x128xf32> to vector<1x1x128xf32>
    %479 = vector.broadcast %478 : vector<1x1x128xf32> to vector<2x2x128xf32>
    %480 = arith.mulf %479, %477 : vector<2x2x128xf32>
    %481 = arith.addf %475, %480 : vector<2x2x128xf32>
    %c7_173 = arith.constant 7 : index
    %c0_174 = arith.constant 0 : index
    %482 = vector.load %arg8[%c7_173, %c0_174] : memref<20x128xf32, #tpu.memory_space<vmem>>, vector<1x128xf32>
    %483 = vector.extract_strided_slice %469 {offsets = [0, 2, 0], sizes = [2, 2, 128], strides = [1, 1, 1]} : vector<2x6x128xf32> to vector<2x2x128xf32>
    %484 = vector.shape_cast %482 : vector<1x128xf32> to vector<1x1x128xf32>
    %485 = vector.broadcast %484 : vector<1x1x128xf32> to vector<2x2x128xf32>
    %486 = arith.mulf %485, %483 : vector<2x2x128xf32>
    %487 = arith.addf %481, %486 : vector<2x2x128xf32>
    %c8_175 = arith.constant 8 : index
    %c0_176 = arith.constant 0 : index
    %488 = vector.load %arg8[%c8_175, %c0_176] : memref<20x128xf32, #tpu.memory_space<vmem>>, vector<1x128xf32>
    %489 = vector.extract_strided_slice %469 {offsets = [0, 3, 0], sizes = [2, 2, 128], strides = [1, 1, 1]} : vector<2x6x128xf32> to vector<2x2x128xf32>
    %490 = vector.shape_cast %488 : vector<1x128xf32> to vector<1x1x128xf32>
    %491 = vector.broadcast %490 : vector<1x1x128xf32> to vector<2x2x128xf32>
    %492 = arith.mulf %491, %489 : vector<2x2x128xf32>
    %493 = arith.addf %487, %492 : vector<2x2x128xf32>
    %c9_177 = arith.constant 9 : index
    %c0_178 = arith.constant 0 : index
    %494 = vector.load %arg8[%c9_177, %c0_178] : memref<20x128xf32, #tpu.memory_space<vmem>>, vector<1x128xf32>
    %495 = vector.extract_strided_slice %469 {offsets = [0, 4, 0], sizes = [2, 2, 128], strides = [1, 1, 1]} : vector<2x6x128xf32> to vector<2x2x128xf32>
    %496 = vector.shape_cast %494 : vector<1x128xf32> to vector<1x1x128xf32>
    %497 = vector.broadcast %496 : vector<1x1x128xf32> to vector<2x2x128xf32>
    %498 = arith.mulf %497, %495 : vector<2x2x128xf32>
    %499 = arith.addf %493, %498 : vector<2x2x128xf32>
    %500 = vector.extract_strided_slice %436 {offsets = [0, 0, 64], sizes = [2, 6, 32], strides = [1, 1, 1]} : vector<2x6x128xf32> to vector<2x6x32xf32>
    %501 = tpu.concatenate %500, %500, %500, %500 in 2 : vector<2x6x32xf32>, vector<2x6x32xf32>, vector<2x6x32xf32>, vector<2x6x32xf32> -> vector<2x6x128xf32>
    %c10_179 = arith.constant 10 : index
    %c0_180 = arith.constant 0 : index
    %502 = vector.load %arg8[%c10_179, %c0_180] : memref<20x128xf32, #tpu.memory_space<vmem>>, vector<1x128xf32>
    %503 = vector.extract_strided_slice %501 {offsets = [0, 0, 0], sizes = [2, 2, 128], strides = [1, 1, 1]} : vector<2x6x128xf32> to vector<2x2x128xf32>
    %504 = vector.shape_cast %502 : vector<1x128xf32> to vector<1x1x128xf32>
    %505 = vector.broadcast %504 : vector<1x1x128xf32> to vector<2x2x128xf32>
    %506 = arith.mulf %505, %503 : vector<2x2x128xf32>
    %507 = arith.addf %499, %506 : vector<2x2x128xf32>
    %c11_181 = arith.constant 11 : index
    %c0_182 = arith.constant 0 : index
    %508 = vector.load %arg8[%c11_181, %c0_182] : memref<20x128xf32, #tpu.memory_space<vmem>>, vector<1x128xf32>
    %509 = vector.extract_strided_slice %501 {offsets = [0, 1, 0], sizes = [2, 2, 128], strides = [1, 1, 1]} : vector<2x6x128xf32> to vector<2x2x128xf32>
    %510 = vector.shape_cast %508 : vector<1x128xf32> to vector<1x1x128xf32>
    %511 = vector.broadcast %510 : vector<1x1x128xf32> to vector<2x2x128xf32>
    %512 = arith.mulf %511, %509 : vector<2x2x128xf32>
    %513 = arith.addf %507, %512 : vector<2x2x128xf32>
    %c12_183 = arith.constant 12 : index
    %c0_184 = arith.constant 0 : index
    %514 = vector.load %arg8[%c12_183, %c0_184] : memref<20x128xf32, #tpu.memory_space<vmem>>, vector<1x128xf32>
    %515 = vector.extract_strided_slice %501 {offsets = [0, 2, 0], sizes = [2, 2, 128], strides = [1, 1, 1]} : vector<2x6x128xf32> to vector<2x2x128xf32>
    %516 = vector.shape_cast %514 : vector<1x128xf32> to vector<1x1x128xf32>
    %517 = vector.broadcast %516 : vector<1x1x128xf32> to vector<2x2x128xf32>
    %518 = arith.mulf %517, %515 : vector<2x2x128xf32>
    %519 = arith.addf %513, %518 : vector<2x2x128xf32>
    %c13_185 = arith.constant 13 : index
    %c0_186 = arith.constant 0 : index
    %520 = vector.load %arg8[%c13_185, %c0_186] : memref<20x128xf32, #tpu.memory_space<vmem>>, vector<1x128xf32>
    %521 = vector.extract_strided_slice %501 {offsets = [0, 3, 0], sizes = [2, 2, 128], strides = [1, 1, 1]} : vector<2x6x128xf32> to vector<2x2x128xf32>
    %522 = vector.shape_cast %520 : vector<1x128xf32> to vector<1x1x128xf32>
    %523 = vector.broadcast %522 : vector<1x1x128xf32> to vector<2x2x128xf32>
    %524 = arith.mulf %523, %521 : vector<2x2x128xf32>
    %525 = arith.addf %519, %524 : vector<2x2x128xf32>
    %c14_187 = arith.constant 14 : index
    %c0_188 = arith.constant 0 : index
    %526 = vector.load %arg8[%c14_187, %c0_188] : memref<20x128xf32, #tpu.memory_space<vmem>>, vector<1x128xf32>
    %527 = vector.extract_strided_slice %501 {offsets = [0, 4, 0], sizes = [2, 2, 128], strides = [1, 1, 1]} : vector<2x6x128xf32> to vector<2x2x128xf32>
    %528 = vector.shape_cast %526 : vector<1x128xf32> to vector<1x1x128xf32>
    %529 = vector.broadcast %528 : vector<1x1x128xf32> to vector<2x2x128xf32>
    %530 = arith.mulf %529, %527 : vector<2x2x128xf32>
    %531 = arith.addf %525, %530 : vector<2x2x128xf32>
    %532 = vector.extract_strided_slice %436 {offsets = [0, 0, 96], sizes = [2, 6, 32], strides = [1, 1, 1]} : vector<2x6x128xf32> to vector<2x6x32xf32>
    %533 = tpu.concatenate %532, %532, %532, %532 in 2 : vector<2x6x32xf32>, vector<2x6x32xf32>, vector<2x6x32xf32>, vector<2x6x32xf32> -> vector<2x6x128xf32>
    %c15_189 = arith.constant 15 : index
    %c0_190 = arith.constant 0 : index
    %534 = vector.load %arg8[%c15_189, %c0_190] : memref<20x128xf32, #tpu.memory_space<vmem>>, vector<1x128xf32>
    %535 = vector.extract_strided_slice %533 {offsets = [0, 0, 0], sizes = [2, 2, 128], strides = [1, 1, 1]} : vector<2x6x128xf32> to vector<2x2x128xf32>
    %536 = vector.shape_cast %534 : vector<1x128xf32> to vector<1x1x128xf32>
    %537 = vector.broadcast %536 : vector<1x1x128xf32> to vector<2x2x128xf32>
    %538 = arith.mulf %537, %535 : vector<2x2x128xf32>
    %539 = arith.addf %531, %538 : vector<2x2x128xf32>
    %c16_191 = arith.constant 16 : index
    %c0_192 = arith.constant 0 : index
    %540 = vector.load %arg8[%c16_191, %c0_192] : memref<20x128xf32, #tpu.memory_space<vmem>>, vector<1x128xf32>
    %541 = vector.extract_strided_slice %533 {offsets = [0, 1, 0], sizes = [2, 2, 128], strides = [1, 1, 1]} : vector<2x6x128xf32> to vector<2x2x128xf32>
    %542 = vector.shape_cast %540 : vector<1x128xf32> to vector<1x1x128xf32>
    %543 = vector.broadcast %542 : vector<1x1x128xf32> to vector<2x2x128xf32>
    %544 = arith.mulf %543, %541 : vector<2x2x128xf32>
    %545 = arith.addf %539, %544 : vector<2x2x128xf32>
    %c17_193 = arith.constant 17 : index
    %c0_194 = arith.constant 0 : index
    %546 = vector.load %arg8[%c17_193, %c0_194] : memref<20x128xf32, #tpu.memory_space<vmem>>, vector<1x128xf32>
    %547 = vector.extract_strided_slice %533 {offsets = [0, 2, 0], sizes = [2, 2, 128], strides = [1, 1, 1]} : vector<2x6x128xf32> to vector<2x2x128xf32>
    %548 = vector.shape_cast %546 : vector<1x128xf32> to vector<1x1x128xf32>
    %549 = vector.broadcast %548 : vector<1x1x128xf32> to vector<2x2x128xf32>
    %550 = arith.mulf %549, %547 : vector<2x2x128xf32>
    %551 = arith.addf %545, %550 : vector<2x2x128xf32>
    %c18_195 = arith.constant 18 : index
    %c0_196 = arith.constant 0 : index
    %552 = vector.load %arg8[%c18_195, %c0_196] : memref<20x128xf32, #tpu.memory_space<vmem>>, vector<1x128xf32>
    %553 = vector.extract_strided_slice %533 {offsets = [0, 3, 0], sizes = [2, 2, 128], strides = [1, 1, 1]} : vector<2x6x128xf32> to vector<2x2x128xf32>
    %554 = vector.shape_cast %552 : vector<1x128xf32> to vector<1x1x128xf32>
    %555 = vector.broadcast %554 : vector<1x1x128xf32> to vector<2x2x128xf32>
    %556 = arith.mulf %555, %553 : vector<2x2x128xf32>
    %557 = arith.addf %551, %556 : vector<2x2x128xf32>
    %c19_197 = arith.constant 19 : index
    %c0_198 = arith.constant 0 : index
    %558 = vector.load %arg8[%c19_197, %c0_198] : memref<20x128xf32, #tpu.memory_space<vmem>>, vector<1x128xf32>
    %559 = vector.extract_strided_slice %533 {offsets = [0, 4, 0], sizes = [2, 2, 128], strides = [1, 1, 1]} : vector<2x6x128xf32> to vector<2x2x128xf32>
    %560 = vector.shape_cast %558 : vector<1x128xf32> to vector<1x1x128xf32>
    %561 = vector.broadcast %560 : vector<1x1x128xf32> to vector<2x2x128xf32>
    %562 = arith.mulf %561, %559 : vector<2x2x128xf32>
    %563 = arith.addf %557, %562 : vector<2x2x128xf32>
    %cst_199 = arith.constant dense<0.000000e+00> : vector<2x128xf32>
    %564 = vector.multi_reduction <add>, %563, %cst_199 [1] : vector<2x2x128xf32> to vector<2x128xf32>
    %565 = vector.shape_cast %564 : vector<2x128xf32> to vector<2x1x128xf32>
    %cst_200 = arith.constant dense<0.000000e+00> : vector<1x128xf32>
    %566 = vector.multi_reduction <add>, %565, %cst_200 [0] : vector<2x1x128xf32> to vector<1x128xf32>
    %567 = vector.shape_cast %566 : vector<1x128xf32> to vector<1x1x128xf32>
    %568 = vector.shape_cast %567 : vector<1x1x128xf32> to vector<1x128xf32>
    %569 = arith.mulf %563, %563 : vector<2x2x128xf32>
    %cst_201 = arith.constant dense<0.000000e+00> : vector<2x128xf32>
    %570 = vector.multi_reduction <add>, %569, %cst_201 [1] : vector<2x2x128xf32> to vector<2x128xf32>
    %571 = vector.shape_cast %570 : vector<2x128xf32> to vector<2x1x128xf32>
    %cst_202 = arith.constant dense<0.000000e+00> : vector<1x128xf32>
    %572 = vector.multi_reduction <add>, %571, %cst_202 [0] : vector<2x1x128xf32> to vector<1x128xf32>
    %573 = vector.shape_cast %572 : vector<1x128xf32> to vector<1x1x128xf32>
    %574 = vector.shape_cast %573 : vector<1x1x128xf32> to vector<1x128xf32>
    %cst_203 = arith.constant dense<0.000000e+00> : vector<1x4xf32>
    %575 = tpu.matmul %568, %253, %cst_203 {dimension_numbers = #tpu.dot_dimension_numbers<[1], [0], [0], [1], [0, 0, 1, 1], [], []>} : vector<1x128xf32>, vector<128x4xf32>, vector<1x4xf32> -> vector<1x4xf32>
    %cst_204 = arith.constant dense<0.000000e+00> : vector<1x4xf32>
    %576 = tpu.matmul %574, %253, %cst_204 {dimension_numbers = #tpu.dot_dimension_numbers<[1], [0], [0], [1], [0, 0, 1, 1], [], []>} : vector<1x128xf32>, vector<128x4xf32>, vector<1x4xf32> -> vector<1x4xf32>
    %cst_205 = arith.constant 7.812500e-03 : f32
    %577 = vector.broadcast %cst_205 : f32 to vector<1x4xf32>
    %578 = arith.mulf %575, %577 : vector<1x4xf32>
    %cst_206 = arith.constant 7.812500e-03 : f32
    %579 = vector.broadcast %cst_206 : f32 to vector<1x4xf32>
    %580 = arith.mulf %576, %579 : vector<1x4xf32>
    %581 = arith.mulf %578, %578 : vector<1x4xf32>
    %582 = arith.subf %580, %581 : vector<1x4xf32>
    %cst_207 = arith.constant 0.000000e+00 : f32
    %583 = vector.broadcast %cst_207 : f32 to vector<1x4xf32>
    %584 = arith.maximumf %582, %583 : vector<1x4xf32>
    %cst_208 = arith.constant 9.99999974E-6 : f32
    %585 = vector.broadcast %cst_208 : f32 to vector<1x4xf32>
    %586 = arith.addf %584, %585 : vector<1x4xf32>
    %587 = math.rsqrt %586 : vector<1x4xf32>
    %588 = arith.mulf %257, %587 : vector<1x4xf32>
    %589 = arith.mulf %588, %578 : vector<1x4xf32>
    %590 = arith.subf %258, %589 : vector<1x4xf32>
    %cst_209 = arith.constant dense<0.000000e+00> : vector<1x128xf32>
    %591 = tpu.matmul %588, %254, %cst_209 {dimension_numbers = #tpu.dot_dimension_numbers<[1], [0], [0], [1], [0, 0, 1, 1], [], []>} : vector<1x4xf32>, vector<4x128xf32>, vector<1x128xf32> -> vector<1x128xf32>
    %cst_210 = arith.constant dense<0.000000e+00> : vector<1x128xf32>
    %592 = tpu.matmul %590, %254, %cst_210 {dimension_numbers = #tpu.dot_dimension_numbers<[1], [0], [0], [1], [0, 0, 1, 1], [], []>} : vector<1x4xf32>, vector<4x128xf32>, vector<1x128xf32> -> vector<1x128xf32>
    %593 = vector.shape_cast %591 : vector<1x128xf32> to vector<1x1x128xf32>
    %594 = vector.broadcast %593 : vector<1x1x128xf32> to vector<2x2x128xf32>
    %595 = arith.mulf %563, %594 : vector<2x2x128xf32>
    %596 = vector.shape_cast %592 : vector<1x128xf32> to vector<1x1x128xf32>
    %597 = vector.broadcast %596 : vector<1x1x128xf32> to vector<2x2x128xf32>
    %598 = arith.addf %595, %597 : vector<2x2x128xf32>
    %cst_211 = arith.constant 0.000000e+00 : f32
    %599 = vector.broadcast %cst_211 : f32 to vector<2x2x128xf32>
    %600 = arith.maximumf %598, %599 : vector<2x2x128xf32>
    %cst_212 = arith.constant dense<0xFF800000> : vector<2x128xf32>
    %601 = vector.multi_reduction <maximumf>, %600, %cst_212 [1] : vector<2x2x128xf32> to vector<2x128xf32>
    %602 = vector.extract_strided_slice %601 {offsets = [0, 0], sizes = [2, 32], strides = [1, 1]} : vector<2x128xf32> to vector<2x32xf32>
    %603 = vector.extract_strided_slice %601 {offsets = [0, 32], sizes = [2, 32], strides = [1, 1]} : vector<2x128xf32> to vector<2x32xf32>
    %604 = arith.addf %602, %603 : vector<2x32xf32>
    %605 = vector.extract_strided_slice %601 {offsets = [0, 64], sizes = [2, 32], strides = [1, 1]} : vector<2x128xf32> to vector<2x32xf32>
    %606 = arith.addf %604, %605 : vector<2x32xf32>
    %607 = vector.extract_strided_slice %601 {offsets = [0, 96], sizes = [2, 32], strides = [1, 1]} : vector<2x128xf32> to vector<2x32xf32>
    %608 = arith.addf %606, %607 : vector<2x32xf32>
    %cst_213 = arith.constant 2.500000e-01 : f32
    %609 = vector.broadcast %cst_213 : f32 to vector<2x32xf32>
    %610 = arith.mulf %608, %609 : vector<2x32xf32>
    %611 = arith.mulf %252, %610 : vector<2x32xf32>
    %c0_214 = arith.constant 0 : index
    %c0_215 = arith.constant 0 : index
    %612 = vector.load %arg12[%c0_214, %c0_215] : memref<32x32xf32, #tpu.memory_space<vmem>>, vector<32x32xf32>
    %cst_216 = arith.constant dense<0.000000e+00> : vector<2x32xf32>
    %613 = tpu.matmul %611, %612, %cst_216 {dimension_numbers = #tpu.dot_dimension_numbers<[1], [0], [0], [1], [0, 0, 1, 1], [], []>} : vector<2x32xf32>, vector<32x32xf32>, vector<2x32xf32> -> vector<2x32xf32>
    %c0_217 = arith.constant 0 : index
    %c0_218 = arith.constant 0 : index
    %614 = vector.load %arg13[%c0_217, %c0_218] : memref<1x32xf32, #tpu.memory_space<vmem>>, vector<1x32xf32>
    %615 = vector.broadcast %614 : vector<1x32xf32> to vector<2x32xf32>
    %616 = arith.addf %613, %615 : vector<2x32xf32>
    %cst_219 = arith.constant 0.000000e+00 : f32
    %617 = vector.broadcast %cst_219 : f32 to vector<2x32xf32>
    %618 = arith.maximumf %616, %617 : vector<2x32xf32>
    %c0_220 = arith.constant 0 : index
    %c0_221 = arith.constant 0 : index
    %619 = vector.load %arg14[%c0_220, %c0_221] : memref<1x32xf32, #tpu.memory_space<vmem>>, vector<1x32xf32>
    %620 = vector.broadcast %619 : vector<1x32xf32> to vector<2x32xf32>
    %621 = arith.mulf %618, %620 : vector<2x32xf32>
    %cst_222 = arith.constant dense<0.000000e+00> : vector<2xf32>
    %622 = vector.multi_reduction <add>, %621, %cst_222 [1] : vector<2x32xf32> to vector<2xf32>
    %623 = vector.shape_cast %622 : vector<2xf32> to vector<2x1xf32>
    %c0_223 = arith.constant 0 : index
    %624 = memref.load %arg15[%c0_223] : memref<1xf32, #tpu.memory_space<smem>>
    %625 = vector.broadcast %624 : f32 to vector<2x1xf32>
    %626 = arith.addf %623, %625 : vector<2x1xf32>
    %cst_224 = arith.constant 0.000000e+00 : f32
    %627 = vector.broadcast %cst_224 : f32 to vector<2x63xf32>
    %628 = tpu.concatenate %252, %610, %626, %627 in 1 : vector<2x32xf32>, vector<2x32xf32>, vector<2x1xf32>, vector<2x63xf32> -> vector<2x128xf32>
    %c0_225 = arith.constant 0 : index
    %c0_226 = arith.constant 0 : index
    %629 = vector.load %arg16[%c0_225, %c0_226] : memref<2x128xf32, #tpu.memory_space<vmem>>, vector<2x128xf32>
    tpu.vector_store %arg16[%c0_225, %c0_226], %628 {strides = array<i32>} : memref<2x128xf32, #tpu.memory_space<vmem>>, vector<2x128xf32>,
    return
  }
}

</mosaic_0001>

<llo_original>
// kernel: tpu_custom_call.1
$region0: #{tpu_custom_call.1}
  #allocation0 [shape = 'u32[]', space=smem, size = 0x4, offset = 0x4, fixed_abs, tag = 'smem constant byte address 0x4 - core index']
  #allocation1 [shape = 'u32[144,128]{1,0:T(1,128)}', space=vmem, size = 0x12000, scoped, tag = 'internal scratch']
  #allocation2 [shape = 'f32[1]{0:T(128)S(6)}', space=smem, size = 0x200, scoped, tag = 'scoped memory for tpu_custom_call.1']
  %s0 = inlined_call_operand.vmem [shape: f32[2,3,16,32], index: 0, kind: input, shape index: {}]
  %s1 = inlined_call_operand.hbm [shape: f32[15,96], index: 1, kind: input, shape index: {}]
  %s2 = inlined_call_operand.hbm [shape: f32[9,96], index: 2, kind: input, shape index: {}]
  %s3 = inlined_call_operand.hbm [shape: f32[4,3], index: 3, kind: input, shape index: {}]
  %s4 = inlined_call_operand.vmem [shape: f32[96,3], index: 4, kind: input, shape index: {}]
  %s5 = inlined_call_operand.hbm [shape: f32[3,96], index: 5, kind: input, shape index: {}]
  %s6 = inlined_call_operand.vmem [shape: f32[2,4,16,32], index: 6, kind: input, shape index: {}]
  %s7 = inlined_call_operand.hbm [shape: f32[20,128], index: 7, kind: input, shape index: {}]
  %s8 = inlined_call_operand.hbm [shape: f32[20,128], index: 8, kind: input, shape index: {}]
  %s9 = inlined_call_operand.vmem [shape: f32[4,4], index: 9, kind: input, shape index: {}]
  %s10 = inlined_call_operand.vmem [shape: f32[128,4], index: 10, kind: input, shape index: {}]
  %s11 = inlined_call_operand.vmem [shape: f32[4,128], index: 11, kind: input, shape index: {}]
  %s12 = inlined_call_operand.vmem [shape: f32[32,32], index: 12, kind: input, shape index: {}]
  %s13 = inlined_call_operand.vmem [shape: f32[1,32], index: 13, kind: input, shape index: {}]
  %s14 = inlined_call_operand.vmem [shape: f32[1,32], index: 14, kind: input, shape index: {}]
  %s15 = inlined_call_operand.<no memory space> [shape: f32[1], index: 15, kind: input, shape index: {}]
  %s16 = inlined_call_operand.hbm [shape: f32[2,128], index: 16, kind: output, shape index: {}]
  %s17 = sld [smem:[#allocation0]]
  $region98: #{tpu_custom_call.1} parent=0
    _
  %s19 = ssub.s32 1, %s17
  %s20 = scalar_select 0, %s19, %s17
  %21 = sst [smem:[#allocation2]] %s15
  $region1: #{tpu_custom_call.1} parent=0
    #allocation3 [shape = 'u8[8192]{0}', space=vmem, size = 0x2000, scoped, tag = 'input window, operand 1, single buffered']
    #allocation4 [shape = 's32[1]{0}', space=sflag, size = 0x4, scoped, tag = 'scoped memory for tpu_custom_call.1']
    #allocation5 [shape = 's32[1]{0}', space=sflag, size = 0x4, scoped, tag = 'scoped memory for tpu_custom_call.1']
    #allocation6 [shape = 'u8[8192]{0}', space=vmem, size = 0x2000, scoped, tag = 'input window, operand 2, single buffered']
    #allocation7 [shape = 's32[1]{0}', space=sflag, size = 0x4, scoped, tag = 'scoped memory for tpu_custom_call.1']
    #allocation8 [shape = 'u8[2048]{0}', space=vmem, size = 0x800, scoped, tag = 'input window, operand 3, single buffered']
    #allocation9 [shape = 'u8[2048]{0}', space=vmem, size = 0x800, scoped, tag = 'input window, operand 5, single buffered']
    #allocation10 [shape = 's32[1]{0}', space=sflag, size = 0x4, scoped, tag = 'scoped memory for tpu_custom_call.1']
    #allocation11 [shape = 'u8[12288]{0}', space=vmem, size = 0x3000, scoped, tag = 'input window, operand 7, single buffered']
    #allocation12 [shape = 'u8[12288]{0}', space=vmem, size = 0x3000, scoped, tag = 'input window, operand 8, single buffered']
    #allocation13 [shape = 's32[1]{0}', space=sflag, size = 0x4, scoped, tag = 'scoped memory for tpu_custom_call.1']
    #allocation14 [shape = 'u8[1024]{0}', space=vmem, size = 0x400, scoped, tag = 'output window, operand 0, single buffered']
    %22 = vsyncpa [#allocation4], 0
    %23 = vsyncpa [#allocation7], 0
    %24 = vsyncpa [#allocation10], 0
    %25 = vsyncpa [#allocation13], 0
    %26 = vsyncpa [#allocation5], 0
    // Predicated region
    $region2: #{tpu_custom_call.1} parent=1 // pred_check
      _
    $region3: #{tpu_custom_call.1} parent=1 // pred_check_branch
      %28 = sbr.rel (0) target = $region5
    $region4: #{tpu_custom_call.1} parent=1 // pred_region
      _
    $region5: #{tpu_custom_call.1} parent=1 // pred_fallthru
      _
    // Predicated region
    $region6: #{tpu_custom_call.1} parent=1 // pred_check
      _
    $region7: #{tpu_custom_call.1} parent=1 // pred_check_branch
      %30 = sbr.rel (0) target = $region9
    $region8: #{tpu_custom_call.1} parent=1 // pred_region
      %s32 = ssub.s32 256, 256
      %33 = vsyncadd [#allocation4], %s32
      %s34 = sshll.u32 [#allocation3], 4
      %s35 = int_to_ptr.vmem [resolvable:$true] %s34
      %40 = dma.hbm_to_vmem [thread:$0]  %s1, 256, %s35, [#allocation4], 128, 128, 8
    $region9: #{tpu_custom_call.1} parent=1 // pred_fallthru
      _
    // Predicated region
    $region10: #{tpu_custom_call.1} parent=1 // pred_check
      _
    $region11: #{tpu_custom_call.1} parent=1 // pred_check_branch
      %42 = sbr.rel (0) target = $region13
    $region12: #{tpu_custom_call.1} parent=1 // pred_region
      %s44 = ssub.s32 256, 256
      %45 = vsyncadd [#allocation7], %s44
      %s46 = sshll.u32 [#allocation6], 4
      %s47 = int_to_ptr.vmem [resolvable:$true] %s46
      %52 = dma.hbm_to_vmem [thread:$0]  %s2, 256, %s47, [#allocation7], 128, 128, 8
    $region13: #{tpu_custom_call.1} parent=1 // pred_fallthru
      _
    // Predicated region
    $region14: #{tpu_custom_call.1} parent=1 // pred_check
      _
    $region15: #{tpu_custom_call.1} parent=1 // pred_check_branch
      %54 = sbr.rel (0) target = $region17
    $region16: #{tpu_custom_call.1} parent=1 // pred_region
      %s56 = ssub.s32 64, 64
      %57 = vsyncadd [#allocation7], %s56
      %s59 = sshll.u32 [#allocation8], 4
      %s60 = int_to_ptr.vmem [resolvable:$true] %s59
      %62 = dma.hbm_to_vmem [thread:$0]  %s3, 64, %s60, [#allocation7]
    $region17: #{tpu_custom_call.1} parent=1 // pred_fallthru
      _
    // Predicated region
    $region18: #{tpu_custom_call.1} parent=1 // pred_check
      _
    $region19: #{tpu_custom_call.1} parent=1 // pred_check_branch
      %64 = sbr.rel (0) target = $region21
    $region20: #{tpu_custom_call.1} parent=1 // pred_region
      _
    $region21: #{tpu_custom_call.1} parent=1 // pred_fallthru
      _
    // Predicated region
    $region22: #{tpu_custom_call.1} parent=1 // pred_check
      _
    $region23: #{tpu_custom_call.1} parent=1 // pred_check_branch
      %66 = sbr.rel (0) target = $region25
    $region24: #{tpu_custom_call.1} parent=1 // pred_region
      %s68 = ssub.s32 64, 64
      %69 = vsyncadd [#allocation10], %s68
      %s71 = sshll.u32 [#allocation9], 4
      %s72 = int_to_ptr.vmem [resolvable:$true] %s71
      %74 = dma.hbm_to_vmem [thread:$0]  %s5, 64, %s72, [#allocation10]
    $region25: #{tpu_custom_call.1} parent=1 // pred_fallthru
      _
    // Predicated region
    $region26: #{tpu_custom_call.1} parent=1 // pred_check
      _
    $region27: #{tpu_custom_call.1} parent=1 // pred_check_branch
      %76 = sbr.rel (0) target = $region29
    $region28: #{tpu_custom_call.1} parent=1 // pred_region
      _
    $region29: #{tpu_custom_call.1} parent=1 // pred_fallthru
      _
    // Predicated region
    $region30: #{tpu_custom_call.1} parent=1 // pred_check
      _
    $region31: #{tpu_custom_call.1} parent=1 // pred_check_branch
      %78 = sbr.rel (0) target = $region33
    $region32: #{tpu_custom_call.1} parent=1 // pred_region
      %s80 = ssub.s32 384, 384
      %81 = vsyncadd [#allocation10], %s80
      %s82 = sshll.u32 [#allocation11], 4
      %s83 = int_to_ptr.vmem [resolvable:$true] %s82
      %88 = dma.hbm_to_vmem [thread:$0]  %s7, 384, %s83, [#allocation10], 128, 128, 8
    $region33: #{tpu_custom_call.1} parent=1 // pred_fallthru
      _
    // Predicated region
    $region34: #{tpu_custom_call.1} parent=1 // pred_check
      _
    $region35: #{tpu_custom_call.1} parent=1 // pred_check_branch
      %90 = sbr.rel (0) target = $region37
    $region36: #{tpu_custom_call.1} parent=1 // pred_region
      %s92 = ssub.s32 384, 384
      %93 = vsyncadd [#allocation13], %s92
      %s94 = sshll.u32 [#allocation12], 4
      %s95 = int_to_ptr.vmem [resolvable:$true] %s94
      %100 = dma.hbm_to_vmem [thread:$0]  %s8, 384, %s95, [#allocation13], 128, 128, 8
    $region37: #{tpu_custom_call.1} parent=1 // pred_fallthru
      _
    // Predicated region
    $region38: #{tpu_custom_call.1} parent=1 // pred_check
      _
    $region39: #{tpu_custom_call.1} parent=1 // pred_check_branch
      %102 = sbr.rel (0) target = $region41
    $region40: #{tpu_custom_call.1} parent=1 // pred_region
      _
    $region41: #{tpu_custom_call.1} parent=1 // pred_fallthru
      _
    // Predicated region
    $region42: #{tpu_custom_call.1} parent=1 // pred_check
      _
    $region43: #{tpu_custom_call.1} parent=1 // pred_check_branch
      %104 = sbr.rel (0) target = $region45
    $region44: #{tpu_custom_call.1} parent=1 // pred_region
      _
    $region45: #{tpu_custom_call.1} parent=1 // pred_fallthru
      _
    // Predicated region
    $region46: #{tpu_custom_call.1} parent=1 // pred_check
      _
    $region47: #{tpu_custom_call.1} parent=1 // pred_check_branch
      %106 = sbr.rel (0) target = $region49
    $region48: #{tpu_custom_call.1} parent=1 // pred_region
      _
    $region49: #{tpu_custom_call.1} parent=1 // pred_fallthru
      _
    // Predicated region
    $region50: #{tpu_custom_call.1} parent=1 // pred_check
      _
    $region51: #{tpu_custom_call.1} parent=1 // pred_check_branch
      %108 = sbr.rel (0) target = $region53
    $region52: #{tpu_custom_call.1} parent=1 // pred_region
      _
    $region53: #{tpu_custom_call.1} parent=1 // pred_fallthru
      _
    // Predicated region
    $region54: #{tpu_custom_call.1} parent=1 // pred_check
      _
    $region55: #{tpu_custom_call.1} parent=1 // pred_check_branch
      %110 = sbr.rel (0) target = $region57
    $region56: #{tpu_custom_call.1} parent=1 // pred_region
      _
    $region57: #{tpu_custom_call.1} parent=1 // pred_fallthru
      _
    // Predicated region
    $region58: #{tpu_custom_call.1} parent=1 // pred_check
      _
    $region59: #{tpu_custom_call.1} parent=1 // pred_check_branch
      %112 = sbr.rel (0) target = $region61
    $region60: #{tpu_custom_call.1} parent=1 // pred_region
      _
    $region61: #{tpu_custom_call.1} parent=1 // pred_fallthru
      _
    // Predicated region
    $region62: #{tpu_custom_call.1} parent=1 // pred_check
      _
    $region63: #{tpu_custom_call.1} parent=1 // pred_check_branch
      %114 = sbr.rel (0) target = $region65
    $region64: #{tpu_custom_call.1} parent=1 // pred_region
      _
    $region65: #{tpu_custom_call.1} parent=1 // pred_fallthru
      _
    // Predicated region
    $region66: #{tpu_custom_call.1} parent=1 // pred_check
      _
    $region67: #{tpu_custom_call.1} parent=1 // pred_check_branch
      %116 = sbr.rel (0) target = $region69
    $region68: #{tpu_custom_call.1} parent=1 // pred_region
      %117 = dma.done [#allocation4], 256
    $region69: #{tpu_custom_call.1} parent=1 // pred_fallthru
      _
    // Predicated region
    $region70: #{tpu_custom_call.1} parent=1 // pred_check
      _
    $region71: #{tpu_custom_call.1} parent=1 // pred_check_branch
      %119 = sbr.rel (0) target = $region73
    $region72: #{tpu_custom_call.1} parent=1 // pred_region
      %120 = dma.done [#allocation7], 256
    $region73: #{tpu_custom_call.1} parent=1 // pred_fallthru
      _
    // Predicated region
    $region74: #{tpu_custom_call.1} parent=1 // pred_check
      _
    $region75: #{tpu_custom_call.1} parent=1 // pred_check_branch
      %122 = sbr.rel (0) target = $region77
    $region76: #{tpu_custom_call.1} parent=1 // pred_region
      %123 = dma.done [#allocation7], 64
    $region77: #{tpu_custom_call.1} parent=1 // pred_fallthru
      _
    // Predicated region
    $region78: #{tpu_custom_call.1} parent=1 // pred_check
      _
    $region79: #{tpu_custom_call.1} parent=1 // pred_check_branch
      %125 = sbr.rel (0) target = $region81
    $region80: #{tpu_custom_call.1} parent=1 // pred_region
      %126 = dma.done [#allocation10], 64
    $region81: #{tpu_custom_call.1} parent=1 // pred_fallthru
      _
    // Predicated region
    $region82: #{tpu_custom_call.1} parent=1 // pred_check
      _
    $region83: #{tpu_custom_call.1} parent=1 // pred_check_branch
      %128 = sbr.rel (0) target = $region85
    $region84: #{tpu_custom_call.1} parent=1 // pred_region
      %129 = dma.done [#allocation10], 384
    $region85: #{tpu_custom_call.1} parent=1 // pred_fallthru
      _
    // Predicated region
    $region86: #{tpu_custom_call.1} parent=1 // pred_check
      _
    $region87: #{tpu_custom_call.1} parent=1 // pred_check_branch
      %131 = sbr.rel (0) target = $region89
    $region88: #{tpu_custom_call.1} parent=1 // pred_region
      %132 = dma.done [#allocation13], 384
    $region89: #{tpu_custom_call.1} parent=1 // pred_fallthru
      _
    %v133 = vld [vmem:[%s4] sm:$0xff]
    %v134 = vld [vmem:[%s4 + $0x8] sm:$0xff]
    %v135 = vld [vmem:[%s4 + $0x10] sm:$0xff]
    %v136 = vld [vmem:[%s4 + $0x18] sm:$0xff]
    %v137 = vld [vmem:[%s4 + $0x20] sm:$0xff]
    %v138 = vld [vmem:[%s4 + $0x28] sm:$0xff]
    %v139 = vld [vmem:[%s4 + $0x30] sm:$0xff]
    %v140 = vld [vmem:[%s4 + $0x38] sm:$0xff]
    %v141 = vld [vmem:[%s4 + $0x40] sm:$0xff]
    %v142 = vld [vmem:[%s4 + $0x48] sm:$0xff]
    %v143 = vld [vmem:[%s4 + $0x50] sm:$0xff]
    %v144 = vld [vmem:[%s4 + $0x58] sm:$0xff]
    %v145 = vld [vmem:[#allocation9] sm:$0x7]
    %v146 = vld [vmem:[#allocation8] sm:$0x1]
    %v147 = vld [vmem:[#allocation8 + $0x1] sm:$0x1]
    %v148 = vld [vmem:[#allocation8 + $0x2] sm:$0x1]
    %v149 = vld [vmem:[#allocation8 + $0x3] sm:$0x1]
    %v150 = vld [vmem:[%s0] sm:$0xff]
    %v151 = vld [vmem:[%s0 + $0x8] sm:$0xff]
    %v152 = vld [vmem:[%s0 + $0x30] sm:$0xff]
    %v153 = vld [vmem:[%s0 + $0x38] sm:$0xff]
    %158 = vrot.lane.b32.xlu0 %v150, 32
    %v159 = vpop.permute.xlu0 %158
    %160 = vrot.lane.b32.xlu0 %v151, 32
    %v161 = vpop.permute.xlu0 %160
    %162 = vrot.lane.b32.xlu0 %v152, 32
    %v163 = vpop.permute.xlu0 %162
    %164 = vrot.lane.b32.xlu0 %v153, 32
    %v165 = vpop.permute.xlu0 %164
    %170 = vrot.lane.b32.xlu0 %v150, 64
    %v171 = vpop.permute.xlu0 %170
    %172 = vrot.lane.b32.xlu0 %v151, 64
    %v173 = vpop.permute.xlu0 %172
    %174 = vrot.lane.b32.xlu0 %v152, 64
    %v175 = vpop.permute.xlu0 %174
    %176 = vrot.lane.b32.xlu0 %v153, 64
    %v177 = vpop.permute.xlu0 %176
    %vm182 = vcmask 261120
    %v183 = vsel %vm182, %v150, %v159
    %v184 = vsel %vm182, %v151, %v161
    %v185 = vsel %vm182, %v152, %v163
    %v186 = vsel %vm182, %v153, %v165
    %vm187 = vcmask 523264
    %v188 = vsel %vm187, %v183, %v171
    %v189 = vsel %vm187, %v184, %v173
    %v190 = vsel %vm187, %v185, %v175
    %v191 = vsel %vm187, %v186, %v177
    %v192 = vld [vmem:[#allocation3] sm:$0x1]
    %v193 = vlaneseq
    %v194 = vshrl.u32 %v193, 7
    %v195 = vsub.s32 0, %v194
    %v196 = vrot.slane %v192, %v195
    %v197 = vmul.f32 %v196, %v188
    %v198 = vmul.f32 %v196, %v189
    %v199 = vmul.f32 %v196, %v190
    %v200 = vmul.f32 %v196, %v191
    %v201 = vld [vmem:[#allocation3 + $0x1] sm:$0x1]
    %v202 = vlaneseq
    %v203 = vshrl.u32 %v202, 7
    %v204 = vsub.s32 0, %v203
    %v205 = vrot.slane %v201, %v204
    %v206 = vmul.f32 %v205, %v188
    %v207 = vmul.f32 %v205, %v189
    %v208 = vmul.f32 %v205, %v190
    %v209 = vmul.f32 %v205, %v191
    %vm214 = vcmask 1046528
    %v215 = vrot.slane %v206, 1
    %v216 = vrot.slane %v207, 1
    %v217 = vsel %vm214, %v215, %v216
    %v218 = vrot.slane %v208, 1
    %v219 = vrot.slane %v209, 1
    %v220 = vsel %vm214, %v218, %v219
    %v225 = vadd.f32 %v197, %v217
    %v226 = vadd.f32 %v198, %v216
    %v227 = vadd.f32 %v199, %v220
    %v228 = vadd.f32 %v200, %v219
    %v229 = vld [vmem:[#allocation3 + $0x2] sm:$0x1]
    %v230 = vlaneseq
    %v231 = vshrl.u32 %v230, 7
    %v232 = vsub.s32 0, %v231
    %v233 = vrot.slane %v229, %v232
    %v234 = vmul.f32 %v233, %v188
    %v235 = vmul.f32 %v233, %v189
    %v236 = vmul.f32 %v233, %v190
    %v237 = vmul.f32 %v233, %v191
    %vm242 = vcmask 1045504
    %v243 = vrot.slane %v234, 2
    %v244 = vrot.slane %v235, 2
    %v245 = vsel %vm242, %v243, %v244
    %v246 = vrot.slane %v236, 2
    %v247 = vrot.slane %v237, 2
    %v248 = vsel %vm242, %v246, %v247
    %v253 = vadd.f32 %v225, %v245
    %v254 = vadd.f32 %v226, %v244
    %v255 = vadd.f32 %v227, %v248
    %v256 = vadd.f32 %v228, %v247
    %v257 = vld [vmem:[#allocation3 + $0x3] sm:$0x1]
    %v258 = vlaneseq
    %v259 = vshrl.u32 %v258, 7
    %v260 = vsub.s32 0, %v259
    %v261 = vrot.slane %v257, %v260
    %v262 = vmul.f32 %v261, %v188
    %v263 = vmul.f32 %v261, %v189
    %v264 = vmul.f32 %v261, %v190
    %v265 = vmul.f32 %v261, %v191
    %vm270 = vcmask 1044480
    %v271 = vrot.slane %v262, 3
    %v272 = vrot.slane %v263, 3
    %v273 = vsel %vm270, %v271, %v272
    %v274 = vrot.slane %v264, 3
    %v275 = vrot.slane %v265, 3
    %v276 = vsel %vm270, %v274, %v275
    %v281 = vadd.f32 %v253, %v273
    %v282 = vadd.f32 %v254, %v272
    %v283 = vadd.f32 %v255, %v276
    %v284 = vadd.f32 %v256, %v275
    %v285 = vld [vmem:[#allocation3 + $0x4] sm:$0x1]
    %v286 = vlaneseq
    %v287 = vshrl.u32 %v286, 7
    %v288 = vsub.s32 0, %v287
    %v289 = vrot.slane %v285, %v288
    %v290 = vmul.f32 %v289, %v188
    %v291 = vmul.f32 %v289, %v189
    %v292 = vmul.f32 %v289, %v190
    %v293 = vmul.f32 %v289, %v191
    %vm298 = vcmask 1043456
    %v299 = vrot.slane %v290, 4
    %v300 = vrot.slane %v291, 4
    %v301 = vsel %vm298, %v299, %v300
    %v302 = vrot.slane %v292, 4
    %v303 = vrot.slane %v293, 4
    %v304 = vsel %vm298, %v302, %v303
    %v309 = vadd.f32 %v281, %v301
    %v310 = vadd.f32 %v282, %v300
    %v311 = vadd.f32 %v283, %v304
    %v312 = vadd.f32 %v284, %v303
    %s313 = scalar_lea.vmem %s0, 16
    %v314 = vld [vmem:[%s313] sm:$0xff]
    %v315 = vld [vmem:[%s313 + $0x8] sm:$0xff]
    %v316 = vld [vmem:[%s313 + $0x30] sm:$0xff]
    %v317 = vld [vmem:[%s313 + $0x38] sm:$0xff]
    %322 = vrot.lane.b32.xlu0 %v314, 32
    %v323 = vpop.permute.xlu0 %322
    %324 = vrot.lane.b32.xlu0 %v315, 32
    %v325 = vpop.permute.xlu0 %324
    %326 = vrot.lane.b32.xlu0 %v316, 32
    %v327 = vpop.permute.xlu0 %326
    %328 = vrot.lane.b32.xlu0 %v317, 32
    %v329 = vpop.permute.xlu0 %328
    %334 = vrot.lane.b32.xlu0 %v314, 64
    %v335 = vpop.permute.xlu0 %334
    %336 = vrot.lane.b32.xlu0 %v315, 64
    %v337 = vpop.permute.xlu0 %336
    %338 = vrot.lane.b32.xlu0 %v316, 64
    %v339 = vpop.permute.xlu0 %338
    %340 = vrot.lane.b32.xlu0 %v317, 64
    %v341 = vpop.permute.xlu0 %340
    %v346 = vsel %vm182, %v314, %v323
    %v347 = vsel %vm182, %v315, %v325
    %v348 = vsel %vm182, %v316, %v327
    %v349 = vsel %vm182, %v317, %v329
    %v350 = vsel %vm187, %v346, %v335
    %v351 = vsel %vm187, %v347, %v337
    %v352 = vsel %vm187, %v348, %v339
    %v353 = vsel %vm187, %v349, %v341
    %v354 = vld [vmem:[#allocation3 + $0x5] sm:$0x1]
    %v355 = vlaneseq
    %v356 = vshrl.u32 %v355, 7
    %v357 = vsub.s32 0, %v356
    %v358 = vrot.slane %v354, %v357
    %v359 = vmul.f32 %v358, %v350
    %v360 = vmul.f32 %v358, %v351
    %v361 = vmul.f32 %v358, %v352
    %v362 = vmul.f32 %v358, %v353
    %v363 = vadd.f32 %v309, %v359
    %v364 = vadd.f32 %v310, %v360
    %v365 = vadd.f32 %v311, %v361
    %v366 = vadd.f32 %v312, %v362
    %v367 = vld [vmem:[#allocation3 + $0x6] sm:$0x1]
    %v368 = vlaneseq
    %v369 = vshrl.u32 %v368, 7
    %v370 = vsub.s32 0, %v369
    %v371 = vrot.slane %v367, %v370
    %v372 = vmul.f32 %v371, %v350
    %v373 = vmul.f32 %v371, %v351
    %v374 = vmul.f32 %v371, %v352
    %v375 = vmul.f32 %v371, %v353
    %v380 = vrot.slane %v372, 1
    %v381 = vrot.slane %v373, 1
    %v382 = vsel %vm214, %v380, %v381
    %v383 = vrot.slane %v374, 1
    %v384 = vrot.slane %v375, 1
    %v385 = vsel %vm214, %v383, %v384
    %v390 = vadd.f32 %v363, %v382
    %v391 = vadd.f32 %v364, %v381
    %v392 = vadd.f32 %v365, %v385
    %v393 = vadd.f32 %v366, %v384
    %v394 = vld [vmem:[#allocation3 + $0x7] sm:$0x1]
    %v395 = vlaneseq
    %v396 = vshrl.u32 %v395, 7
    %v397 = vsub.s32 0, %v396
    %v398 = vrot.slane %v394, %v397
    %v399 = vmul.f32 %v398, %v350
    %v400 = vmul.f32 %v398, %v351
    %v401 = vmul.f32 %v398, %v352
    %v402 = vmul.f32 %v398, %v353
    %v407 = vrot.slane %v399, 2
    %v408 = vrot.slane %v400, 2
    %v409 = vsel %vm242, %v407, %v408
    %v410 = vrot.slane %v401, 2
    %v411 = vrot.slane %v402, 2
    %v412 = vsel %vm242, %v410, %v411
    %v417 = vadd.f32 %v390, %v409
    %v418 = vadd.f32 %v391, %v408
    %v419 = vadd.f32 %v392, %v412
    %v420 = vadd.f32 %v393, %v411
    %v421 = vld [vmem:[#allocation3 + $0x8] sm:$0x1]
    %v422 = vlaneseq
    %v423 = vshrl.u32 %v422, 7
    %v424 = vsub.s32 0, %v423
    %v425 = vrot.slane %v421, %v424
    %v426 = vmul.f32 %v425, %v350
    %v427 = vmul.f32 %v425, %v351
    %v428 = vmul.f32 %v425, %v352
    %v429 = vmul.f32 %v425, %v353
    %v434 = vrot.slane %v426, 3
    %v435 = vrot.slane %v427, 3
    %v436 = vsel %vm270, %v434, %v435
    %v437 = vrot.slane %v428, 3
    %v438 = vrot.slane %v429, 3
    %v439 = vsel %vm270, %v437, %v438
    %v444 = vadd.f32 %v417, %v436
    %v445 = vadd.f32 %v418, %v435
    %v446 = vadd.f32 %v419, %v439
    %v447 = vadd.f32 %v420, %v438
    %v448 = vld [vmem:[#allocation3 + $0x9] sm:$0x1]
    %v449 = vlaneseq
    %v450 = vshrl.u32 %v449, 7
    %v451 = vsub.s32 0, %v450
    %v452 = vrot.slane %v448, %v451
    %v453 = vmul.f32 %v452, %v350
    %v454 = vmul.f32 %v452, %v351
    %v455 = vmul.f32 %v452, %v352
    %v456 = vmul.f32 %v452, %v353
    %v461 = vrot.slane %v453, 4
    %v462 = vrot.slane %v454, 4
    %v463 = vsel %vm298, %v461, %v462
    %v464 = vrot.slane %v455, 4
    %v465 = vrot.slane %v456, 4
    %v466 = vsel %vm298, %v464, %v465
    %v471 = vadd.f32 %v444, %v463
    %v472 = vadd.f32 %v445, %v462
    %v473 = vadd.f32 %v446, %v466
    %v474 = vadd.f32 %v447, %v465
    %s475 = scalar_lea.vmem %s0, 32
    %v476 = vld [vmem:[%s475] sm:$0xff]
    %v477 = vld [vmem:[%s475 + $0x8] sm:$0xff]
    %v478 = vld [vmem:[%s475 + $0x30] sm:$0xff]
    %v479 = vld [vmem:[%s475 + $0x38] sm:$0xff]
    %484 = vrot.lane.b32.xlu0 %v476, 32
    %v485 = vpop.permute.xlu0 %484
    %486 = vrot.lane.b32.xlu0 %v477, 32
    %v487 = vpop.permute.xlu0 %486
    %488 = vrot.lane.b32.xlu0 %v478, 32
    %v489 = vpop.permute.xlu0 %488
    %490 = vrot.lane.b32.xlu0 %v479, 32
    %v491 = vpop.permute.xlu0 %490
    %496 = vrot.lane.b32.xlu0 %v476, 64
    %v497 = vpop.permute.xlu0 %496
    %498 = vrot.lane.b32.xlu0 %v477, 64
    %v499 = vpop.permute.xlu0 %498
    %500 = vrot.lane.b32.xlu0 %v478, 64
    %v501 = vpop.permute.xlu0 %500
    %502 = vrot.lane.b32.xlu0 %v479, 64
    %v503 = vpop.permute.xlu0 %502
    %v508 = vsel %vm182, %v476, %v485
    %v509 = vsel %vm182, %v477, %v487
    %v510 = vsel %vm182, %v478, %v489
    %v511 = vsel %vm182, %v479, %v491
    %v512 = vsel %vm187, %v508, %v497
    %v513 = vsel %vm187, %v509, %v499
    %v514 = vsel %vm187, %v510, %v501
    %v515 = vsel %vm187, %v511, %v503
    %v516 = vld [vmem:[#allocation3 + $0xa] sm:$0x1]
    %v517 = vlaneseq
    %v518 = vshrl.u32 %v517, 7
    %v519 = vsub.s32 0, %v518
    %v520 = vrot.slane %v516, %v519
    %v521 = vmul.f32 %v520, %v512
    %v522 = vmul.f32 %v520, %v513
    %v523 = vmul.f32 %v520, %v514
    %v524 = vmul.f32 %v520, %v515
    %v525 = vadd.f32 %v471, %v521
    %v526 = vadd.f32 %v472, %v522
    %v527 = vadd.f32 %v473, %v523
    %v528 = vadd.f32 %v474, %v524
    %v529 = vld [vmem:[#allocation3 + $0xb] sm:$0x1]
    %v530 = vlaneseq
    %v531 = vshrl.u32 %v530, 7
    %v532 = vsub.s32 0, %v531
    %v533 = vrot.slane %v529, %v532
    %v534 = vmul.f32 %v533, %v512
    %v535 = vmul.f32 %v533, %v513
    %v536 = vmul.f32 %v533, %v514
    %v537 = vmul.f32 %v533, %v515
    %v542 = vrot.slane %v534, 1
    %v543 = vrot.slane %v535, 1
    %v544 = vsel %vm214, %v542, %v543
    %v545 = vrot.slane %v536, 1
    %v546 = vrot.slane %v537, 1
    %v547 = vsel %vm214, %v545, %v546
    %v552 = vadd.f32 %v525, %v544
    %v553 = vadd.f32 %v526, %v543
    %v554 = vadd.f32 %v527, %v547
    %v555 = vadd.f32 %v528, %v546
    %v556 = vld [vmem:[#allocation3 + $0xc] sm:$0x1]
    %v557 = vlaneseq
    %v558 = vshrl.u32 %v557, 7
    %v559 = vsub.s32 0, %v558
    %v560 = vrot.slane %v556, %v559
    %v561 = vmul.f32 %v560, %v512
    %v562 = vmul.f32 %v560, %v513
    %v563 = vmul.f32 %v560, %v514
    %v564 = vmul.f32 %v560, %v515
    %v569 = vrot.slane %v561, 2
    %v570 = vrot.slane %v562, 2
    %v571 = vsel %vm242, %v569, %v570
    %v572 = vrot.slane %v563, 2
    %v573 = vrot.slane %v564, 2
    %v574 = vsel %vm242, %v572, %v573
    %v579 = vadd.f32 %v552, %v571
    %v580 = vadd.f32 %v553, %v570
    %v581 = vadd.f32 %v554, %v574
    %v582 = vadd.f32 %v555, %v573
    %v583 = vld [vmem:[#allocation3 + $0xd] sm:$0x1]
    %v584 = vlaneseq
    %v585 = vshrl.u32 %v584, 7
    %v586 = vsub.s32 0, %v585
    %v587 = vrot.slane %v583, %v586
    %v588 = vmul.f32 %v587, %v512
    %v589 = vmul.f32 %v587, %v513
    %v590 = vmul.f32 %v587, %v514
    %v591 = vmul.f32 %v587, %v515
    %v596 = vrot.slane %v588, 3
    %v597 = vrot.slane %v589, 3
    %v598 = vsel %vm270, %v596, %v597
    %v599 = vrot.slane %v590, 3
    %v600 = vrot.slane %v591, 3
    %v601 = vsel %vm270, %v599, %v600
    %v606 = vadd.f32 %v579, %v598
    %v607 = vadd.f32 %v580, %v597
    %v608 = vadd.f32 %v581, %v601
    %v609 = vadd.f32 %v582, %v600
    %v610 = vld [vmem:[#allocation3 + $0xe] sm:$0x1]
    %v611 = vlaneseq
    %v612 = vshrl.u32 %v611, 7
    %v613 = vsub.s32 0, %v612
    %v614 = vrot.slane %v610, %v613
    %v615 = vmul.f32 %v614, %v512
    %v616 = vmul.f32 %v614, %v513
    %v617 = vmul.f32 %v614, %v514
    %v618 = vmul.f32 %v614, %v515
    %v623 = vrot.slane %v615, 4
    %v624 = vrot.slane %v616, 4
    %v625 = vsel %vm298, %v623, %v624
    %v626 = vrot.slane %v617, 4
    %v627 = vrot.slane %v618, 4
    %v628 = vsel %vm298, %v626, %v627
    %v633 = vadd.f32 %v606, %v625
    %v634 = vadd.f32 %v607, %v624
    %v635 = vadd.f32 %v608, %v628
    %v636 = vadd.f32 %v609, %v627
    %vm637 = vcmask 785408
    %v638 = vsel %vm637, %v633, 0.0
    %vm639 = vcmask 781312
    %v640 = vsel %vm639, %v634, 0.0
    %v641 = vadd.f32 %v638, %v640
    %v642 = vrot.slane %v641, 4
    %v643 = vadd.f32 %v641, %v642
    %v644 = vrot.slane %v643, 2
    %v645 = vadd.f32 %v643, %v644
    %v646 = vrot.slane %v645, 1
    %v647 = vadd.f32 %v645, %v646
    %v648 = vsel %vm637, %v635, 0.0
    %v649 = vsel %vm639, %v636, 0.0
    %v650 = vadd.f32 %v648, %v649
    %v651 = vrot.slane %v650, 4
    %v652 = vadd.f32 %v650, %v651
    %v653 = vrot.slane %v652, 2
    %v654 = vadd.f32 %v652, %v653
    %v655 = vrot.slane %v654, 1
    %v656 = vadd.f32 %v654, %v655
    %v657 = vsel %vm637, %v647, 0.0
    %v658 = vsel %vm637, %v656, 0.0
    %v659 = vadd.f32 %v657, %v658
    %v660 = vmul.f32 %v633, %v633
    %v661 = vmul.f32 %v634, %v634
    %v662 = vmul.f32 %v635, %v635
    %v663 = vmul.f32 %v636, %v636
    %v664 = vsel %vm637, %v660, 0.0
    %v665 = vsel %vm639, %v661, 0.0
    %v666 = vadd.f32 %v664, %v665
    %v667 = vrot.slane %v666, 4
    %v668 = vadd.f32 %v666, %v667
    %v669 = vrot.slane %v668, 2
    %v670 = vadd.f32 %v668, %v669
    %v671 = vrot.slane %v670, 1
    %v672 = vadd.f32 %v670, %v671
    %v673 = vsel %vm637, %v662, 0.0
    %v674 = vsel %vm639, %v663, 0.0
    %v675 = vadd.f32 %v673, %v674
    %v676 = vrot.slane %v675, 4
    %v677 = vadd.f32 %v675, %v676
    %v678 = vrot.slane %v677, 2
    %v679 = vadd.f32 %v677, %v678
    %v680 = vrot.slane %v679, 1
    %v681 = vadd.f32 %v679, %v680
    %v682 = vsel %vm637, %v672, 0.0
    %v683 = vsel %vm637, %v681, 0.0
    %v684 = vadd.f32 %v682, %v683
    %v686 = vsel %vm637, %v659, 0
    %688 = vmatprep.subr.mxu0 0.0
    %689 = vmatpush1.msra.mxu0 %v133
    %690 = vmatprep.subr.mxu0 0.0
    %691 = vmatpush1.msra.mxu0 %v134
    %692 = vmatprep.subr.mxu0 0.0
    %693 = vmatpush1.msra.mxu0 %v135
    %694 = vmatprep.subr.mxu0 0.0
    %695 = vmatpush1.msra.mxu0 %v136
    %696 = vmatprep.subr.mxu0 0.0
    %697 = vmatpush1.msra.mxu0 %v137
    %698 = vmatprep.subr.mxu0 0.0
    %699 = vmatpush1.msra.mxu0 %v138
    %700 = vmatprep.subr.mxu0 0.0
    %701 = vmatpush1.msra.mxu0 %v139
    %702 = vmatprep.subr.mxu0 0.0
    %703 = vmatpush1.msra.mxu0 %v140
    %704 = vmatprep.subr.mxu0 0.0
    %705 = vmatpush1.msra.mxu0 %v141
    %706 = vmatprep.subr.mxu0 0.0
    %707 = vmatpush1.msra.mxu0 %v142
    %708 = vmatprep.subr.mxu0 0.0
    %709 = vmatpush1.msra.mxu0 %v143
    %710 = vmatprep.subr.mxu0 0.0
    %711 = vmatpush1.msra.mxu0 %v144
    %712 = vmatprep.subr.mxu0 0.0
    %713 = vmatpush1.msra.mxu0 0.0
    %714 = vmatprep.subr.mxu0 0.0
    %715 = vmatpush1.msra.mxu0 0.0
    %716 = vmatprep.subr.mxu0 0.0
    %717 = vmatpush1.msra.mxu0 0.0
    %718 = vmatprep.subr.mxu0 0.0
    %719 = vmatpush1.msra.mxu0 0.0
    %720 = vmatprep.subr.mxu0 0.0
    %721 = vmatpush1.msra.mxu0 0.0
    %722 = vmatprep.subr.mxu0 0.0
    %723 = vmatpush1.msra.mxu0 0.0
    %724 = vmatprep.subr.mxu0 0.0
    %725 = vmatpush1.msra.mxu0 0.0
    %726 = vmatprep.subr.mxu0 0.0
    %727 = vmatpush1.msra.mxu0 0.0
    %728 = vmatprep.subr.mxu0 0.0
    %729 = vmatpush1.msra.mxu0 0.0
    %730 = vmatprep.subr.mxu0 0.0
    %731 = vmatpush1.msra.mxu0 0.0
    %732 = vmatprep.subr.mxu0 0.0
    %733 = vmatpush1.msra.mxu0 0.0
    %734 = vmatprep.subr.mxu0 0.0
    %735 = vmatpush1.msra.mxu0 0.0
    %736 = vmatprep.subr.mxu0 0.0
    %737 = vmatpush1.msra.mxu0 0.0
    %738 = vmatprep.subr.mxu0 0.0
    %739 = vmatpush1.msra.mxu0 0.0
    %740 = vmatprep.subr.mxu0 0.0
    %741 = vmatpush1.msra.mxu0 0.0
    %742 = vmatprep.subr.mxu0 0.0
    %743 = vmatpush1.msra.mxu0 0.0
    %744 = vmatprep.subr.mxu0 0.0
    %745 = vmatpush1.msra.mxu0 0.0
    %746 = vmatprep.subr.mxu0 0.0
    %747 = vmatpush1.msra.mxu0 0.0
    %748 = vmatprep.subr.mxu0 0.0
    %749 = vmatpush1.msra.mxu0 0.0
    %750 = vmatprep.subr.mxu0 0.0
    %751 = vmatpush1.msra.mxu0 0.0
    %752 = vmatprep.mubr.f32.mxu0 0.0
    %753 = vmatmul.mubr.f32.gmra.mrb[0].mxu0 %v686
    %v754 = vpop.f32.mrb[0].mxu0
    %v755 = vadd.f32 0.0, %v754
    %v756 = vpop.f32.mrb[0].mxu0
    %757 = vdwg.mxu0
    %v759 = vsel %vm637, %v684, 0
    %761 = vmatprep.subr.mxu0 0.0
    %762 = vmatpush1.msra.mxu0 %v133
    %763 = vmatprep.subr.mxu0 0.0
    %764 = vmatpush1.msra.mxu0 %v134
    %765 = vmatprep.subr.mxu0 0.0
    %766 = vmatpush1.msra.mxu0 %v135
    %767 = vmatprep.subr.mxu0 0.0
    %768 = vmatpush1.msra.mxu0 %v136
    %769 = vmatprep.subr.mxu0 0.0
    %770 = vmatpush1.msra.mxu0 %v137
    %771 = vmatprep.subr.mxu0 0.0
    %772 = vmatpush1.msra.mxu0 %v138
    %773 = vmatprep.subr.mxu0 0.0
    %774 = vmatpush1.msra.mxu0 %v139
    %775 = vmatprep.subr.mxu0 0.0
    %776 = vmatpush1.msra.mxu0 %v140
    %777 = vmatprep.subr.mxu0 0.0
    %778 = vmatpush1.msra.mxu0 %v141
    %779 = vmatprep.subr.mxu0 0.0
    %780 = vmatpush1.msra.mxu0 %v142
    %781 = vmatprep.subr.mxu0 0.0
    %782 = vmatpush1.msra.mxu0 %v143
    %783 = vmatprep.subr.mxu0 0.0
    %784 = vmatpush1.msra.mxu0 %v144
    %785 = vmatprep.subr.mxu0 0.0
    %786 = vmatpush1.msra.mxu0 0.0
    %787 = vmatprep.subr.mxu0 0.0
    %788 = vmatpush1.msra.mxu0 0.0
    %789 = vmatprep.subr.mxu0 0.0
    %790 = vmatpush1.msra.mxu0 0.0
    %791 = vmatprep.subr.mxu0 0.0
    %792 = vmatpush1.msra.mxu0 0.0
    %793 = vmatprep.subr.mxu0 0.0
    %794 = vmatpush1.msra.mxu0 0.0
    %795 = vmatprep.subr.mxu0 0.0
    %796 = vmatpush1.msra.mxu0 0.0
    %797 = vmatprep.subr.mxu0 0.0
    %798 = vmatpush1.msra.mxu0 0.0
    %799 = vmatprep.subr.mxu0 0.0
    %800 = vmatpush1.msra.mxu0 0.0
    %801 = vmatprep.subr.mxu0 0.0
    %802 = vmatpush1.msra.mxu0 0.0
    %803 = vmatprep.subr.mxu0 0.0
    %804 = vmatpush1.msra.mxu0 0.0
    %805 = vmatprep.subr.mxu0 0.0
    %806 = vmatpush1.msra.mxu0 0.0
    %807 = vmatprep.subr.mxu0 0.0
    %808 = vmatpush1.msra.mxu0 0.0
    %809 = vmatprep.subr.mxu0 0.0
    %810 = vmatpush1.msra.mxu0 0.0
    %811 = vmatprep.subr.mxu0 0.0
    %812 = vmatpush1.msra.mxu0 0.0
    %813 = vmatprep.subr.mxu0 0.0
    %814 = vmatpush1.msra.mxu0 0.0
    %815 = vmatprep.subr.mxu0 0.0
    %816 = vmatpush1.msra.mxu0 0.0
    %817 = vmatprep.subr.mxu0 0.0
    %818 = vmatpush1.msra.mxu0 0.0
    %819 = vmatprep.subr.mxu0 0.0
    %820 = vmatpush1.msra.mxu0 0.0
    %821 = vmatprep.subr.mxu0 0.0
    %822 = vmatpush1.msra.mxu0 0.0
    %823 = vmatprep.subr.mxu0 0.0
    %824 = vmatpush1.msra.mxu0 0.0
    %825 = vmatprep.mubr.f32.mxu0 0.0
    %826 = vmatmul.mubr.f32.gmra.mrb[0].mxu0 %v759
    %v827 = vpop.f32.mrb[0].mxu0
    %v828 = vadd.f32 0.0, %v827
    %v829 = vpop.f32.mrb[0].mxu0
    %830 = vdwg.mxu0
    %v831 = vmul.f32 %v755, 0.0013020834
    %v832 = vmul.f32 %v828, 0.0013020834
    %v833 = vmul.f32 %v831, %v831
    %v834 = vsub.f32 %v832, %v833
    %v835 = vmax.f32 %v834, 0.0
    %v836 = vadd.f32 %v835, 1e-05
    %v837 = vrsqrt.pop %v836
    %v838 = vmul.f32 %v146, %v837
    %v839 = vmul.f32 %v838, %v831
    %v840 = vsub.f32 %v147, %v839
    %vm841 = vcmask 23552
    %v843 = vsel %vm841, %v838, 0
    %vm845 = vcmask 1042432
    %v847 = vsel %vm845, %v145, 0
    %849 = vmatprep.subr.mxu0 0.0
    %850 = vmatpush1.msra.mxu0 %v847
    %851 = vmatprep.subr.mxu0 0.0
    %852 = vmatpush1.msra.mxu0 0.0
    %853 = vmatprep.subr.mxu0 0.0
    %854 = vmatpush1.msra.mxu0 0.0
    %855 = vmatprep.subr.mxu0 0.0
    %856 = vmatpush1.msra.mxu0 0.0
    %857 = vmatprep.subr.mxu0 0.0
    %858 = vmatpush1.msra.mxu0 0.0
    %859 = vmatprep.subr.mxu0 0.0
    %860 = vmatpush1.msra.mxu0 0.0
    %861 = vmatprep.subr.mxu0 0.0
    %862 = vmatpush1.msra.mxu0 0.0
    %863 = vmatprep.subr.mxu0 0.0
    %864 = vmatpush1.msra.mxu0 0.0
    %865 = vmatprep.subr.mxu0 0.0
    %866 = vmatpush1.msra.mxu0 0.0
    %867 = vmatprep.subr.mxu0 0.0
    %868 = vmatpush1.msra.mxu0 0.0
    %869 = vmatprep.subr.mxu0 0.0
    %870 = vmatpush1.msra.mxu0 0.0
    %871 = vmatprep.subr.mxu0 0.0
    %872 = vmatpush1.msra.mxu0 0.0
    %873 = vmatprep.subr.mxu0 0.0
    %874 = vmatpush1.msra.mxu0 0.0
    %875 = vmatprep.subr.mxu0 0.0
    %876 = vmatpush1.msra.mxu0 0.0
    %877 = vmatprep.subr.mxu0 0.0
    %878 = vmatpush1.msra.mxu0 0.0
    %879 = vmatprep.subr.mxu0 0.0
    %880 = vmatpush1.msra.mxu0 0.0
    %881 = vmatprep.subr.mxu0 0.0
    %882 = vmatpush1.msra.mxu0 0.0
    %883 = vmatprep.subr.mxu0 0.0
    %884 = vmatpush1.msra.mxu0 0.0
    %885 = vmatprep.subr.mxu0 0.0
    %886 = vmatpush1.msra.mxu0 0.0
    %887 = vmatprep.subr.mxu0 0.0
    %888 = vmatpush1.msra.mxu0 0.0
    %889 = vmatprep.subr.mxu0 0.0
    %890 = vmatpush1.msra.mxu0 0.0
    %891 = vmatprep.subr.mxu0 0.0
    %892 = vmatpush1.msra.mxu0 0.0
    %893 = vmatprep.subr.mxu0 0.0
    %894 = vmatpush1.msra.mxu0 0.0
    %895 = vmatprep.subr.mxu0 0.0
    %896 = vmatpush1.msra.mxu0 0.0
    %897 = vmatprep.subr.mxu0 0.0
    %898 = vmatpush1.msra.mxu0 0.0
    %899 = vmatprep.subr.mxu0 0.0
    %900 = vmatpush1.msra.mxu0 0.0
    %901 = vmatprep.subr.mxu0 0.0
    %902 = vmatpush1.msra.mxu0 0.0
    %903 = vmatprep.subr.mxu0 0.0
    %904 = vmatpush1.msra.mxu0 0.0
    %905 = vmatprep.subr.mxu0 0.0
    %906 = vmatpush1.msra.mxu0 0.0
    %907 = vmatprep.subr.mxu0 0.0
    %908 = vmatpush1.msra.mxu0 0.0
    %909 = vmatprep.subr.mxu0 0.0
    %910 = vmatpush1.msra.mxu0 0.0
    %911 = vmatprep.subr.mxu0 0.0
    %912 = vmatpush1.msra.mxu0 0.0
    %913 = vmatprep.mubr.f32.mxu0 0.0
    %914 = vmatmul.mubr.f32.gmra.mrb[0].mxu0 %v843
    %v915 = vpop.f32.mrb[0].mxu0
    %v916 = vadd.f32 0.0, %v915
    %v917 = vpop.f32.mrb[0].mxu0
    %918 = vdwg.mxu0
    %v920 = vsel %vm841, %v840, 0
    %922 = vmatprep.subr.mxu0 0.0
    %923 = vmatpush1.msra.mxu0 %v847
    %924 = vmatprep.subr.mxu0 0.0
    %925 = vmatpush1.msra.mxu0 0.0
    %926 = vmatprep.subr.mxu0 0.0
    %927 = vmatpush1.msra.mxu0 0.0
    %928 = vmatprep.subr.mxu0 0.0
    %929 = vmatpush1.msra.mxu0 0.0
    %930 = vmatprep.subr.mxu0 0.0
    %931 = vmatpush1.msra.mxu0 0.0
    %932 = vmatprep.subr.mxu0 0.0
    %933 = vmatpush1.msra.mxu0 0.0
    %934 = vmatprep.subr.mxu0 0.0
    %935 = vmatpush1.msra.mxu0 0.0
    %936 = vmatprep.subr.mxu0 0.0
    %937 = vmatpush1.msra.mxu0 0.0
    %938 = vmatprep.subr.mxu0 0.0
    %939 = vmatpush1.msra.mxu0 0.0
    %940 = vmatprep.subr.mxu0 0.0
    %941 = vmatpush1.msra.mxu0 0.0
    %942 = vmatprep.subr.mxu0 0.0
    %943 = vmatpush1.msra.mxu0 0.0
    %944 = vmatprep.subr.mxu0 0.0
    %945 = vmatpush1.msra.mxu0 0.0
    %946 = vmatprep.subr.mxu0 0.0
    %947 = vmatpush1.msra.mxu0 0.0
    %948 = vmatprep.subr.mxu0 0.0
    %949 = vmatpush1.msra.mxu0 0.0
    %950 = vmatprep.subr.mxu0 0.0
    %951 = vmatpush1.msra.mxu0 0.0
    %952 = vmatprep.subr.mxu0 0.0
    %953 = vmatpush1.msra.mxu0 0.0
    %954 = vmatprep.subr.mxu0 0.0
    %955 = vmatpush1.msra.mxu0 0.0
    %956 = vmatprep.subr.mxu0 0.0
    %957 = vmatpush1.msra.mxu0 0.0
    %958 = vmatprep.subr.mxu0 0.0
    %959 = vmatpush1.msra.mxu0 0.0
    %960 = vmatprep.subr.mxu0 0.0
    %961 = vmatpush1.msra.mxu0 0.0
    %962 = vmatprep.subr.mxu0 0.0
    %963 = vmatpush1.msra.mxu0 0.0
    %964 = vmatprep.subr.mxu0 0.0
    %965 = vmatpush1.msra.mxu0 0.0
    %966 = vmatprep.subr.mxu0 0.0
    %967 = vmatpush1.msra.mxu0 0.0
    %968 = vmatprep.subr.mxu0 0.0
    %969 = vmatpush1.msra.mxu0 0.0
    %970 = vmatprep.subr.mxu0 0.0
    %971 = vmatpush1.msra.mxu0 0.0
    %972 = vmatprep.subr.mxu0 0.0
    %973 = vmatpush1.msra.mxu0 0.0
    %974 = vmatprep.subr.mxu0 0.0
    %975 = vmatpush1.msra.mxu0 0.0
    %976 = vmatprep.subr.mxu0 0.0
    %977 = vmatpush1.msra.mxu0 0.0
    %978 = vmatprep.subr.mxu0 0.0
    %979 = vmatpush1.msra.mxu0 0.0
    %980 = vmatprep.subr.mxu0 0.0
    %981 = vmatpush1.msra.mxu0 0.0
    %982 = vmatprep.subr.mxu0 0.0
    %983 = vmatpush1.msra.mxu0 0.0
    %984 = vmatprep.subr.mxu0 0.0
    %985 = vmatpush1.msra.mxu0 0.0
    %986 = vmatprep.mubr.f32.mxu0 0.0
    %987 = vmatmul.mubr.f32.gmra.mrb[0].mxu0 %v920
    %v988 = vpop.f32.mrb[0].mxu0
    %v989 = vadd.f32 0.0, %v988
    %v990 = vpop.f32.mrb[0].mxu0
    %991 = vdwg.mxu0
    %v992 = vlaneseq
    %v993 = vshrl.u32 %v992, 7
    %v994 = vsub.s32 0, %v993
    %v995 = vrot.slane %v916, %v994
    %v996 = vmul.f32 %v633, %v995
    %v997 = vmul.f32 %v634, %v995
    %v998 = vmul.f32 %v635, %v995
    %v999 = vmul.f32 %v636, %v995
    %v1000 = vlaneseq
    %v1001 = vshrl.u32 %v1000, 7
    %v1002 = vsub.s32 0, %v1001
    %v1003 = vrot.slane %v989, %v1002
    %v1004 = vadd.f32 %v996, %v1003
    %v1005 = vadd.f32 %v997, %v1003
    %v1006 = vadd.f32 %v998, %v1003
    %v1007 = vadd.f32 %v999, %v1003
    %v1008 = vmax.f32 %v1004, 0.0
    %v1009 = vmax.f32 %v1005, 0.0
    %v1010 = vmax.f32 %v1006, 0.0
    %v1011 = vmax.f32 %v1007, 0.0
    %v1016 = vrot.slane %v1008, 1
    %v1017 = vrot.slane %v1009, 1
    %v1018 = vsel %vm214, %v1016, %v1017
    %v1019 = vrot.slane %v1010, 1
    %v1020 = vrot.slane %v1011, 1
    %v1021 = vsel %vm214, %v1019, %v1020
    %v1026 = vmax.f32 %v1008, %v1018
    %v1027 = vmax.f32 %v1009, %v1017
    %v1028 = vmax.f32 %v1010, %v1021
    %v1029 = vmax.f32 %v1011, %v1020
    %v1032 = vrot.slane %v1026, 1
    %v1033 = vrot.slane %v1028, 1
    %v1036 = vrot.slane %v1026, 2
    %v1037 = vrot.slane %v1028, 2
    %v1040 = vrot.slane %v1026, 3
    %v1041 = vrot.slane %v1028, 3
    %v1046 = vrot.slane %v1027, 4
    %v1047 = vrot.slane %v1029, 4
    %v1050 = vrot.slane %v1027, 5
    %v1051 = vrot.slane %v1029, 5
    %vm1054 = vcmask 1040384
    %v1055 = vsel %vm1054, %v1026, %v1032
    %v1056 = vsel %vm1054, %v1028, %v1033
    %vm1057 = vcmask 1041408
    %v1058 = vsel %vm1057, %v1055, %v1036
    %v1059 = vsel %vm1057, %v1056, %v1037
    %v1060 = vsel %vm845, %v1058, %v1040
    %v1061 = vsel %vm845, %v1059, %v1041
    %v1062 = vsel %vm298, %v1060, %v1046
    %v1063 = vsel %vm298, %v1061, %v1047
    %v1064 = vsel %vm270, %v1062, %v1050
    %v1065 = vsel %vm270, %v1063, %v1051
    %1068 = vrot.lane.b32.xlu0 %v1064, 32
    %v1069 = vpop.permute.xlu0 %1068
    %1070 = vrot.lane.b32.xlu0 %v1065, 32
    %v1071 = vpop.permute.xlu0 %1070
    %1074 = vrot.lane.b32.xlu0 %v1064, 64
    %v1075 = vpop.permute.xlu0 %1074
    %1076 = vrot.lane.b32.xlu0 %v1065, 64
    %v1077 = vpop.permute.xlu0 %1076
    %v1080 = vsel %vm182, %v1064, %v1069
    %v1081 = vsel %vm182, %v1065, %v1071
    %v1082 = vsel %vm187, %v1080, %v1075
    %v1083 = vsel %vm187, %v1081, %v1077
    %v1084 = vld [vmem:[#allocation6] sm:$0x1]
    %v1085 = vlaneseq
    %v1086 = vshrl.u32 %v1085, 7
    %v1087 = vsub.s32 0, %v1086
    %v1088 = vrot.slane %v1084, %v1087
    %v1089 = vmul.f32 %v1088, %v1082
    %v1090 = vmul.f32 %v1088, %v1083
    %v1091 = vld [vmem:[#allocation6 + $0x1] sm:$0x1]
    %v1092 = vlaneseq
    %v1093 = vshrl.u32 %v1092, 7
    %v1094 = vsub.s32 0, %v1093
    %v1095 = vrot.slane %v1091, %v1094
    %v1096 = vmul.f32 %v1095, %v1082
    %v1097 = vmul.f32 %v1095, %v1083
    %v1100 = vrot.slane %v1096, 1
    %v1101 = vrot.slane %v1097, 1
    %v1104 = vadd.f32 %v1089, %v1100
    %v1105 = vadd.f32 %v1090, %v1101
    %v1106 = vld [vmem:[#allocation6 + $0x2] sm:$0x1]
    %v1107 = vlaneseq
    %v1108 = vshrl.u32 %v1107, 7
    %v1109 = vsub.s32 0, %v1108
    %v1110 = vrot.slane %v1106, %v1109
    %v1111 = vmul.f32 %v1110, %v1082
    %v1112 = vmul.f32 %v1110, %v1083
    %v1115 = vrot.slane %v1111, 2
    %v1116 = vrot.slane %v1112, 2
    %v1119 = vadd.f32 %v1104, %v1115
    %v1120 = vadd.f32 %v1105, %v1116
    %1121 = vrot.lane.b32.xlu0 %v1064, 96
    %v1122 = vpop.permute.xlu0 %1121
    %1123 = vrot.lane.b32.xlu0 %v1065, 96
    %v1124 = vpop.permute.xlu0 %1123
    %v1127 = vsel %vm182, %v1122, %v1064
    %v1128 = vsel %vm182, %v1124, %v1065
    %v1129 = vsel %vm187, %v1127, %v1069
    %v1130 = vsel %vm187, %v1128, %v1071
    %v1131 = vld [vmem:[#allocation6 + $0x3] sm:$0x1]
    %v1132 = vlaneseq
    %v1133 = vshrl.u32 %v1132, 7
    %v1134 = vsub.s32 0, %v1133
    %v1135 = vrot.slane %v1131, %v1134
    %v1136 = vmul.f32 %v1135, %v1129
    %v1137 = vmul.f32 %v1135, %v1130
    %v1138 = vadd.f32 %v1119, %v1136
    %v1139 = vadd.f32 %v1120, %v1137
    %v1140 = vld [vmem:[#allocation6 + $0x4] sm:$0x1]
    %v1141 = vlaneseq
    %v1142 = vshrl.u32 %v1141, 7
    %v1143 = vsub.s32 0, %v1142
    %v1144 = vrot.slane %v1140, %v1143
    %v1145 = vmul.f32 %v1144, %v1129
    %v1146 = vmul.f32 %v1144, %v1130
    %v1149 = vrot.slane %v1145, 1
    %v1150 = vrot.slane %v1146, 1
    %v1153 = vadd.f32 %v1138, %v1149
    %v1154 = vadd.f32 %v1139, %v1150
    %v1155 = vld [vmem:[#allocation6 + $0x5] sm:$0x1]
    %v1156 = vlaneseq
    %v1157 = vshrl.u32 %v1156, 7
    %v1158 = vsub.s32 0, %v1157
    %v1159 = vrot.slane %v1155, %v1158
    %v1160 = vmul.f32 %v1159, %v1129
    %v1161 = vmul.f32 %v1159, %v1130
    %v1164 = vrot.slane %v1160, 2
    %v1165 = vrot.slane %v1161, 2
    %v1168 = vadd.f32 %v1153, %v1164
    %v1169 = vadd.f32 %v1154, %v1165
    %v1170 = vsel %vm182, %v1075, %v1122
    %v1171 = vsel %vm182, %v1077, %v1124
    %v1172 = vsel %vm187, %v1170, %v1064
    %v1173 = vsel %vm187, %v1171, %v1065
    %v1174 = vld [vmem:[#allocation6 + $0x6] sm:$0x1]
    %v1175 = vlaneseq
    %v1176 = vshrl.u32 %v1175, 7
    %v1177 = vsub.s32 0, %v1176
    %v1178 = vrot.slane %v1174, %v1177
    %v1179 = vmul.f32 %v1178, %v1172
    %v1180 = vmul.f32 %v1178, %v1173
    %v1181 = vadd.f32 %v1168, %v1179
    %v1182 = vadd.f32 %v1169, %v1180
    %v1183 = vld [vmem:[#allocation6 + $0x7] sm:$0x1]
    %v1184 = vlaneseq
    %v1185 = vshrl.u32 %v1184, 7
    %v1186 = vsub.s32 0, %v1185
    %v1187 = vrot.slane %v1183, %v1186
    %v1188 = vmul.f32 %v1187, %v1172
    %v1189 = vmul.f32 %v1187, %v1173
    %v1192 = vrot.slane %v1188, 1
    %v1193 = vrot.slane %v1189, 1
    %v1196 = vadd.f32 %v1181, %v1192
    %v1197 = vadd.f32 %v1182, %v1193
    %v1198 = vld [vmem:[#allocation6 + $0x8] sm:$0x1]
    %v1199 = vlaneseq
    %v1200 = vshrl.u32 %v1199, 7
    %v1201 = vsub.s32 0, %v1200
    %v1202 = vrot.slane %v1198, %v1201
    %v1203 = vmul.f32 %v1202, %v1172
    %v1204 = vmul.f32 %v1202, %v1173
    %v1207 = vrot.slane %v1203, 2
    %v1208 = vrot.slane %v1204, 2
    %v1211 = vadd.f32 %v1196, %v1207
    %v1212 = vadd.f32 %v1197, %v1208
    %v1213 = vsel %vm639, %v1211, 0.0
    %v1214 = vrot.slane %v1213, 4
    %v1215 = vadd.f32 %v1213, %v1214
    %v1216 = vrot.slane %v1215, 2
    %v1217 = vadd.f32 %v1215, %v1216
    %v1218 = vrot.slane %v1217, 1
    %v1219 = vadd.f32 %v1217, %v1218
    %v1220 = vsel %vm639, %v1212, 0.0
    %v1221 = vrot.slane %v1220, 4
    %v1222 = vadd.f32 %v1220, %v1221
    %v1223 = vrot.slane %v1222, 2
    %v1224 = vadd.f32 %v1222, %v1223
    %v1225 = vrot.slane %v1224, 1
    %v1226 = vadd.f32 %v1224, %v1225
    %v1227 = vsel %vm637, %v1219, 0.0
    %v1228 = vsel %vm637, %v1226, 0.0
    %v1229 = vadd.f32 %v1227, %v1228
    %v1230 = vmul.f32 %v1211, %v1211
    %v1231 = vmul.f32 %v1212, %v1212
    %v1232 = vsel %vm639, %v1230, 0.0
    %v1233 = vrot.slane %v1232, 4
    %v1234 = vadd.f32 %v1232, %v1233
    %v1235 = vrot.slane %v1234, 2
    %v1236 = vadd.f32 %v1234, %v1235
    %v1237 = vrot.slane %v1236, 1
    %v1238 = vadd.f32 %v1236, %v1237
    %v1239 = vsel %vm639, %v1231, 0.0
    %v1240 = vrot.slane %v1239, 4
    %v1241 = vadd.f32 %v1239, %v1240
    %v1242 = vrot.slane %v1241, 2
    %v1243 = vadd.f32 %v1241, %v1242
    %v1244 = vrot.slane %v1243, 1
    %v1245 = vadd.f32 %v1243, %v1244
    %v1246 = vsel %vm637, %v1238, 0.0
    %v1247 = vsel %vm637, %v1245, 0.0
    %v1248 = vadd.f32 %v1246, %v1247
    %v1250 = vsel %vm637, %v1229, 0
    %1252 = vmatprep.subr.mxu0 0.0
    %1253 = vmatpush1.msra.mxu0 %v133
    %1254 = vmatprep.subr.mxu0 0.0
    %1255 = vmatpush1.msra.mxu0 %v134
    %1256 = vmatprep.subr.mxu0 0.0
    %1257 = vmatpush1.msra.mxu0 %v135
    %1258 = vmatprep.subr.mxu0 0.0
    %1259 = vmatpush1.msra.mxu0 %v136
    %1260 = vmatprep.subr.mxu0 0.0
    %1261 = vmatpush1.msra.mxu0 %v137
    %1262 = vmatprep.subr.mxu0 0.0
    %1263 = vmatpush1.msra.mxu0 %v138
    %1264 = vmatprep.subr.mxu0 0.0
    %1265 = vmatpush1.msra.mxu0 %v139
    %1266 = vmatprep.subr.mxu0 0.0
    %1267 = vmatpush1.msra.mxu0 %v140
    %1268 = vmatprep.subr.mxu0 0.0
    %1269 = vmatpush1.msra.mxu0 %v141
    %1270 = vmatprep.subr.mxu0 0.0
    %1271 = vmatpush1.msra.mxu0 %v142
    %1272 = vmatprep.subr.mxu0 0.0
    %1273 = vmatpush1.msra.mxu0 %v143
    %1274 = vmatprep.subr.mxu0 0.0
    %1275 = vmatpush1.msra.mxu0 %v144
    %1276 = vmatprep.subr.mxu0 0.0
    %1277 = vmatpush1.msra.mxu0 0.0
    %1278 = vmatprep.subr.mxu0 0.0
    %1279 = vmatpush1.msra.mxu0 0.0
    %1280 = vmatprep.subr.mxu0 0.0
    %1281 = vmatpush1.msra.mxu0 0.0
    %1282 = vmatprep.subr.mxu0 0.0
    %1283 = vmatpush1.msra.mxu0 0.0
    %1284 = vmatprep.subr.mxu0 0.0
    %1285 = vmatpush1.msra.mxu0 0.0
    %1286 = vmatprep.subr.mxu0 0.0
    %1287 = vmatpush1.msra.mxu0 0.0
    %1288 = vmatprep.subr.mxu0 0.0
    %1289 = vmatpush1.msra.mxu0 0.0
    %1290 = vmatprep.subr.mxu0 0.0
    %1291 = vmatpush1.msra.mxu0 0.0
    %1292 = vmatprep.subr.mxu0 0.0
    %1293 = vmatpush1.msra.mxu0 0.0
    %1294 = vmatprep.subr.mxu0 0.0
    %1295 = vmatpush1.msra.mxu0 0.0
    %1296 = vmatprep.subr.mxu0 0.0
    %1297 = vmatpush1.msra.mxu0 0.0
    %1298 = vmatprep.subr.mxu0 0.0
    %1299 = vmatpush1.msra.mxu0 0.0
    %1300 = vmatprep.subr.mxu0 0.0
    %1301 = vmatpush1.msra.mxu0 0.0
    %1302 = vmatprep.subr.mxu0 0.0
    %1303 = vmatpush1.msra.mxu0 0.0
    %1304 = vmatprep.subr.mxu0 0.0
    %1305 = vmatpush1.msra.mxu0 0.0
    %1306 = vmatprep.subr.mxu0 0.0
    %1307 = vmatpush1.msra.mxu0 0.0
    %1308 = vmatprep.subr.mxu0 0.0
    %1309 = vmatpush1.msra.mxu0 0.0
    %1310 = vmatprep.subr.mxu0 0.0
    %1311 = vmatpush1.msra.mxu0 0.0
    %1312 = vmatprep.subr.mxu0 0.0
    %1313 = vmatpush1.msra.mxu0 0.0
    %1314 = vmatprep.subr.mxu0 0.0
    %1315 = vmatpush1.msra.mxu0 0.0
    %1316 = vmatprep.mubr.f32.mxu0 0.0
    %1317 = vmatmul.mubr.f32.gmra.mrb[0].mxu0 %v1250
    %v1318 = vpop.f32.mrb[0].mxu0
    %v1319 = vadd.f32 0.0, %v1318
    %v1320 = vpop.f32.mrb[0].mxu0
    %1321 = vdwg.mxu0
    %v1323 = vsel %vm637, %v1248, 0
    %1325 = vmatprep.subr.mxu0 0.0
    %1326 = vmatpush1.msra.mxu0 %v133
    %1327 = vmatprep.subr.mxu0 0.0
    %1328 = vmatpush1.msra.mxu0 %v134
    %1329 = vmatprep.subr.mxu0 0.0
    %1330 = vmatpush1.msra.mxu0 %v135
    %1331 = vmatprep.subr.mxu0 0.0
    %1332 = vmatpush1.msra.mxu0 %v136
    %1333 = vmatprep.subr.mxu0 0.0
    %1334 = vmatpush1.msra.mxu0 %v137
    %1335 = vmatprep.subr.mxu0 0.0
    %1336 = vmatpush1.msra.mxu0 %v138
    %1337 = vmatprep.subr.mxu0 0.0
    %1338 = vmatpush1.msra.mxu0 %v139
    %1339 = vmatprep.subr.mxu0 0.0
    %1340 = vmatpush1.msra.mxu0 %v140
    %1341 = vmatprep.subr.mxu0 0.0
    %1342 = vmatpush1.msra.mxu0 %v141
    %1343 = vmatprep.subr.mxu0 0.0
    %1344 = vmatpush1.msra.mxu0 %v142
    %1345 = vmatprep.subr.mxu0 0.0
    %1346 = vmatpush1.msra.mxu0 %v143
    %1347 = vmatprep.subr.mxu0 0.0
    %1348 = vmatpush1.msra.mxu0 %v144
    %1349 = vmatprep.subr.mxu0 0.0
    %1350 = vmatpush1.msra.mxu0 0.0
    %1351 = vmatprep.subr.mxu0 0.0
    %1352 = vmatpush1.msra.mxu0 0.0
    %1353 = vmatprep.subr.mxu0 0.0
    %1354 = vmatpush1.msra.mxu0 0.0
    %1355 = vmatprep.subr.mxu0 0.0
    %1356 = vmatpush1.msra.mxu0 0.0
    %1357 = vmatprep.subr.mxu0 0.0
    %1358 = vmatpush1.msra.mxu0 0.0
    %1359 = vmatprep.subr.mxu0 0.0
    %1360 = vmatpush1.msra.mxu0 0.0
    %1361 = vmatprep.subr.mxu0 0.0
    %1362 = vmatpush1.msra.mxu0 0.0
    %1363 = vmatprep.subr.mxu0 0.0
    %1364 = vmatpush1.msra.mxu0 0.0
    %1365 = vmatprep.subr.mxu0 0.0
    %1366 = vmatpush1.msra.mxu0 0.0
    %1367 = vmatprep.subr.mxu0 0.0
    %1368 = vmatpush1.msra.mxu0 0.0
    %1369 = vmatprep.subr.mxu0 0.0
    %1370 = vmatpush1.msra.mxu0 0.0
    %1371 = vmatprep.subr.mxu0 0.0
    %1372 = vmatpush1.msra.mxu0 0.0
    %1373 = vmatprep.subr.mxu0 0.0
    %1374 = vmatpush1.msra.mxu0 0.0
    %1375 = vmatprep.subr.mxu0 0.0
    %1376 = vmatpush1.msra.mxu0 0.0
    %1377 = vmatprep.subr.mxu0 0.0
    %1378 = vmatpush1.msra.mxu0 0.0
    %1379 = vmatprep.subr.mxu0 0.0
    %1380 = vmatpush1.msra.mxu0 0.0
    %1381 = vmatprep.subr.mxu0 0.0
    %1382 = vmatpush1.msra.mxu0 0.0
    %1383 = vmatprep.subr.mxu0 0.0
    %1384 = vmatpush1.msra.mxu0 0.0
    %1385 = vmatprep.subr.mxu0 0.0
    %1386 = vmatpush1.msra.mxu0 0.0
    %1387 = vmatprep.subr.mxu0 0.0
    %1388 = vmatpush1.msra.mxu0 0.0
    %1389 = vmatprep.mubr.f32.mxu0 0.0
    %1390 = vmatmul.mubr.f32.gmra.mrb[0].mxu0 %v1323
    %v1391 = vpop.f32.mrb[0].mxu0
    %v1392 = vadd.f32 0.0, %v1391
    %v1393 = vpop.f32.mrb[0].mxu0
    %1394 = vdwg.mxu0
    %v1395 = vmul.f32 %v1319, 0.00390625
    %v1396 = vmul.f32 %v1392, 0.00390625
    %v1397 = vmul.f32 %v1395, %v1395
    %v1398 = vsub.f32 %v1396, %v1397
    %v1399 = vmax.f32 %v1398, 0.0
    %v1400 = vadd.f32 %v1399, 1e-05
    %v1401 = vrsqrt.pop %v1400
    %v1402 = vmul.f32 %v148, %v1401
    %v1403 = vmul.f32 %v1402, %v1395
    %v1404 = vsub.f32 %v149, %v1403
    %v1406 = vsel %vm841, %v1402, 0
    %1408 = vmatprep.subr.mxu0 0.0
    %1409 = vmatpush1.msra.mxu0 %v847
    %1410 = vmatprep.subr.mxu0 0.0
    %1411 = vmatpush1.msra.mxu0 0.0
    %1412 = vmatprep.subr.mxu0 0.0
    %1413 = vmatpush1.msra.mxu0 0.0
    %1414 = vmatprep.subr.mxu0 0.0
    %1415 = vmatpush1.msra.mxu0 0.0
    %1416 = vmatprep.subr.mxu0 0.0
    %1417 = vmatpush1.msra.mxu0 0.0
    %1418 = vmatprep.subr.mxu0 0.0
    %1419 = vmatpush1.msra.mxu0 0.0
    %1420 = vmatprep.subr.mxu0 0.0
    %1421 = vmatpush1.msra.mxu0 0.0
    %1422 = vmatprep.subr.mxu0 0.0
    %1423 = vmatpush1.msra.mxu0 0.0
    %1424 = vmatprep.subr.mxu0 0.0
    %1425 = vmatpush1.msra.mxu0 0.0
    %1426 = vmatprep.subr.mxu0 0.0
    %1427 = vmatpush1.msra.mxu0 0.0
    %1428 = vmatprep.subr.mxu0 0.0
    %1429 = vmatpush1.msra.mxu0 0.0
    %1430 = vmatprep.subr.mxu0 0.0
    %1431 = vmatpush1.msra.mxu0 0.0
    %1432 = vmatprep.subr.mxu0 0.0
    %1433 = vmatpush1.msra.mxu0 0.0
    %1434 = vmatprep.subr.mxu0 0.0
    %1435 = vmatpush1.msra.mxu0 0.0
    %1436 = vmatprep.subr.mxu0 0.0
    %1437 = vmatpush1.msra.mxu0 0.0
    %1438 = vmatprep.subr.mxu0 0.0
    %1439 = vmatpush1.msra.mxu0 0.0
    %1440 = vmatprep.subr.mxu0 0.0
    %1441 = vmatpush1.msra.mxu0 0.0
    %1442 = vmatprep.subr.mxu0 0.0
    %1443 = vmatpush1.msra.mxu0 0.0
    %1444 = vmatprep.subr.mxu0 0.0
    %1445 = vmatpush1.msra.mxu0 0.0
    %1446 = vmatprep.subr.mxu0 0.0
    %1447 = vmatpush1.msra.mxu0 0.0
    %1448 = vmatprep.subr.mxu0 0.0
    %1449 = vmatpush1.msra.mxu0 0.0
    %1450 = vmatprep.subr.mxu0 0.0
    %1451 = vmatpush1.msra.mxu0 0.0
    %1452 = vmatprep.subr.mxu0 0.0
    %1453 = vmatpush1.msra.mxu0 0.0
    %1454 = vmatprep.subr.mxu0 0.0
    %1455 = vmatpush1.msra.mxu0 0.0
    %1456 = vmatprep.subr.mxu0 0.0
    %1457 = vmatpush1.msra.mxu0 0.0
    %1458 = vmatprep.subr.mxu0 0.0
    %1459 = vmatpush1.msra.mxu0 0.0
    %1460 = vmatprep.subr.mxu0 0.0
    %1461 = vmatpush1.msra.mxu0 0.0
    %1462 = vmatprep.subr.mxu0 0.0
    %1463 = vmatpush1.msra.mxu0 0.0
    %1464 = vmatprep.subr.mxu0 0.0
    %1465 = vmatpush1.msra.mxu0 0.0
    %1466 = vmatprep.subr.mxu0 0.0
    %1467 = vmatpush1.msra.mxu0 0.0
    %1468 = vmatprep.subr.mxu0 0.0
    %1469 = vmatpush1.msra.mxu0 0.0
    %1470 = vmatprep.subr.mxu0 0.0
    %1471 = vmatpush1.msra.mxu0 0.0
    %1472 = vmatprep.mubr.f32.mxu0 0.0
    %1473 = vmatmul.mubr.f32.gmra.mrb[0].mxu0 %v1406
    %v1474 = vpop.f32.mrb[0].mxu0
    %v1475 = vadd.f32 0.0, %v1474
    %v1476 = vpop.f32.mrb[0].mxu0
    %1477 = vdwg.mxu0
    %v1479 = vsel %vm841, %v1404, 0
    %1481 = vmatprep.subr.mxu0 0.0
    %1482 = vmatpush1.msra.mxu0 %v847
    %1483 = vmatprep.subr.mxu0 0.0
    %1484 = vmatpush1.msra.mxu0 0.0
    %1485 = vmatprep.subr.mxu0 0.0
    %1486 = vmatpush1.msra.mxu0 0.0
    %1487 = vmatprep.subr.mxu0 0.0
    %1488 = vmatpush1.msra.mxu0 0.0
    %1489 = vmatprep.subr.mxu0 0.0
    %1490 = vmatpush1.msra.mxu0 0.0
    %1491 = vmatprep.subr.mxu0 0.0
    %1492 = vmatpush1.msra.mxu0 0.0
    %1493 = vmatprep.subr.mxu0 0.0
    %1494 = vmatpush1.msra.mxu0 0.0
    %1495 = vmatprep.subr.mxu0 0.0
    %1496 = vmatpush1.msra.mxu0 0.0
    %1497 = vmatprep.subr.mxu0 0.0
    %1498 = vmatpush1.msra.mxu0 0.0
    %1499 = vmatprep.subr.mxu0 0.0
    %1500 = vmatpush1.msra.mxu0 0.0
    %1501 = vmatprep.subr.mxu0 0.0
    %1502 = vmatpush1.msra.mxu0 0.0
    %1503 = vmatprep.subr.mxu0 0.0
    %1504 = vmatpush1.msra.mxu0 0.0
    %1505 = vmatprep.subr.mxu0 0.0
    %1506 = vmatpush1.msra.mxu0 0.0
    %1507 = vmatprep.subr.mxu0 0.0
    %1508 = vmatpush1.msra.mxu0 0.0
    %1509 = vmatprep.subr.mxu0 0.0
    %1510 = vmatpush1.msra.mxu0 0.0
    %1511 = vmatprep.subr.mxu0 0.0
    %1512 = vmatpush1.msra.mxu0 0.0
    %1513 = vmatprep.subr.mxu0 0.0
    %1514 = vmatpush1.msra.mxu0 0.0
    %1515 = vmatprep.subr.mxu0 0.0
    %1516 = vmatpush1.msra.mxu0 0.0
    %1517 = vmatprep.subr.mxu0 0.0
    %1518 = vmatpush1.msra.mxu0 0.0
    %1519 = vmatprep.subr.mxu0 0.0
    %1520 = vmatpush1.msra.mxu0 0.0
    %1521 = vmatprep.subr.mxu0 0.0
    %1522 = vmatpush1.msra.mxu0 0.0
    %1523 = vmatprep.subr.mxu0 0.0
    %1524 = vmatpush1.msra.mxu0 0.0
    %1525 = vmatprep.subr.mxu0 0.0
    %1526 = vmatpush1.msra.mxu0 0.0
    %1527 = vmatprep.subr.mxu0 0.0
    %1528 = vmatpush1.msra.mxu0 0.0
    %1529 = vmatprep.subr.mxu0 0.0
    %1530 = vmatpush1.msra.mxu0 0.0
    %1531 = vmatprep.subr.mxu0 0.0
    %1532 = vmatpush1.msra.mxu0 0.0
    %1533 = vmatprep.subr.mxu0 0.0
    %1534 = vmatpush1.msra.mxu0 0.0
    %1535 = vmatprep.subr.mxu0 0.0
    %1536 = vmatpush1.msra.mxu0 0.0
    %1537 = vmatprep.subr.mxu0 0.0
    %1538 = vmatpush1.msra.mxu0 0.0
    %1539 = vmatprep.subr.mxu0 0.0
    %1540 = vmatpush1.msra.mxu0 0.0
    %1541 = vmatprep.subr.mxu0 0.0
    %1542 = vmatpush1.msra.mxu0 0.0
    %1543 = vmatprep.subr.mxu0 0.0
    %1544 = vmatpush1.msra.mxu0 0.0
    %1545 = vmatprep.mubr.f32.mxu0 0.0
    %1546 = vmatmul.mubr.f32.gmra.mrb[0].mxu0 %v1479
    %v1547 = vpop.f32.mrb[0].mxu0
    %v1548 = vadd.f32 0.0, %v1547
    %v1549 = vpop.f32.mrb[0].mxu0
    %1550 = vdwg.mxu0
    %v1551 = vlaneseq
    %v1552 = vshrl.u32 %v1551, 7
    %v1553 = vsub.s32 0, %v1552
    %v1554 = vrot.slane %v1475, %v1553
    %v1555 = vmul.f32 %v1211, %v1554
    %v1556 = vmul.f32 %v1212, %v1554
    %v1557 = vlaneseq
    %v1558 = vshrl.u32 %v1557, 7
    %v1559 = vsub.s32 0, %v1558
    %v1560 = vrot.slane %v1548, %v1559
    %v1561 = vadd.f32 %v1555, %v1560
    %v1562 = vadd.f32 %v1556, %v1560
    %v1563 = vmax.f32 %v1561, 0.0
    %v1564 = vmax.f32 %v1562, 0.0
    %v1565 = vsel %vm639, %v1563, -inf
    %v1566 = vrot.slane %v1565, 4
    %v1567 = vmax.f32 %v1565, %v1566
    %v1568 = vrot.slane %v1567, 2
    %v1569 = vmax.f32 %v1567, %v1568
    %v1570 = vrot.slane %v1569, 1
    %v1571 = vmax.f32 %v1569, %v1570
    %v1572 = vsel %vm639, %v1564, -inf
    %v1573 = vrot.slane %v1572, 4
    %v1574 = vmax.f32 %v1572, %v1573
    %v1575 = vrot.slane %v1574, 2
    %v1576 = vmax.f32 %v1574, %v1575
    %v1577 = vrot.slane %v1576, 1
    %v1578 = vmax.f32 %v1576, %v1577
    %1581 = vrot.lane.b32.xlu0 %v1571, 96
    %v1582 = vpop.permute.xlu0 %1581
    %1583 = vrot.lane.b32.xlu0 %v1578, 96
    %v1584 = vpop.permute.xlu0 %1583
    %v1587 = vmax.f32 %v1571, %v1582
    %v1588 = vmax.f32 %v1578, %v1584
    %1589 = vrot.lane.b32.xlu0 %v1571, 64
    %v1590 = vpop.permute.xlu0 %1589
    %1591 = vrot.lane.b32.xlu0 %v1578, 64
    %v1592 = vpop.permute.xlu0 %1591
    %v1595 = vmax.f32 %v1587, %v1590
    %v1596 = vmax.f32 %v1588, %v1592
    %v1597 = vld [vmem:[%s10] sm:$0xff]
    %v1598 = vld [vmem:[%s10 + $0x8] sm:$0xff]
    %v1599 = vld [vmem:[%s10 + $0x10] sm:$0xff]
    %v1600 = vld [vmem:[%s10 + $0x18] sm:$0xff]
    %v1601 = vld [vmem:[%s10 + $0x20] sm:$0xff]
    %v1602 = vld [vmem:[%s10 + $0x28] sm:$0xff]
    %v1603 = vld [vmem:[%s10 + $0x30] sm:$0xff]
    %v1604 = vld [vmem:[%s10 + $0x38] sm:$0xff]
    %v1605 = vld [vmem:[%s10 + $0x40] sm:$0xff]
    %v1606 = vld [vmem:[%s10 + $0x48] sm:$0xff]
    %v1607 = vld [vmem:[%s10 + $0x50] sm:$0xff]
    %v1608 = vld [vmem:[%s10 + $0x58] sm:$0xff]
    %v1609 = vld [vmem:[%s10 + $0x60] sm:$0xff]
    %v1610 = vld [vmem:[%s10 + $0x68] sm:$0xff]
    %v1611 = vld [vmem:[%s10 + $0x70] sm:$0xff]
    %v1612 = vld [vmem:[%s10 + $0x78] sm:$0xff]
    %v1613 = vld [vmem:[%s11] sm:$0xf]
    %v1614 = vld [vmem:[%s9] sm:$0x1]
    %v1615 = vld [vmem:[%s9 + $0x1] sm:$0x1]
    %v1616 = vld [vmem:[%s9 + $0x2] sm:$0x1]
    %v1617 = vld [vmem:[%s9 + $0x3] sm:$0x1]
    %v1618 = vld [vmem:[%s6] sm:$0xff]
    %v1619 = vld [vmem:[%s6 + $0x8] sm:$0xff]
    %v1620 = vld [vmem:[%s6 + $0x40] sm:$0xff]
    %v1621 = vld [vmem:[%s6 + $0x48] sm:$0xff]
    %1626 = vrot.lane.b32.xlu0 %v1618, 32
    %v1627 = vpop.permute.xlu0 %1626
    %1628 = vrot.lane.b32.xlu0 %v1619, 32
    %v1629 = vpop.permute.xlu0 %1628
    %1630 = vrot.lane.b32.xlu0 %v1620, 32
    %v1631 = vpop.permute.xlu0 %1630
    %1632 = vrot.lane.b32.xlu0 %v1621, 32
    %v1633 = vpop.permute.xlu0 %1632
    %1638 = vrot.lane.b32.xlu0 %v1618, 64
    %v1639 = vpop.permute.xlu0 %1638
    %1640 = vrot.lane.b32.xlu0 %v1619, 64
    %v1641 = vpop.permute.xlu0 %1640
    %1642 = vrot.lane.b32.xlu0 %v1620, 64
    %v1643 = vpop.permute.xlu0 %1642
    %1644 = vrot.lane.b32.xlu0 %v1621, 64
    %v1645 = vpop.permute.xlu0 %1644
    %1650 = vrot.lane.b32.xlu0 %v1618, 96
    %v1651 = vpop.permute.xlu0 %1650
    %1652 = vrot.lane.b32.xlu0 %v1619, 96
    %v1653 = vpop.permute.xlu0 %1652
    %1654 = vrot.lane.b32.xlu0 %v1620, 96
    %v1655 = vpop.permute.xlu0 %1654
    %1656 = vrot.lane.b32.xlu0 %v1621, 96
    %v1657 = vpop.permute.xlu0 %1656
    %v1662 = vsel %vm182, %v1618, %v1627
    %v1663 = vsel %vm182, %v1619, %v1629
    %v1664 = vsel %vm182, %v1620, %v1631
    %v1665 = vsel %vm182, %v1621, %v1633
    %v1666 = vsel %vm187, %v1662, %v1639
    %v1667 = vsel %vm187, %v1663, %v1641
    %v1668 = vsel %vm187, %v1664, %v1643
    %v1669 = vsel %vm187, %v1665, %v1645
    %v1670 = vsel %vm637, %v1666, %v1651
    %v1671 = vsel %vm637, %v1667, %v1653
    %v1672 = vsel %vm637, %v1668, %v1655
    %v1673 = vsel %vm637, %v1669, %v1657
    %v1674 = vld [vmem:[#allocation11] sm:$0x1]
    %v1675 = vlaneseq
    %v1676 = vshrl.u32 %v1675, 7
    %v1677 = vsub.s32 0, %v1676
    %v1678 = vrot.slane %v1674, %v1677
    %v1679 = vmul.f32 %v1678, %v1670
    %v1680 = vmul.f32 %v1678, %v1671
    %v1681 = vmul.f32 %v1678, %v1672
    %v1682 = vmul.f32 %v1678, %v1673
    %v1683 = vld [vmem:[#allocation11 + $0x1] sm:$0x1]
    %v1684 = vlaneseq
    %v1685 = vshrl.u32 %v1684, 7
    %v1686 = vsub.s32 0, %v1685
    %v1687 = vrot.slane %v1683, %v1686
    %v1688 = vmul.f32 %v1687, %v1670
    %v1689 = vmul.f32 %v1687, %v1671
    %v1690 = vmul.f32 %v1687, %v1672
    %v1691 = vmul.f32 %v1687, %v1673
    %v1696 = vrot.slane %v1688, 1
    %v1697 = vrot.slane %v1689, 1
    %v1698 = vsel %vm214, %v1696, %v1697
    %v1699 = vrot.slane %v1690, 1
    %v1700 = vrot.slane %v1691, 1
    %v1701 = vsel %vm214, %v1699, %v1700
    %v1706 = vadd.f32 %v1679, %v1698
    %v1707 = vadd.f32 %v1680, %v1697
    %v1708 = vadd.f32 %v1681, %v1701
    %v1709 = vadd.f32 %v1682, %v1700
    %v1710 = vld [vmem:[#allocation11 + $0x2] sm:$0x1]
    %v1711 = vlaneseq
    %v1712 = vshrl.u32 %v1711, 7
    %v1713 = vsub.s32 0, %v1712
    %v1714 = vrot.slane %v1710, %v1713
    %v1715 = vmul.f32 %v1714, %v1670
    %v1716 = vmul.f32 %v1714, %v1671
    %v1717 = vmul.f32 %v1714, %v1672
    %v1718 = vmul.f32 %v1714, %v1673
    %v1723 = vrot.slane %v1715, 2
    %v1724 = vrot.slane %v1716, 2
    %v1725 = vsel %vm242, %v1723, %v1724
    %v1726 = vrot.slane %v1717, 2
    %v1727 = vrot.slane %v1718, 2
    %v1728 = vsel %vm242, %v1726, %v1727
    %v1733 = vadd.f32 %v1706, %v1725
    %v1734 = vadd.f32 %v1707, %v1724
    %v1735 = vadd.f32 %v1708, %v1728
    %v1736 = vadd.f32 %v1709, %v1727
    %v1737 = vld [vmem:[#allocation11 + $0x3] sm:$0x1]
    %v1738 = vlaneseq
    %v1739 = vshrl.u32 %v1738, 7
    %v1740 = vsub.s32 0, %v1739
    %v1741 = vrot.slane %v1737, %v1740
    %v1742 = vmul.f32 %v1741, %v1670
    %v1743 = vmul.f32 %v1741, %v1671
    %v1744 = vmul.f32 %v1741, %v1672
    %v1745 = vmul.f32 %v1741, %v1673
    %v1750 = vrot.slane %v1742, 3
    %v1751 = vrot.slane %v1743, 3
    %v1752 = vsel %vm270, %v1750, %v1751
    %v1753 = vrot.slane %v1744, 3
    %v1754 = vrot.slane %v1745, 3
    %v1755 = vsel %vm270, %v1753, %v1754
    %v1760 = vadd.f32 %v1733, %v1752
    %v1761 = vadd.f32 %v1734, %v1751
    %v1762 = vadd.f32 %v1735, %v1755
    %v1763 = vadd.f32 %v1736, %v1754
    %v1764 = vld [vmem:[#allocation11 + $0x4] sm:$0x1]
    %v1765 = vlaneseq
    %v1766 = vshrl.u32 %v1765, 7
    %v1767 = vsub.s32 0, %v1766
    %v1768 = vrot.slane %v1764, %v1767
    %v1769 = vmul.f32 %v1768, %v1670
    %v1770 = vmul.f32 %v1768, %v1671
    %v1771 = vmul.f32 %v1768, %v1672
    %v1772 = vmul.f32 %v1768, %v1673
    %v1777 = vrot.slane %v1769, 4
    %v1778 = vrot.slane %v1770, 4
    %v1779 = vsel %vm298, %v1777, %v1778
    %v1780 = vrot.slane %v1771, 4
    %v1781 = vrot.slane %v1772, 4
    %v1782 = vsel %vm298, %v1780, %v1781
    %v1787 = vadd.f32 %v1760, %v1779
    %v1788 = vadd.f32 %v1761, %v1778
    %v1789 = vadd.f32 %v1762, %v1782
    %v1790 = vadd.f32 %v1763, %v1781
    %s1791 = scalar_lea.vmem %s6, 16
    %v1792 = vld [vmem:[%s1791] sm:$0xff]
    %v1793 = vld [vmem:[%s1791 + $0x8] sm:$0xff]
    %v1794 = vld [vmem:[%s1791 + $0x40] sm:$0xff]
    %v1795 = vld [vmem:[%s1791 + $0x48] sm:$0xff]
    %1800 = vrot.lane.b32.xlu0 %v1792, 32
    %v1801 = vpop.permute.xlu0 %1800
    %1802 = vrot.lane.b32.xlu0 %v1793, 32
    %v1803 = vpop.permute.xlu0 %1802
    %1804 = vrot.lane.b32.xlu0 %v1794, 32
    %v1805 = vpop.permute.xlu0 %1804
    %1806 = vrot.lane.b32.xlu0 %v1795, 32
    %v1807 = vpop.permute.xlu0 %1806
    %1812 = vrot.lane.b32.xlu0 %v1792, 64
    %v1813 = vpop.permute.xlu0 %1812
    %1814 = vrot.lane.b32.xlu0 %v1793, 64
    %v1815 = vpop.permute.xlu0 %1814
    %1816 = vrot.lane.b32.xlu0 %v1794, 64
    %v1817 = vpop.permute.xlu0 %1816
    %1818 = vrot.lane.b32.xlu0 %v1795, 64
    %v1819 = vpop.permute.xlu0 %1818
    %1824 = vrot.lane.b32.xlu0 %v1792, 96
    %v1825 = vpop.permute.xlu0 %1824
    %1826 = vrot.lane.b32.xlu0 %v1793, 96
    %v1827 = vpop.permute.xlu0 %1826
    %1828 = vrot.lane.b32.xlu0 %v1794, 96
    %v1829 = vpop.permute.xlu0 %1828
    %1830 = vrot.lane.b32.xlu0 %v1795, 96
    %v1831 = vpop.permute.xlu0 %1830
    %v1836 = vsel %vm182, %v1792, %v1801
    %v1837 = vsel %vm182, %v1793, %v1803
    %v1838 = vsel %vm182, %v1794, %v1805
    %v1839 = vsel %vm182, %v1795, %v1807
    %v1840 = vsel %vm187, %v1836, %v1813
    %v1841 = vsel %vm187, %v1837, %v1815
    %v1842 = vsel %vm187, %v1838, %v1817
    %v1843 = vsel %vm187, %v1839, %v1819
    %v1844 = vsel %vm637, %v1840, %v1825
    %v1845 = vsel %vm637, %v1841, %v1827
    %v1846 = vsel %vm637, %v1842, %v1829
    %v1847 = vsel %vm637, %v1843, %v1831
    %v1848 = vld [vmem:[#allocation11 + $0x5] sm:$0x1]
    %v1849 = vlaneseq
    %v1850 = vshrl.u32 %v1849, 7
    %v1851 = vsub.s32 0, %v1850
    %v1852 = vrot.slane %v1848, %v1851
    %v1853 = vmul.f32 %v1852, %v1844
    %v1854 = vmul.f32 %v1852, %v1845
    %v1855 = vmul.f32 %v1852, %v1846
    %v1856 = vmul.f32 %v1852, %v1847
    %v1857 = vadd.f32 %v1787, %v1853
    %v1858 = vadd.f32 %v1788, %v1854
    %v1859 = vadd.f32 %v1789, %v1855
    %v1860 = vadd.f32 %v1790, %v1856
    %v1861 = vld [vmem:[#allocation11 + $0x6] sm:$0x1]
    %v1862 = vlaneseq
    %v1863 = vshrl.u32 %v1862, 7
    %v1864 = vsub.s32 0, %v1863
    %v1865 = vrot.slane %v1861, %v1864
    %v1866 = vmul.f32 %v1865, %v1844
    %v1867 = vmul.f32 %v1865, %v1845
    %v1868 = vmul.f32 %v1865, %v1846
    %v1869 = vmul.f32 %v1865, %v1847
    %v1874 = vrot.slane %v1866, 1
    %v1875 = vrot.slane %v1867, 1
    %v1876 = vsel %vm214, %v1874, %v1875
    %v1877 = vrot.slane %v1868, 1
    %v1878 = vrot.slane %v1869, 1
    %v1879 = vsel %vm214, %v1877, %v1878
    %v1884 = vadd.f32 %v1857, %v1876
    %v1885 = vadd.f32 %v1858, %v1875
    %v1886 = vadd.f32 %v1859, %v1879
    %v1887 = vadd.f32 %v1860, %v1878
    %v1888 = vld [vmem:[#allocation11 + $0x7] sm:$0x1]
    %v1889 = vlaneseq
    %v1890 = vshrl.u32 %v1889, 7
    %v1891 = vsub.s32 0, %v1890
    %v1892 = vrot.slane %v1888, %v1891
    %v1893 = vmul.f32 %v1892, %v1844
    %v1894 = vmul.f32 %v1892, %v1845
    %v1895 = vmul.f32 %v1892, %v1846
    %v1896 = vmul.f32 %v1892, %v1847
    %v1901 = vrot.slane %v1893, 2
    %v1902 = vrot.slane %v1894, 2
    %v1903 = vsel %vm242, %v1901, %v1902
    %v1904 = vrot.slane %v1895, 2
    %v1905 = vrot.slane %v1896, 2
    %v1906 = vsel %vm242, %v1904, %v1905
    %v1911 = vadd.f32 %v1884, %v1903
    %v1912 = vadd.f32 %v1885, %v1902
    %v1913 = vadd.f32 %v1886, %v1906
    %v1914 = vadd.f32 %v1887, %v1905
    %v1915 = vld [vmem:[#allocation11 + $0x8] sm:$0x1]
    %v1916 = vlaneseq
    %v1917 = vshrl.u32 %v1916, 7
    %v1918 = vsub.s32 0, %v1917
    %v1919 = vrot.slane %v1915, %v1918
    %v1920 = vmul.f32 %v1919, %v1844
    %v1921 = vmul.f32 %v1919, %v1845
    %v1922 = vmul.f32 %v1919, %v1846
    %v1923 = vmul.f32 %v1919, %v1847
    %v1928 = vrot.slane %v1920, 3
    %v1929 = vrot.slane %v1921, 3
    %v1930 = vsel %vm270, %v1928, %v1929
    %v1931 = vrot.slane %v1922, 3
    %v1932 = vrot.slane %v1923, 3
    %v1933 = vsel %vm270, %v1931, %v1932
    %v1938 = vadd.f32 %v1911, %v1930
    %v1939 = vadd.f32 %v1912, %v1929
    %v1940 = vadd.f32 %v1913, %v1933
    %v1941 = vadd.f32 %v1914, %v1932
    %v1942 = vld [vmem:[#allocation11 + $0x9] sm:$0x1]
    %v1943 = vlaneseq
    %v1944 = vshrl.u32 %v1943, 7
    %v1945 = vsub.s32 0, %v1944
    %v1946 = vrot.slane %v1942, %v1945
    %v1947 = vmul.f32 %v1946, %v1844
    %v1948 = vmul.f32 %v1946, %v1845
    %v1949 = vmul.f32 %v1946, %v1846
    %v1950 = vmul.f32 %v1946, %v1847
    %v1955 = vrot.slane %v1947, 4
    %v1956 = vrot.slane %v1948, 4
    %v1957 = vsel %vm298, %v1955, %v1956
    %v1958 = vrot.slane %v1949, 4
    %v1959 = vrot.slane %v1950, 4
    %v1960 = vsel %vm298, %v1958, %v1959
    %v1965 = vadd.f32 %v1938, %v1957
    %v1966 = vadd.f32 %v1939, %v1956
    %v1967 = vadd.f32 %v1940, %v1960
    %v1968 = vadd.f32 %v1941, %v1959
    %s1969 = scalar_lea.vmem %s6, 32
    %v1970 = vld [vmem:[%s1969] sm:$0xff]
    %v1971 = vld [vmem:[%s1969 + $0x8] sm:$0xff]
    %v1972 = vld [vmem:[%s1969 + $0x40] sm:$0xff]
    %v1973 = vld [vmem:[%s1969 + $0x48] sm:$0xff]
    %1978 = vrot.lane.b32.xlu0 %v1970, 32
    %v1979 = vpop.permute.xlu0 %1978
    %1980 = vrot.lane.b32.xlu0 %v1971, 32
    %v1981 = vpop.permute.xlu0 %1980
    %1982 = vrot.lane.b32.xlu0 %v1972, 32
    %v1983 = vpop.permute.xlu0 %1982
    %1984 = vrot.lane.b32.xlu0 %v1973, 32
    %v1985 = vpop.permute.xlu0 %1984
    %1990 = vrot.lane.b32.xlu0 %v1970, 64
    %v1991 = vpop.permute.xlu0 %1990
    %1992 = vrot.lane.b32.xlu0 %v1971, 64
    %v1993 = vpop.permute.xlu0 %1992
    %1994 = vrot.lane.b32.xlu0 %v1972, 64
    %v1995 = vpop.permute.xlu0 %1994
    %1996 = vrot.lane.b32.xlu0 %v1973, 64
    %v1997 = vpop.permute.xlu0 %1996
    %2002 = vrot.lane.b32.xlu0 %v1970, 96
    %v2003 = vpop.permute.xlu0 %2002
    %2004 = vrot.lane.b32.xlu0 %v1971, 96
    %v2005 = vpop.permute.xlu0 %2004
    %2006 = vrot.lane.b32.xlu0 %v1972, 96
    %v2007 = vpop.permute.xlu0 %2006
    %2008 = vrot.lane.b32.xlu0 %v1973, 96
    %v2009 = vpop.permute.xlu0 %2008
    %v2014 = vsel %vm182, %v1970, %v1979
    %v2015 = vsel %vm182, %v1971, %v1981
    %v2016 = vsel %vm182, %v1972, %v1983
    %v2017 = vsel %vm182, %v1973, %v1985
    %v2018 = vsel %vm187, %v2014, %v1991
    %v2019 = vsel %vm187, %v2015, %v1993
    %v2020 = vsel %vm187, %v2016, %v1995
    %v2021 = vsel %vm187, %v2017, %v1997
    %v2022 = vsel %vm637, %v2018, %v2003
    %v2023 = vsel %vm637, %v2019, %v2005
    %v2024 = vsel %vm637, %v2020, %v2007
    %v2025 = vsel %vm637, %v2021, %v2009
    %v2026 = vld [vmem:[#allocation11 + $0xa] sm:$0x1]
    %v2027 = vlaneseq
    %v2028 = vshrl.u32 %v2027, 7
    %v2029 = vsub.s32 0, %v2028
    %v2030 = vrot.slane %v2026, %v2029
    %v2031 = vmul.f32 %v2030, %v2022
    %v2032 = vmul.f32 %v2030, %v2023
    %v2033 = vmul.f32 %v2030, %v2024
    %v2034 = vmul.f32 %v2030, %v2025
    %v2035 = vadd.f32 %v1965, %v2031
    %v2036 = vadd.f32 %v1966, %v2032
    %v2037 = vadd.f32 %v1967, %v2033
    %v2038 = vadd.f32 %v1968, %v2034
    %v2039 = vld [vmem:[#allocation11 + $0xb] sm:$0x1]
    %v2040 = vlaneseq
    %v2041 = vshrl.u32 %v2040, 7
    %v2042 = vsub.s32 0, %v2041
    %v2043 = vrot.slane %v2039, %v2042
    %v2044 = vmul.f32 %v2043, %v2022
    %v2045 = vmul.f32 %v2043, %v2023
    %v2046 = vmul.f32 %v2043, %v2024
    %v2047 = vmul.f32 %v2043, %v2025
    %v2052 = vrot.slane %v2044, 1
    %v2053 = vrot.slane %v2045, 1
    %v2054 = vsel %vm214, %v2052, %v2053
    %v2055 = vrot.slane %v2046, 1
    %v2056 = vrot.slane %v2047, 1
    %v2057 = vsel %vm214, %v2055, %v2056
    %v2062 = vadd.f32 %v2035, %v2054
    %v2063 = vadd.f32 %v2036, %v2053
    %v2064 = vadd.f32 %v2037, %v2057
    %v2065 = vadd.f32 %v2038, %v2056
    %v2066 = vld [vmem:[#allocation11 + $0xc] sm:$0x1]
    %v2067 = vlaneseq
    %v2068 = vshrl.u32 %v2067, 7
    %v2069 = vsub.s32 0, %v2068
    %v2070 = vrot.slane %v2066, %v2069
    %v2071 = vmul.f32 %v2070, %v2022
    %v2072 = vmul.f32 %v2070, %v2023
    %v2073 = vmul.f32 %v2070, %v2024
    %v2074 = vmul.f32 %v2070, %v2025
    %v2079 = vrot.slane %v2071, 2
    %v2080 = vrot.slane %v2072, 2
    %v2081 = vsel %vm242, %v2079, %v2080
    %v2082 = vrot.slane %v2073, 2
    %v2083 = vrot.slane %v2074, 2
    %v2084 = vsel %vm242, %v2082, %v2083
    %v2089 = vadd.f32 %v2062, %v2081
    %v2090 = vadd.f32 %v2063, %v2080
    %v2091 = vadd.f32 %v2064, %v2084
    %v2092 = vadd.f32 %v2065, %v2083
    %v2093 = vld [vmem:[#allocation11 + $0xd] sm:$0x1]
    %v2094 = vlaneseq
    %v2095 = vshrl.u32 %v2094, 7
    %v2096 = vsub.s32 0, %v2095
    %v2097 = vrot.slane %v2093, %v2096
    %v2098 = vmul.f32 %v2097, %v2022
    %v2099 = vmul.f32 %v2097, %v2023
    %v2100 = vmul.f32 %v2097, %v2024
    %v2101 = vmul.f32 %v2097, %v2025
    %v2106 = vrot.slane %v2098, 3
    %v2107 = vrot.slane %v2099, 3
    %v2108 = vsel %vm270, %v2106, %v2107
    %v2109 = vrot.slane %v2100, 3
    %v2110 = vrot.slane %v2101, 3
    %v2111 = vsel %vm270, %v2109, %v2110
    %v2116 = vadd.f32 %v2089, %v2108
    %v2117 = vadd.f32 %v2090, %v2107
    %v2118 = vadd.f32 %v2091, %v2111
    %v2119 = vadd.f32 %v2092, %v2110
    %v2120 = vld [vmem:[#allocation11 + $0xe] sm:$0x1]
    %v2121 = vlaneseq
    %v2122 = vshrl.u32 %v2121, 7
    %v2123 = vsub.s32 0, %v2122
    %v2124 = vrot.slane %v2120, %v2123
    %v2125 = vmul.f32 %v2124, %v2022
    %v2126 = vmul.f32 %v2124, %v2023
    %v2127 = vmul.f32 %v2124, %v2024
    %v2128 = vmul.f32 %v2124, %v2025
    %v2133 = vrot.slane %v2125, 4
    %v2134 = vrot.slane %v2126, 4
    %v2135 = vsel %vm298, %v2133, %v2134
    %v2136 = vrot.slane %v2127, 4
    %v2137 = vrot.slane %v2128, 4
    %v2138 = vsel %vm298, %v2136, %v2137
    %v2143 = vadd.f32 %v2116, %v2135
    %v2144 = vadd.f32 %v2117, %v2134
    %v2145 = vadd.f32 %v2118, %v2138
    %v2146 = vadd.f32 %v2119, %v2137
    %s2147 = scalar_lea.vmem %s6, 48
    %v2148 = vld [vmem:[%s2147] sm:$0xff]
    %v2149 = vld [vmem:[%s2147 + $0x8] sm:$0xff]
    %v2150 = vld [vmem:[%s2147 + $0x40] sm:$0xff]
    %v2151 = vld [vmem:[%s2147 + $0x48] sm:$0xff]
    %2156 = vrot.lane.b32.xlu0 %v2148, 32
    %v2157 = vpop.permute.xlu0 %2156
    %2158 = vrot.lane.b32.xlu0 %v2149, 32
    %v2159 = vpop.permute.xlu0 %2158
    %2160 = vrot.lane.b32.xlu0 %v2150, 32
    %v2161 = vpop.permute.xlu0 %2160
    %2162 = vrot.lane.b32.xlu0 %v2151, 32
    %v2163 = vpop.permute.xlu0 %2162
    %2168 = vrot.lane.b32.xlu0 %v2148, 64
    %v2169 = vpop.permute.xlu0 %2168
    %2170 = vrot.lane.b32.xlu0 %v2149, 64
    %v2171 = vpop.permute.xlu0 %2170
    %2172 = vrot.lane.b32.xlu0 %v2150, 64
    %v2173 = vpop.permute.xlu0 %2172
    %2174 = vrot.lane.b32.xlu0 %v2151, 64
    %v2175 = vpop.permute.xlu0 %2174
    %2180 = vrot.lane.b32.xlu0 %v2148, 96
    %v2181 = vpop.permute.xlu0 %2180
    %2182 = vrot.lane.b32.xlu0 %v2149, 96
    %v2183 = vpop.permute.xlu0 %2182
    %2184 = vrot.lane.b32.xlu0 %v2150, 96
    %v2185 = vpop.permute.xlu0 %2184
    %2186 = vrot.lane.b32.xlu0 %v2151, 96
    %v2187 = vpop.permute.xlu0 %2186
    %v2192 = vsel %vm182, %v2148, %v2157
    %v2193 = vsel %vm182, %v2149, %v2159
    %v2194 = vsel %vm182, %v2150, %v2161
    %v2195 = vsel %vm182, %v2151, %v2163
    %v2196 = vsel %vm187, %v2192, %v2169
    %v2197 = vsel %vm187, %v2193, %v2171
    %v2198 = vsel %vm187, %v2194, %v2173
    %v2199 = vsel %vm187, %v2195, %v2175
    %v2200 = vsel %vm637, %v2196, %v2181
    %v2201 = vsel %vm637, %v2197, %v2183
    %v2202 = vsel %vm637, %v2198, %v2185
    %v2203 = vsel %vm637, %v2199, %v2187
    %v2204 = vld [vmem:[#allocation11 + $0xf] sm:$0x1]
    %v2205 = vlaneseq
    %v2206 = vshrl.u32 %v2205, 7
    %v2207 = vsub.s32 0, %v2206
    %v2208 = vrot.slane %v2204, %v2207
    %v2209 = vmul.f32 %v2208, %v2200
    %v2210 = vmul.f32 %v2208, %v2201
    %v2211 = vmul.f32 %v2208, %v2202
    %v2212 = vmul.f32 %v2208, %v2203
    %v2213 = vadd.f32 %v2143, %v2209
    %v2214 = vadd.f32 %v2144, %v2210
    %v2215 = vadd.f32 %v2145, %v2211
    %v2216 = vadd.f32 %v2146, %v2212
    %v2217 = vld [vmem:[#allocation11 + $0x10] sm:$0x1]
    %v2218 = vlaneseq
    %v2219 = vshrl.u32 %v2218, 7
    %v2220 = vsub.s32 0, %v2219
    %v2221 = vrot.slane %v2217, %v2220
    %v2222 = vmul.f32 %v2221, %v2200
    %v2223 = vmul.f32 %v2221, %v2201
    %v2224 = vmul.f32 %v2221, %v2202
    %v2225 = vmul.f32 %v2221, %v2203
    %v2230 = vrot.slane %v2222, 1
    %v2231 = vrot.slane %v2223, 1
    %v2232 = vsel %vm214, %v2230, %v2231
    %v2233 = vrot.slane %v2224, 1
    %v2234 = vrot.slane %v2225, 1
    %v2235 = vsel %vm214, %v2233, %v2234
    %v2240 = vadd.f32 %v2213, %v2232
    %v2241 = vadd.f32 %v2214, %v2231
    %v2242 = vadd.f32 %v2215, %v2235
    %v2243 = vadd.f32 %v2216, %v2234
    %v2244 = vld [vmem:[#allocation11 + $0x11] sm:$0x1]
    %v2245 = vlaneseq
    %v2246 = vshrl.u32 %v2245, 7
    %v2247 = vsub.s32 0, %v2246
    %v2248 = vrot.slane %v2244, %v2247
    %v2249 = vmul.f32 %v2248, %v2200
    %v2250 = vmul.f32 %v2248, %v2201
    %v2251 = vmul.f32 %v2248, %v2202
    %v2252 = vmul.f32 %v2248, %v2203
    %v2257 = vrot.slane %v2249, 2
    %v2258 = vrot.slane %v2250, 2
    %v2259 = vsel %vm242, %v2257, %v2258
    %v2260 = vrot.slane %v2251, 2
    %v2261 = vrot.slane %v2252, 2
    %v2262 = vsel %vm242, %v2260, %v2261
    %v2267 = vadd.f32 %v2240, %v2259
    %v2268 = vadd.f32 %v2241, %v2258
    %v2269 = vadd.f32 %v2242, %v2262
    %v2270 = vadd.f32 %v2243, %v2261
    %v2271 = vld [vmem:[#allocation11 + $0x12] sm:$0x1]
    %v2272 = vlaneseq
    %v2273 = vshrl.u32 %v2272, 7
    %v2274 = vsub.s32 0, %v2273
    %v2275 = vrot.slane %v2271, %v2274
    %v2276 = vmul.f32 %v2275, %v2200
    %v2277 = vmul.f32 %v2275, %v2201
    %v2278 = vmul.f32 %v2275, %v2202
    %v2279 = vmul.f32 %v2275, %v2203
    %v2284 = vrot.slane %v2276, 3
    %v2285 = vrot.slane %v2277, 3
    %v2286 = vsel %vm270, %v2284, %v2285
    %v2287 = vrot.slane %v2278, 3
    %v2288 = vrot.slane %v2279, 3
    %v2289 = vsel %vm270, %v2287, %v2288
    %v2294 = vadd.f32 %v2267, %v2286
    %v2295 = vadd.f32 %v2268, %v2285
    %v2296 = vadd.f32 %v2269, %v2289
    %v2297 = vadd.f32 %v2270, %v2288
    %v2298 = vld [vmem:[#allocation11 + $0x13] sm:$0x1]
    %v2299 = vlaneseq
    %v2300 = vshrl.u32 %v2299, 7
    %v2301 = vsub.s32 0, %v2300
    %v2302 = vrot.slane %v2298, %v2301
    %v2303 = vmul.f32 %v2302, %v2200
    %v2304 = vmul.f32 %v2302, %v2201
    %v2305 = vmul.f32 %v2302, %v2202
    %v2306 = vmul.f32 %v2302, %v2203
    %v2311 = vrot.slane %v2303, 4
    %v2312 = vrot.slane %v2304, 4
    %v2313 = vsel %vm298, %v2311, %v2312
    %v2314 = vrot.slane %v2305, 4
    %v2315 = vrot.slane %v2306, 4
    %v2316 = vsel %vm298, %v2314, %v2315
    %v2321 = vadd.f32 %v2294, %v2313
    %v2322 = vadd.f32 %v2295, %v2312
    %v2323 = vadd.f32 %v2296, %v2316
    %v2324 = vadd.f32 %v2297, %v2315
    %v2325 = vsel %vm298, %v2322, 0.0
    %v2326 = vadd.f32 %v2321, %v2325
    %v2327 = vrot.slane %v2326, 4
    %v2328 = vadd.f32 %v2326, %v2327
    %v2329 = vrot.slane %v2328, 2
    %v2330 = vadd.f32 %v2328, %v2329
    %v2331 = vrot.slane %v2330, 1
    %v2332 = vadd.f32 %v2330, %v2331
    %v2333 = vsel %vm298, %v2324, 0.0
    %v2334 = vadd.f32 %v2323, %v2333
    %v2335 = vrot.slane %v2334, 4
    %v2336 = vadd.f32 %v2334, %v2335
    %v2337 = vrot.slane %v2336, 2
    %v2338 = vadd.f32 %v2336, %v2337
    %v2339 = vrot.slane %v2338, 1
    %v2340 = vadd.f32 %v2338, %v2339
    %v2341 = vadd.f32 %v2332, %v2340
    %v2342 = vmul.f32 %v2321, %v2321
    %v2343 = vmul.f32 %v2322, %v2322
    %v2344 = vmul.f32 %v2323, %v2323
    %v2345 = vmul.f32 %v2324, %v2324
    %v2346 = vsel %vm298, %v2343, 0.0
    %v2347 = vadd.f32 %v2342, %v2346
    %v2348 = vrot.slane %v2347, 4
    %v2349 = vadd.f32 %v2347, %v2348
    %v2350 = vrot.slane %v2349, 2
    %v2351 = vadd.f32 %v2349, %v2350
    %v2352 = vrot.slane %v2351, 1
    %v2353 = vadd.f32 %v2351, %v2352
    %v2354 = vsel %vm298, %v2345, 0.0
    %v2355 = vadd.f32 %v2344, %v2354
    %v2356 = vrot.slane %v2355, 4
    %v2357 = vadd.f32 %v2355, %v2356
    %v2358 = vrot.slane %v2357, 2
    %v2359 = vadd.f32 %v2357, %v2358
    %v2360 = vrot.slane %v2359, 1
    %v2361 = vadd.f32 %v2359, %v2360
    %v2362 = vadd.f32 %v2353, %v2361
    %2363 = vmatprep.subr.mxu0 0.0
    %2364 = vmatpush1.msra.mxu0 %v1597
    %2365 = vmatprep.subr.mxu0 0.0
    %2366 = vmatpush1.msra.mxu0 %v1598
    %2367 = vmatprep.subr.mxu0 0.0
    %2368 = vmatpush1.msra.mxu0 %v1599
    %2369 = vmatprep.subr.mxu0 0.0
    %2370 = vmatpush1.msra.mxu0 %v1600
    %2371 = vmatprep.subr.mxu0 0.0
    %2372 = vmatpush1.msra.mxu0 %v1601
    %2373 = vmatprep.subr.mxu0 0.0
    %2374 = vmatpush1.msra.mxu0 %v1602
    %2375 = vmatprep.subr.mxu0 0.0
    %2376 = vmatpush1.msra.mxu0 %v1603
    %2377 = vmatprep.subr.mxu0 0.0
    %2378 = vmatpush1.msra.mxu0 %v1604
    %2379 = vmatprep.subr.mxu0 0.0
    %2380 = vmatpush1.msra.mxu0 %v1605
    %2381 = vmatprep.subr.mxu0 0.0
    %2382 = vmatpush1.msra.mxu0 %v1606
    %2383 = vmatprep.subr.mxu0 0.0
    %2384 = vmatpush1.msra.mxu0 %v1607
    %2385 = vmatprep.subr.mxu0 0.0
    %2386 = vmatpush1.msra.mxu0 %v1608
    %2387 = vmatprep.subr.mxu0 0.0
    %2388 = vmatpush1.msra.mxu0 %v1609
    %2389 = vmatprep.subr.mxu0 0.0
    %2390 = vmatpush1.msra.mxu0 %v1610
    %2391 = vmatprep.subr.mxu0 0.0
    %2392 = vmatpush1.msra.mxu0 %v1611
    %2393 = vmatprep.subr.mxu0 0.0
    %2394 = vmatpush1.msra.mxu0 %v1612
    %2395 = vmatprep.subr.mxu0 0.0
    %2396 = vmatpush1.msra.mxu0 0.0
    %2397 = vmatprep.subr.mxu0 0.0
    %2398 = vmatpush1.msra.mxu0 0.0
    %2399 = vmatprep.subr.mxu0 0.0
    %2400 = vmatpush1.msra.mxu0 0.0
    %2401 = vmatprep.subr.mxu0 0.0
    %2402 = vmatpush1.msra.mxu0 0.0
    %2403 = vmatprep.subr.mxu0 0.0
    %2404 = vmatpush1.msra.mxu0 0.0
    %2405 = vmatprep.subr.mxu0 0.0
    %2406 = vmatpush1.msra.mxu0 0.0
    %2407 = vmatprep.subr.mxu0 0.0
    %2408 = vmatpush1.msra.mxu0 0.0
    %2409 = vmatprep.subr.mxu0 0.0
    %2410 = vmatpush1.msra.mxu0 0.0
    %2411 = vmatprep.subr.mxu0 0.0
    %2412 = vmatpush1.msra.mxu0 0.0
    %2413 = vmatprep.subr.mxu0 0.0
    %2414 = vmatpush1.msra.mxu0 0.0
    %2415 = vmatprep.subr.mxu0 0.0
    %2416 = vmatpush1.msra.mxu0 0.0
    %2417 = vmatprep.subr.mxu0 0.0
    %2418 = vmatpush1.msra.mxu0 0.0
    %2419 = vmatprep.subr.mxu0 0.0
    %2420 = vmatpush1.msra.mxu0 0.0
    %2421 = vmatprep.subr.mxu0 0.0
    %2422 = vmatpush1.msra.mxu0 0.0
    %2423 = vmatprep.subr.mxu0 0.0
    %2424 = vmatpush1.msra.mxu0 0.0
    %2425 = vmatprep.subr.mxu0 0.0
    %2426 = vmatpush1.msra.mxu0 0.0
    %2427 = vmatprep.mubr.f32.mxu0 0.0
    %2428 = vmatmul.mubr.f32.gmra.mrb[0].mxu0 %v2341
    %v2429 = vpop.f32.mrb[0].mxu0
    %v2430 = vadd.f32 0.0, %v2429
    %v2431 = vpop.f32.mrb[0].mxu0
    %2432 = vdwg.mxu0
    %2433 = vmatprep.subr.mxu0 0.0
    %2434 = vmatpush1.msra.mxu0 %v1597
    %2435 = vmatprep.subr.mxu0 0.0
    %2436 = vmatpush1.msra.mxu0 %v1598
    %2437 = vmatprep.subr.mxu0 0.0
    %2438 = vmatpush1.msra.mxu0 %v1599
    %2439 = vmatprep.subr.mxu0 0.0
    %2440 = vmatpush1.msra.mxu0 %v1600
    %2441 = vmatprep.subr.mxu0 0.0
    %2442 = vmatpush1.msra.mxu0 %v1601
    %2443 = vmatprep.subr.mxu0 0.0
    %2444 = vmatpush1.msra.mxu0 %v1602
    %2445 = vmatprep.subr.mxu0 0.0
    %2446 = vmatpush1.msra.mxu0 %v1603
    %2447 = vmatprep.subr.mxu0 0.0
    %2448 = vmatpush1.msra.mxu0 %v1604
    %2449 = vmatprep.subr.mxu0 0.0
    %2450 = vmatpush1.msra.mxu0 %v1605
    %2451 = vmatprep.subr.mxu0 0.0
    %2452 = vmatpush1.msra.mxu0 %v1606
    %2453 = vmatprep.subr.mxu0 0.0
    %2454 = vmatpush1.msra.mxu0 %v1607
    %2455 = vmatprep.subr.mxu0 0.0
    %2456 = vmatpush1.msra.mxu0 %v1608
    %2457 = vmatprep.subr.mxu0 0.0
    %2458 = vmatpush1.msra.mxu0 %v1609
    %2459 = vmatprep.subr.mxu0 0.0
    %2460 = vmatpush1.msra.mxu0 %v1610
    %2461 = vmatprep.subr.mxu0 0.0
    %2462 = vmatpush1.msra.mxu0 %v1611
    %2463 = vmatprep.subr.mxu0 0.0
    %2464 = vmatpush1.msra.mxu0 %v1612
    %2465 = vmatprep.subr.mxu0 0.0
    %2466 = vmatpush1.msra.mxu0 0.0
    %2467 = vmatprep.subr.mxu0 0.0
    %2468 = vmatpush1.msra.mxu0 0.0
    %2469 = vmatprep.subr.mxu0 0.0
    %2470 = vmatpush1.msra.mxu0 0.0
    %2471 = vmatprep.subr.mxu0 0.0
    %2472 = vmatpush1.msra.mxu0 0.0
    %2473 = vmatprep.subr.mxu0 0.0
    %2474 = vmatpush1.msra.mxu0 0.0
    %2475 = vmatprep.subr.mxu0 0.0
    %2476 = vmatpush1.msra.mxu0 0.0
    %2477 = vmatprep.subr.mxu0 0.0
    %2478 = vmatpush1.msra.mxu0 0.0
    %2479 = vmatprep.subr.mxu0 0.0
    %2480 = vmatpush1.msra.mxu0 0.0
    %2481 = vmatprep.subr.mxu0 0.0
    %2482 = vmatpush1.msra.mxu0 0.0
    %2483 = vmatprep.subr.mxu0 0.0
    %2484 = vmatpush1.msra.mxu0 0.0
    %2485 = vmatprep.subr.mxu0 0.0
    %2486 = vmatpush1.msra.mxu0 0.0
    %2487 = vmatprep.subr.mxu0 0.0
    %2488 = vmatpush1.msra.mxu0 0.0
    %2489 = vmatprep.subr.mxu0 0.0
    %2490 = vmatpush1.msra.mxu0 0.0
    %2491 = vmatprep.subr.mxu0 0.0
    %2492 = vmatpush1.msra.mxu0 0.0
    %2493 = vmatprep.subr.mxu0 0.0
    %2494 = vmatpush1.msra.mxu0 0.0
    %2495 = vmatprep.subr.mxu0 0.0
    %2496 = vmatpush1.msra.mxu0 0.0
    %2497 = vmatprep.mubr.f32.mxu0 0.0
    %2498 = vmatmul.mubr.f32.gmra.mrb[0].mxu0 %v2362
    %v2499 = vpop.f32.mrb[0].mxu0
    %v2500 = vadd.f32 0.0, %v2499
    %v2501 = vpop.f32.mrb[0].mxu0
    %2502 = vdwg.mxu0
    %v2503 = vmul.f32 %v2430, 0.0013020834
    %v2504 = vmul.f32 %v2500, 0.0013020834
    %v2505 = vmul.f32 %v2503, %v2503
    %v2506 = vsub.f32 %v2504, %v2505
    %v2507 = vmax.f32 %v2506, 0.0
    %v2508 = vadd.f32 %v2507, 1e-05
    %v2509 = vrsqrt.pop %v2508
    %v2510 = vmul.f32 %v1614, %v2509
    %v2511 = vmul.f32 %v2510, %v2503
    %v2512 = vsub.f32 %v1615, %v2511
    %vm2513 = vcmask 31744
    %v2515 = vsel %vm2513, %v2510, 0
    %v2518 = vsel %vm298, %v1613, 0
    %2520 = vmatprep.subr.mxu0 0.0
    %2521 = vmatpush1.msra.mxu0 %v2518
    %2522 = vmatprep.subr.mxu0 0.0
    %2523 = vmatpush1.msra.mxu0 0.0
    %2524 = vmatprep.subr.mxu0 0.0
    %2525 = vmatpush1.msra.mxu0 0.0
    %2526 = vmatprep.subr.mxu0 0.0
    %2527 = vmatpush1.msra.mxu0 0.0
    %2528 = vmatprep.subr.mxu0 0.0
    %2529 = vmatpush1.msra.mxu0 0.0
    %2530 = vmatprep.subr.mxu0 0.0
    %2531 = vmatpush1.msra.mxu0 0.0
    %2532 = vmatprep.subr.mxu0 0.0
    %2533 = vmatpush1.msra.mxu0 0.0
    %2534 = vmatprep.subr.mxu0 0.0
    %2535 = vmatpush1.msra.mxu0 0.0
    %2536 = vmatprep.subr.mxu0 0.0
    %2537 = vmatpush1.msra.mxu0 0.0
    %2538 = vmatprep.subr.mxu0 0.0
    %2539 = vmatpush1.msra.mxu0 0.0
    %2540 = vmatprep.subr.mxu0 0.0
    %2541 = vmatpush1.msra.mxu0 0.0
    %2542 = vmatprep.subr.mxu0 0.0
    %2543 = vmatpush1.msra.mxu0 0.0
    %2544 = vmatprep.subr.mxu0 0.0
    %2545 = vmatpush1.msra.mxu0 0.0
    %2546 = vmatprep.subr.mxu0 0.0
    %2547 = vmatpush1.msra.mxu0 0.0
    %2548 = vmatprep.subr.mxu0 0.0
    %2549 = vmatpush1.msra.mxu0 0.0
    %2550 = vmatprep.subr.mxu0 0.0
    %2551 = vmatpush1.msra.mxu0 0.0
    %2552 = vmatprep.subr.mxu0 0.0
    %2553 = vmatpush1.msra.mxu0 0.0
    %2554 = vmatprep.subr.mxu0 0.0
    %2555 = vmatpush1.msra.mxu0 0.0
    %2556 = vmatprep.subr.mxu0 0.0
    %2557 = vmatpush1.msra.mxu0 0.0
    %2558 = vmatprep.subr.mxu0 0.0
    %2559 = vmatpush1.msra.mxu0 0.0
    %2560 = vmatprep.subr.mxu0 0.0
    %2561 = vmatpush1.msra.mxu0 0.0
    %2562 = vmatprep.subr.mxu0 0.0
    %2563 = vmatpush1.msra.mxu0 0.0
    %2564 = vmatprep.subr.mxu0 0.0
    %2565 = vmatpush1.msra.mxu0 0.0
    %2566 = vmatprep.subr.mxu0 0.0
    %2567 = vmatpush1.msra.mxu0 0.0
    %2568 = vmatprep.subr.mxu0 0.0
    %2569 = vmatpush1.msra.mxu0 0.0
    %2570 = vmatprep.subr.mxu0 0.0
    %2571 = vmatpush1.msra.mxu0 0.0
    %2572 = vmatprep.subr.mxu0 0.0
    %2573 = vmatpush1.msra.mxu0 0.0
    %2574 = vmatprep.subr.mxu0 0.0
    %2575 = vmatpush1.msra.mxu0 0.0
    %2576 = vmatprep.subr.mxu0 0.0
    %2577 = vmatpush1.msra.mxu0 0.0
    %2578 = vmatprep.subr.mxu0 0.0
    %2579 = vmatpush1.msra.mxu0 0.0
    %2580 = vmatprep.subr.mxu0 0.0
    %2581 = vmatpush1.msra.mxu0 0.0
    %2582 = vmatprep.subr.mxu0 0.0
    %2583 = vmatpush1.msra.mxu0 0.0
    %2584 = vmatprep.mubr.f32.mxu0 0.0
    %2585 = vmatmul.mubr.f32.gmra.mrb[0].mxu0 %v2515
    %v2586 = vpop.f32.mrb[0].mxu0
    %v2587 = vadd.f32 0.0, %v2586
    %v2588 = vpop.f32.mrb[0].mxu0
    %2589 = vdwg.mxu0
    %v2591 = vsel %vm2513, %v2512, 0
    %2593 = vmatprep.subr.mxu0 0.0
    %2594 = vmatpush1.msra.mxu0 %v2518
    %2595 = vmatprep.subr.mxu0 0.0
    %2596 = vmatpush1.msra.mxu0 0.0
    %2597 = vmatprep.subr.mxu0 0.0
    %2598 = vmatpush1.msra.mxu0 0.0
    %2599 = vmatprep.subr.mxu0 0.0
    %2600 = vmatpush1.msra.mxu0 0.0
    %2601 = vmatprep.subr.mxu0 0.0
    %2602 = vmatpush1.msra.mxu0 0.0
    %2603 = vmatprep.subr.mxu0 0.0
    %2604 = vmatpush1.msra.mxu0 0.0
    %2605 = vmatprep.subr.mxu0 0.0
    %2606 = vmatpush1.msra.mxu0 0.0
    %2607 = vmatprep.subr.mxu0 0.0
    %2608 = vmatpush1.msra.mxu0 0.0
    %2609 = vmatprep.subr.mxu0 0.0
    %2610 = vmatpush1.msra.mxu0 0.0
    %2611 = vmatprep.subr.mxu0 0.0
    %2612 = vmatpush1.msra.mxu0 0.0
    %2613 = vmatprep.subr.mxu0 0.0
    %2614 = vmatpush1.msra.mxu0 0.0
    %2615 = vmatprep.subr.mxu0 0.0
    %2616 = vmatpush1.msra.mxu0 0.0
    %2617 = vmatprep.subr.mxu0 0.0
    %2618 = vmatpush1.msra.mxu0 0.0
    %2619 = vmatprep.subr.mxu0 0.0
    %2620 = vmatpush1.msra.mxu0 0.0
    %2621 = vmatprep.subr.mxu0 0.0
    %2622 = vmatpush1.msra.mxu0 0.0
    %2623 = vmatprep.subr.mxu0 0.0
    %2624 = vmatpush1.msra.mxu0 0.0
    %2625 = vmatprep.subr.mxu0 0.0
    %2626 = vmatpush1.msra.mxu0 0.0
    %2627 = vmatprep.subr.mxu0 0.0
    %2628 = vmatpush1.msra.mxu0 0.0
    %2629 = vmatprep.subr.mxu0 0.0
    %2630 = vmatpush1.msra.mxu0 0.0
    %2631 = vmatprep.subr.mxu0 0.0
    %2632 = vmatpush1.msra.mxu0 0.0
    %2633 = vmatprep.subr.mxu0 0.0
    %2634 = vmatpush1.msra.mxu0 0.0
    %2635 = vmatprep.subr.mxu0 0.0
    %2636 = vmatpush1.msra.mxu0 0.0
    %2637 = vmatprep.subr.mxu0 0.0
    %2638 = vmatpush1.msra.mxu0 0.0
    %2639 = vmatprep.subr.mxu0 0.0
    %2640 = vmatpush1.msra.mxu0 0.0
    %2641 = vmatprep.subr.mxu0 0.0
    %2642 = vmatpush1.msra.mxu0 0.0
    %2643 = vmatprep.subr.mxu0 0.0
    %2644 = vmatpush1.msra.mxu0 0.0
    %2645 = vmatprep.subr.mxu0 0.0
    %2646 = vmatpush1.msra.mxu0 0.0
    %2647 = vmatprep.subr.mxu0 0.0
    %2648 = vmatpush1.msra.mxu0 0.0
    %2649 = vmatprep.subr.mxu0 0.0
    %2650 = vmatpush1.msra.mxu0 0.0
    %2651 = vmatprep.subr.mxu0 0.0
    %2652 = vmatpush1.msra.mxu0 0.0
    %2653 = vmatprep.subr.mxu0 0.0
    %2654 = vmatpush1.msra.mxu0 0.0
    %2655 = vmatprep.subr.mxu0 0.0
    %2656 = vmatpush1.msra.mxu0 0.0
    %2657 = vmatprep.mubr.f32.mxu0 0.0
    %2658 = vmatmul.mubr.f32.gmra.mrb[0].mxu0 %v2591
    %v2659 = vpop.f32.mrb[0].mxu0
    %v2660 = vadd.f32 0.0, %v2659
    %v2661 = vpop.f32.mrb[0].mxu0
    %2662 = vdwg.mxu0
    %v2663 = vlaneseq
    %v2664 = vshrl.u32 %v2663, 7
    %v2665 = vsub.s32 0, %v2664
    %v2666 = vrot.slane %v2587, %v2665
    %v2667 = vmul.f32 %v2321, %v2666
    %v2668 = vmul.f32 %v2322, %v2666
    %v2669 = vmul.f32 %v2323, %v2666
    %v2670 = vmul.f32 %v2324, %v2666
    %v2671 = vlaneseq
    %v2672 = vshrl.u32 %v2671, 7
    %v2673 = vsub.s32 0, %v2672
    %v2674 = vrot.slane %v2660, %v2673
    %v2675 = vadd.f32 %v2667, %v2674
    %v2676 = vadd.f32 %v2668, %v2674
    %v2677 = vadd.f32 %v2669, %v2674
    %v2678 = vadd.f32 %v2670, %v2674
    %v2679 = vmax.f32 %v2675, 0.0
    %v2680 = vmax.f32 %v2676, 0.0
    %v2681 = vmax.f32 %v2677, 0.0
    %v2682 = vmax.f32 %v2678, 0.0
    %v2687 = vrot.slane %v2679, 1
    %v2688 = vrot.slane %v2680, 1
    %v2689 = vsel %vm214, %v2687, %v2688
    %v2690 = vrot.slane %v2681, 1
    %v2691 = vrot.slane %v2682, 1
    %v2692 = vsel %vm214, %v2690, %v2691
    %v2697 = vmax.f32 %v2679, %v2689
    %v2698 = vmax.f32 %v2680, %v2688
    %v2699 = vmax.f32 %v2681, %v2692
    %v2700 = vmax.f32 %v2682, %v2691
    %v2703 = vrot.slane %v2697, 1
    %v2704 = vrot.slane %v2699, 1
    %v2707 = vrot.slane %v2697, 2
    %v2708 = vrot.slane %v2699, 2
    %v2711 = vrot.slane %v2697, 3
    %v2712 = vrot.slane %v2699, 3
    %v2717 = vrot.slane %v2698, 4
    %v2718 = vrot.slane %v2700, 4
    %v2721 = vrot.slane %v2698, 5
    %v2722 = vrot.slane %v2700, 5
    %v2725 = vsel %vm1054, %v2697, %v2703
    %v2726 = vsel %vm1054, %v2699, %v2704
    %v2727 = vsel %vm1057, %v2725, %v2707
    %v2728 = vsel %vm1057, %v2726, %v2708
    %v2729 = vsel %vm845, %v2727, %v2711
    %v2730 = vsel %vm845, %v2728, %v2712
    %v2731 = vsel %vm298, %v2729, %v2717
    %v2732 = vsel %vm298, %v2730, %v2718
    %v2733 = vsel %vm270, %v2731, %v2721
    %v2734 = vsel %vm270, %v2732, %v2722
    %2737 = vrot.lane.b32.xlu0 %v2733, 32
    %v2738 = vpop.permute.xlu0 %2737
    %2739 = vrot.lane.b32.xlu0 %v2734, 32
    %v2740 = vpop.permute.xlu0 %2739
    %2743 = vrot.lane.b32.xlu0 %v2733, 64
    %v2744 = vpop.permute.xlu0 %2743
    %2745 = vrot.lane.b32.xlu0 %v2734, 64
    %v2746 = vpop.permute.xlu0 %2745
    %2749 = vrot.lane.b32.xlu0 %v2733, 96
    %v2750 = vpop.permute.xlu0 %2749
    %2751 = vrot.lane.b32.xlu0 %v2734, 96
    %v2752 = vpop.permute.xlu0 %2751
    %v2755 = vsel %vm182, %v2733, %v2738
    %v2756 = vsel %vm182, %v2734, %v2740
    %v2757 = vsel %vm187, %v2755, %v2744
    %v2758 = vsel %vm187, %v2756, %v2746
    %v2759 = vsel %vm637, %v2757, %v2750
    %v2760 = vsel %vm637, %v2758, %v2752
    %v2761 = vld [vmem:[#allocation12] sm:$0x1]
    %v2762 = vlaneseq
    %v2763 = vshrl.u32 %v2762, 7
    %v2764 = vsub.s32 0, %v2763
    %v2765 = vrot.slane %v2761, %v2764
    %v2766 = vmul.f32 %v2765, %v2759
    %v2767 = vmul.f32 %v2765, %v2760
    %v2768 = vld [vmem:[#allocation12 + $0x1] sm:$0x1]
    %v2769 = vlaneseq
    %v2770 = vshrl.u32 %v2769, 7
    %v2771 = vsub.s32 0, %v2770
    %v2772 = vrot.slane %v2768, %v2771
    %v2773 = vmul.f32 %v2772, %v2759
    %v2774 = vmul.f32 %v2772, %v2760
    %v2777 = vrot.slane %v2773, 1
    %v2778 = vrot.slane %v2774, 1
    %v2781 = vadd.f32 %v2766, %v2777
    %v2782 = vadd.f32 %v2767, %v2778
    %v2783 = vld [vmem:[#allocation12 + $0x2] sm:$0x1]
    %v2784 = vlaneseq
    %v2785 = vshrl.u32 %v2784, 7
    %v2786 = vsub.s32 0, %v2785
    %v2787 = vrot.slane %v2783, %v2786
    %v2788 = vmul.f32 %v2787, %v2759
    %v2789 = vmul.f32 %v2787, %v2760
    %v2792 = vrot.slane %v2788, 2
    %v2793 = vrot.slane %v2789, 2
    %v2796 = vadd.f32 %v2781, %v2792
    %v2797 = vadd.f32 %v2782, %v2793
    %v2798 = vld [vmem:[#allocation12 + $0x3] sm:$0x1]
    %v2799 = vlaneseq
    %v2800 = vshrl.u32 %v2799, 7
    %v2801 = vsub.s32 0, %v2800
    %v2802 = vrot.slane %v2798, %v2801
    %v2803 = vmul.f32 %v2802, %v2759
    %v2804 = vmul.f32 %v2802, %v2760
    %v2807 = vrot.slane %v2803, 3
    %v2808 = vrot.slane %v2804, 3
    %v2811 = vadd.f32 %v2796, %v2807
    %v2812 = vadd.f32 %v2797, %v2808
    %v2813 = vld [vmem:[#allocation12 + $0x4] sm:$0x1]
    %v2814 = vlaneseq
    %v2815 = vshrl.u32 %v2814, 7
    %v2816 = vsub.s32 0, %v2815
    %v2817 = vrot.slane %v2813, %v2816
    %v2818 = vmul.f32 %v2817, %v2759
    %v2819 = vmul.f32 %v2817, %v2760
    %v2822 = vrot.slane %v2818, 4
    %v2823 = vrot.slane %v2819, 4
    %v2826 = vadd.f32 %v2811, %v2822
    %v2827 = vadd.f32 %v2812, %v2823
    %v2828 = vsel %vm182, %v2750, %v2733
    %v2829 = vsel %vm182, %v2752, %v2734
    %v2830 = vsel %vm187, %v2828, %v2738
    %v2831 = vsel %vm187, %v2829, %v2740
    %v2832 = vsel %vm637, %v2830, %v2744
    %v2833 = vsel %vm637, %v2831, %v2746
    %v2834 = vld [vmem:[#allocation12 + $0x5] sm:$0x1]
    %v2835 = vlaneseq
    %v2836 = vshrl.u32 %v2835, 7
    %v2837 = vsub.s32 0, %v2836
    %v2838 = vrot.slane %v2834, %v2837
    %v2839 = vmul.f32 %v2838, %v2832
    %v2840 = vmul.f32 %v2838, %v2833
    %v2841 = vadd.f32 %v2826, %v2839
    %v2842 = vadd.f32 %v2827, %v2840
    %v2843 = vld [vmem:[#allocation12 + $0x6] sm:$0x1]
    %v2844 = vlaneseq
    %v2845 = vshrl.u32 %v2844, 7
    %v2846 = vsub.s32 0, %v2845
    %v2847 = vrot.slane %v2843, %v2846
    %v2848 = vmul.f32 %v2847, %v2832
    %v2849 = vmul.f32 %v2847, %v2833
    %v2852 = vrot.slane %v2848, 1
    %v2853 = vrot.slane %v2849, 1
    %v2856 = vadd.f32 %v2841, %v2852
    %v2857 = vadd.f32 %v2842, %v2853
    %v2858 = vld [vmem:[#allocation12 + $0x7] sm:$0x1]
    %v2859 = vlaneseq
    %v2860 = vshrl.u32 %v2859, 7
    %v2861 = vsub.s32 0, %v2860
    %v2862 = vrot.slane %v2858, %v2861
    %v2863 = vmul.f32 %v2862, %v2832
    %v2864 = vmul.f32 %v2862, %v2833
    %v2867 = vrot.slane %v2863, 2
    %v2868 = vrot.slane %v2864, 2
    %v2871 = vadd.f32 %v2856, %v2867
    %v2872 = vadd.f32 %v2857, %v2868
    %v2873 = vld [vmem:[#allocation12 + $0x8] sm:$0x1]
    %v2874 = vlaneseq
    %v2875 = vshrl.u32 %v2874, 7
    %v2876 = vsub.s32 0, %v2875
    %v2877 = vrot.slane %v2873, %v2876
    %v2878 = vmul.f32 %v2877, %v2832
    %v2879 = vmul.f32 %v2877, %v2833
    %v2882 = vrot.slane %v2878, 3
    %v2883 = vrot.slane %v2879, 3
    %v2886 = vadd.f32 %v2871, %v2882
    %v2887 = vadd.f32 %v2872, %v2883
    %v2888 = vld [vmem:[#allocation12 + $0x9] sm:$0x1]
    %v2889 = vlaneseq
    %v2890 = vshrl.u32 %v2889, 7
    %v2891 = vsub.s32 0, %v2890
    %v2892 = vrot.slane %v2888, %v2891
    %v2893 = vmul.f32 %v2892, %v2832
    %v2894 = vmul.f32 %v2892, %v2833
    %v2897 = vrot.slane %v2893, 4
    %v2898 = vrot.slane %v2894, 4
    %v2901 = vadd.f32 %v2886, %v2897
    %v2902 = vadd.f32 %v2887, %v2898
    %v2903 = vsel %vm182, %v2744, %v2750
    %v2904 = vsel %vm182, %v2746, %v2752
    %v2905 = vsel %vm187, %v2903, %v2733
    %v2906 = vsel %vm187, %v2904, %v2734
    %v2907 = vsel %vm637, %v2905, %v2738
    %v2908 = vsel %vm637, %v2906, %v2740
    %v2909 = vld [vmem:[#allocation12 + $0xa] sm:$0x1]
    %v2910 = vlaneseq
    %v2911 = vshrl.u32 %v2910, 7
    %v2912 = vsub.s32 0, %v2911
    %v2913 = vrot.slane %v2909, %v2912
    %v2914 = vmul.f32 %v2913, %v2907
    %v2915 = vmul.f32 %v2913, %v2908
    %v2916 = vadd.f32 %v2901, %v2914
    %v2917 = vadd.f32 %v2902, %v2915
    %v2918 = vld [vmem:[#allocation12 + $0xb] sm:$0x1]
    %v2919 = vlaneseq
    %v2920 = vshrl.u32 %v2919, 7
    %v2921 = vsub.s32 0, %v2920
    %v2922 = vrot.slane %v2918, %v2921
    %v2923 = vmul.f32 %v2922, %v2907
    %v2924 = vmul.f32 %v2922, %v2908
    %v2927 = vrot.slane %v2923, 1
    %v2928 = vrot.slane %v2924, 1
    %v2931 = vadd.f32 %v2916, %v2927
    %v2932 = vadd.f32 %v2917, %v2928
    %v2933 = vld [vmem:[#allocation12 + $0xc] sm:$0x1]
    %v2934 = vlaneseq
    %v2935 = vshrl.u32 %v2934, 7
    %v2936 = vsub.s32 0, %v2935
    %v2937 = vrot.slane %v2933, %v2936
    %v2938 = vmul.f32 %v2937, %v2907
    %v2939 = vmul.f32 %v2937, %v2908
    %v2942 = vrot.slane %v2938, 2
    %v2943 = vrot.slane %v2939, 2
    %v2946 = vadd.f32 %v2931, %v2942
    %v2947 = vadd.f32 %v2932, %v2943
    %v2948 = vld [vmem:[#allocation12 + $0xd] sm:$0x1]
    %v2949 = vlaneseq
    %v2950 = vshrl.u32 %v2949, 7
    %v2951 = vsub.s32 0, %v2950
    %v2952 = vrot.slane %v2948, %v2951
    %v2953 = vmul.f32 %v2952, %v2907
    %v2954 = vmul.f32 %v2952, %v2908
    %v2957 = vrot.slane %v2953, 3
    %v2958 = vrot.slane %v2954, 3
    %v2961 = vadd.f32 %v2946, %v2957
    %v2962 = vadd.f32 %v2947, %v2958
    %v2963 = vld [vmem:[#allocation12 + $0xe] sm:$0x1]
    %v2964 = vlaneseq
    %v2965 = vshrl.u32 %v2964, 7
    %v2966 = vsub.s32 0, %v2965
    %v2967 = vrot.slane %v2963, %v2966
    %v2968 = vmul.f32 %v2967, %v2907
    %v2969 = vmul.f32 %v2967, %v2908
    %v2972 = vrot.slane %v2968, 4
    %v2973 = vrot.slane %v2969, 4
    %v2976 = vadd.f32 %v2961, %v2972
    %v2977 = vadd.f32 %v2962, %v2973
    %v2978 = vsel %vm182, %v2738, %v2744
    %v2979 = vsel %vm182, %v2740, %v2746
    %v2980 = vsel %vm187, %v2978, %v2750
    %v2981 = vsel %vm187, %v2979, %v2752
    %v2982 = vsel %vm637, %v2980, %v2733
    %v2983 = vsel %vm637, %v2981, %v2734
    %v2984 = vld [vmem:[#allocation12 + $0xf] sm:$0x1]
    %v2985 = vlaneseq
    %v2986 = vshrl.u32 %v2985, 7
    %v2987 = vsub.s32 0, %v2986
    %v2988 = vrot.slane %v2984, %v2987
    %v2989 = vmul.f32 %v2988, %v2982
    %v2990 = vmul.f32 %v2988, %v2983
    %v2991 = vadd.f32 %v2976, %v2989
    %v2992 = vadd.f32 %v2977, %v2990
    %v2993 = vld [vmem:[#allocation12 + $0x10] sm:$0x1]
    %v2994 = vlaneseq
    %v2995 = vshrl.u32 %v2994, 7
    %v2996 = vsub.s32 0, %v2995
    %v2997 = vrot.slane %v2993, %v2996
    %v2998 = vmul.f32 %v2997, %v2982
    %v2999 = vmul.f32 %v2997, %v2983
    %v3002 = vrot.slane %v2998, 1
    %v3003 = vrot.slane %v2999, 1
    %v3006 = vadd.f32 %v2991, %v3002
    %v3007 = vadd.f32 %v2992, %v3003
    %v3008 = vld [vmem:[#allocation12 + $0x11] sm:$0x1]
    %v3009 = vlaneseq
    %v3010 = vshrl.u32 %v3009, 7
    %v3011 = vsub.s32 0, %v3010
    %v3012 = vrot.slane %v3008, %v3011
    %v3013 = vmul.f32 %v3012, %v2982
    %v3014 = vmul.f32 %v3012, %v2983
    %v3017 = vrot.slane %v3013, 2
    %v3018 = vrot.slane %v3014, 2
    %v3021 = vadd.f32 %v3006, %v3017
    %v3022 = vadd.f32 %v3007, %v3018
    %v3023 = vld [vmem:[#allocation12 + $0x12] sm:$0x1]
    %v3024 = vlaneseq
    %v3025 = vshrl.u32 %v3024, 7
    %v3026 = vsub.s32 0, %v3025
    %v3027 = vrot.slane %v3023, %v3026
    %v3028 = vmul.f32 %v3027, %v2982
    %v3029 = vmul.f32 %v3027, %v2983
    %v3032 = vrot.slane %v3028, 3
    %v3033 = vrot.slane %v3029, 3
    %v3036 = vadd.f32 %v3021, %v3032
    %v3037 = vadd.f32 %v3022, %v3033
    %v3038 = vld [vmem:[#allocation12 + $0x13] sm:$0x1]
    %v3039 = vlaneseq
    %v3040 = vshrl.u32 %v3039, 7
    %v3041 = vsub.s32 0, %v3040
    %v3042 = vrot.slane %v3038, %v3041
    %v3043 = vmul.f32 %v3042, %v2982
    %v3044 = vmul.f32 %v3042, %v2983
    %v3047 = vrot.slane %v3043, 4
    %v3048 = vrot.slane %v3044, 4
    %v3051 = vadd.f32 %v3036, %v3047
    %v3052 = vadd.f32 %v3037, %v3048
    %v3053 = vsel %vm1057, %v3051, 0.0
    %v3054 = vrot.slane %v3053, 4
    %v3055 = vadd.f32 %v3053, %v3054
    %v3056 = vrot.slane %v3055, 2
    %v3057 = vadd.f32 %v3055, %v3056
    %v3058 = vrot.slane %v3057, 1
    %v3059 = vadd.f32 %v3057, %v3058
    %v3060 = vsel %vm1057, %v3052, 0.0
    %v3061 = vrot.slane %v3060, 4
    %v3062 = vadd.f32 %v3060, %v3061
    %v3063 = vrot.slane %v3062, 2
    %v3064 = vadd.f32 %v3062, %v3063
    %v3065 = vrot.slane %v3064, 1
    %v3066 = vadd.f32 %v3064, %v3065
    %v3067 = vadd.f32 %v3059, %v3066
    %v3068 = vmul.f32 %v3051, %v3051
    %v3069 = vmul.f32 %v3052, %v3052
    %v3070 = vsel %vm1057, %v3068, 0.0
    %v3071 = vrot.slane %v3070, 4
    %v3072 = vadd.f32 %v3070, %v3071
    %v3073 = vrot.slane %v3072, 2
    %v3074 = vadd.f32 %v3072, %v3073
    %v3075 = vrot.slane %v3074, 1
    %v3076 = vadd.f32 %v3074, %v3075
    %v3077 = vsel %vm1057, %v3069, 0.0
    %v3078 = vrot.slane %v3077, 4
    %v3079 = vadd.f32 %v3077, %v3078
    %v3080 = vrot.slane %v3079, 2
    %v3081 = vadd.f32 %v3079, %v3080
    %v3082 = vrot.slane %v3081, 1
    %v3083 = vadd.f32 %v3081, %v3082
    %v3084 = vadd.f32 %v3076, %v3083
    %3085 = vmatprep.subr.mxu0 0.0
    %3086 = vmatpush1.msra.mxu0 %v1597
    %3087 = vmatprep.subr.mxu0 0.0
    %3088 = vmatpush1.msra.mxu0 %v1598
    %3089 = vmatprep.subr.mxu0 0.0
    %3090 = vmatpush1.msra.mxu0 %v1599
    %3091 = vmatprep.subr.mxu0 0.0
    %3092 = vmatpush1.msra.mxu0 %v1600
    %3093 = vmatprep.subr.mxu0 0.0
    %3094 = vmatpush1.msra.mxu0 %v1601
    %3095 = vmatprep.subr.mxu0 0.0
    %3096 = vmatpush1.msra.mxu0 %v1602
    %3097 = vmatprep.subr.mxu0 0.0
    %3098 = vmatpush1.msra.mxu0 %v1603
    %3099 = vmatprep.subr.mxu0 0.0
    %3100 = vmatpush1.msra.mxu0 %v1604
    %3101 = vmatprep.subr.mxu0 0.0
    %3102 = vmatpush1.msra.mxu0 %v1605
    %3103 = vmatprep.subr.mxu0 0.0
    %3104 = vmatpush1.msra.mxu0 %v1606
    %3105 = vmatprep.subr.mxu0 0.0
    %3106 = vmatpush1.msra.mxu0 %v1607
    %3107 = vmatprep.subr.mxu0 0.0
    %3108 = vmatpush1.msra.mxu0 %v1608
    %3109 = vmatprep.subr.mxu0 0.0
    %3110 = vmatpush1.msra.mxu0 %v1609
    %3111 = vmatprep.subr.mxu0 0.0
    %3112 = vmatpush1.msra.mxu0 %v1610
    %3113 = vmatprep.subr.mxu0 0.0
    %3114 = vmatpush1.msra.mxu0 %v1611
    %3115 = vmatprep.subr.mxu0 0.0
    %3116 = vmatpush1.msra.mxu0 %v1612
    %3117 = vmatprep.subr.mxu0 0.0
    %3118 = vmatpush1.msra.mxu0 0.0
    %3119 = vmatprep.subr.mxu0 0.0
    %3120 = vmatpush1.msra.mxu0 0.0
    %3121 = vmatprep.subr.mxu0 0.0
    %3122 = vmatpush1.msra.mxu0 0.0
    %3123 = vmatprep.subr.mxu0 0.0
    %3124 = vmatpush1.msra.mxu0 0.0
    %3125 = vmatprep.subr.mxu0 0.0
    %3126 = vmatpush1.msra.mxu0 0.0
    %3127 = vmatprep.subr.mxu0 0.0
    %3128 = vmatpush1.msra.mxu0 0.0
    %3129 = vmatprep.subr.mxu0 0.0
    %3130 = vmatpush1.msra.mxu0 0.0
    %3131 = vmatprep.subr.mxu0 0.0
    %3132 = vmatpush1.msra.mxu0 0.0
    %3133 = vmatprep.subr.mxu0 0.0
    %3134 = vmatpush1.msra.mxu0 0.0
    %3135 = vmatprep.subr.mxu0 0.0
    %3136 = vmatpush1.msra.mxu0 0.0
    %3137 = vmatprep.subr.mxu0 0.0
    %3138 = vmatpush1.msra.mxu0 0.0
    %3139 = vmatprep.subr.mxu0 0.0
    %3140 = vmatpush1.msra.mxu0 0.0
    %3141 = vmatprep.subr.mxu0 0.0
    %3142 = vmatpush1.msra.mxu0 0.0
    %3143 = vmatprep.subr.mxu0 0.0
    %3144 = vmatpush1.msra.mxu0 0.0
    %3145 = vmatprep.subr.mxu0 0.0
    %3146 = vmatpush1.msra.mxu0 0.0
    %3147 = vmatprep.subr.mxu0 0.0
    %3148 = vmatpush1.msra.mxu0 0.0
    %3149 = vmatprep.mubr.f32.mxu0 0.0
    %3150 = vmatmul.mubr.f32.gmra.mrb[0].mxu0 %v3067
    %v3151 = vpop.f32.mrb[0].mxu0
    %v3152 = vadd.f32 0.0, %v3151
    %v3153 = vpop.f32.mrb[0].mxu0
    %3154 = vdwg.mxu0
    %3155 = vmatprep.subr.mxu0 0.0
    %3156 = vmatpush1.msra.mxu0 %v1597
    %3157 = vmatprep.subr.mxu0 0.0
    %3158 = vmatpush1.msra.mxu0 %v1598
    %3159 = vmatprep.subr.mxu0 0.0
    %3160 = vmatpush1.msra.mxu0 %v1599
    %3161 = vmatprep.subr.mxu0 0.0
    %3162 = vmatpush1.msra.mxu0 %v1600
    %3163 = vmatprep.subr.mxu0 0.0
    %3164 = vmatpush1.msra.mxu0 %v1601
    %3165 = vmatprep.subr.mxu0 0.0
    %3166 = vmatpush1.msra.mxu0 %v1602
    %3167 = vmatprep.subr.mxu0 0.0
    %3168 = vmatpush1.msra.mxu0 %v1603
    %3169 = vmatprep.subr.mxu0 0.0
    %3170 = vmatpush1.msra.mxu0 %v1604
    %3171 = vmatprep.subr.mxu0 0.0
    %3172 = vmatpush1.msra.mxu0 %v1605
    %3173 = vmatprep.subr.mxu0 0.0
    %3174 = vmatpush1.msra.mxu0 %v1606
    %3175 = vmatprep.subr.mxu0 0.0
    %3176 = vmatpush1.msra.mxu0 %v1607
    %3177 = vmatprep.subr.mxu0 0.0
    %3178 = vmatpush1.msra.mxu0 %v1608
    %3179 = vmatprep.subr.mxu0 0.0
    %3180 = vmatpush1.msra.mxu0 %v1609
    %3181 = vmatprep.subr.mxu0 0.0
    %3182 = vmatpush1.msra.mxu0 %v1610
    %3183 = vmatprep.subr.mxu0 0.0
    %3184 = vmatpush1.msra.mxu0 %v1611
    %3185 = vmatprep.subr.mxu0 0.0
    %3186 = vmatpush1.msra.mxu0 %v1612
    %3187 = vmatprep.subr.mxu0 0.0
    %3188 = vmatpush1.msra.mxu0 0.0
    %3189 = vmatprep.subr.mxu0 0.0
    %3190 = vmatpush1.msra.mxu0 0.0
    %3191 = vmatprep.subr.mxu0 0.0
    %3192 = vmatpush1.msra.mxu0 0.0
    %3193 = vmatprep.subr.mxu0 0.0
    %3194 = vmatpush1.msra.mxu0 0.0
    %3195 = vmatprep.subr.mxu0 0.0
    %3196 = vmatpush1.msra.mxu0 0.0
    %3197 = vmatprep.subr.mxu0 0.0
    %3198 = vmatpush1.msra.mxu0 0.0
    %3199 = vmatprep.subr.mxu0 0.0
    %3200 = vmatpush1.msra.mxu0 0.0
    %3201 = vmatprep.subr.mxu0 0.0
    %3202 = vmatpush1.msra.mxu0 0.0
    %3203 = vmatprep.subr.mxu0 0.0
    %3204 = vmatpush1.msra.mxu0 0.0
    %3205 = vmatprep.subr.mxu0 0.0
    %3206 = vmatpush1.msra.mxu0 0.0
    %3207 = vmatprep.subr.mxu0 0.0
    %3208 = vmatpush1.msra.mxu0 0.0
    %3209 = vmatprep.subr.mxu0 0.0
    %3210 = vmatpush1.msra.mxu0 0.0
    %3211 = vmatprep.subr.mxu0 0.0
    %3212 = vmatpush1.msra.mxu0 0.0
    %3213 = vmatprep.subr.mxu0 0.0
    %3214 = vmatpush1.msra.mxu0 0.0
    %3215 = vmatprep.subr.mxu0 0.0
    %3216 = vmatpush1.msra.mxu0 0.0
    %3217 = vmatprep.subr.mxu0 0.0
    %3218 = vmatpush1.msra.mxu0 0.0
    %3219 = vmatprep.mubr.f32.mxu0 0.0
    %3220 = vmatmul.mubr.f32.gmra.mrb[0].mxu0 %v3084
    %v3221 = vpop.f32.mrb[0].mxu0
    %v3222 = vadd.f32 0.0, %v3221
    %v3223 = vpop.f32.mrb[0].mxu0
    %3224 = vdwg.mxu0
    %v3225 = vmul.f32 %v3152, 0.0078125
    %v3226 = vmul.f32 %v3222, 0.0078125
    %v3227 = vmul.f32 %v3225, %v3225
    %v3228 = vsub.f32 %v3226, %v3227
    %v3229 = vmax.f32 %v3228, 0.0
    %v3230 = vadd.f32 %v3229, 1e-05
    %v3231 = vrsqrt.pop %v3230
    %v3232 = vmul.f32 %v1616, %v3231
    %v3233 = vmul.f32 %v3232, %v3225
    %v3234 = vsub.f32 %v1617, %v3233
    %v3236 = vsel %vm2513, %v3232, 0
    %3238 = vmatprep.subr.mxu0 0.0
    %3239 = vmatpush1.msra.mxu0 %v2518
    %3240 = vmatprep.subr.mxu0 0.0
    %3241 = vmatpush1.msra.mxu0 0.0
    %3242 = vmatprep.subr.mxu0 0.0
    %3243 = vmatpush1.msra.mxu0 0.0
    %3244 = vmatprep.subr.mxu0 0.0
    %3245 = vmatpush1.msra.mxu0 0.0
    %3246 = vmatprep.subr.mxu0 0.0
    %3247 = vmatpush1.msra.mxu0 0.0
    %3248 = vmatprep.subr.mxu0 0.0
    %3249 = vmatpush1.msra.mxu0 0.0
    %3250 = vmatprep.subr.mxu0 0.0
    %3251 = vmatpush1.msra.mxu0 0.0
    %3252 = vmatprep.subr.mxu0 0.0
    %3253 = vmatpush1.msra.mxu0 0.0
    %3254 = vmatprep.subr.mxu0 0.0
    %3255 = vmatpush1.msra.mxu0 0.0
    %3256 = vmatprep.subr.mxu0 0.0
    %3257 = vmatpush1.msra.mxu0 0.0
    %3258 = vmatprep.subr.mxu0 0.0
    %3259 = vmatpush1.msra.mxu0 0.0
    %3260 = vmatprep.subr.mxu0 0.0
    %3261 = vmatpush1.msra.mxu0 0.0
    %3262 = vmatprep.subr.mxu0 0.0
    %3263 = vmatpush1.msra.mxu0 0.0
    %3264 = vmatprep.subr.mxu0 0.0
    %3265 = vmatpush1.msra.mxu0 0.0
    %3266 = vmatprep.subr.mxu0 0.0
    %3267 = vmatpush1.msra.mxu0 0.0
    %3268 = vmatprep.subr.mxu0 0.0
    %3269 = vmatpush1.msra.mxu0 0.0
    %3270 = vmatprep.subr.mxu0 0.0
    %3271 = vmatpush1.msra.mxu0 0.0
    %3272 = vmatprep.subr.mxu0 0.0
    %3273 = vmatpush1.msra.mxu0 0.0
    %3274 = vmatprep.subr.mxu0 0.0
    %3275 = vmatpush1.msra.mxu0 0.0
    %3276 = vmatprep.subr.mxu0 0.0
    %3277 = vmatpush1.msra.mxu0 0.0
    %3278 = vmatprep.subr.mxu0 0.0
    %3279 = vmatpush1.msra.mxu0 0.0
    %3280 = vmatprep.subr.mxu0 0.0
    %3281 = vmatpush1.msra.mxu0 0.0
    %3282 = vmatprep.subr.mxu0 0.0
    %3283 = vmatpush1.msra.mxu0 0.0
    %3284 = vmatprep.subr.mxu0 0.0
    %3285 = vmatpush1.msra.mxu0 0.0
    %3286 = vmatprep.subr.mxu0 0.0
    %3287 = vmatpush1.msra.mxu0 0.0
    %3288 = vmatprep.subr.mxu0 0.0
    %3289 = vmatpush1.msra.mxu0 0.0
    %3290 = vmatprep.subr.mxu0 0.0
    %3291 = vmatpush1.msra.mxu0 0.0
    %3292 = vmatprep.subr.mxu0 0.0
    %3293 = vmatpush1.msra.mxu0 0.0
    %3294 = vmatprep.subr.mxu0 0.0
    %3295 = vmatpush1.msra.mxu0 0.0
    %3296 = vmatprep.subr.mxu0 0.0
    %3297 = vmatpush1.msra.mxu0 0.0
    %3298 = vmatprep.subr.mxu0 0.0
    %3299 = vmatpush1.msra.mxu0 0.0
    %3300 = vmatprep.subr.mxu0 0.0
    %3301 = vmatpush1.msra.mxu0 0.0
    %3302 = vmatprep.mubr.f32.mxu0 0.0
    %3303 = vmatmul.mubr.f32.gmra.mrb[0].mxu0 %v3236
    %v3304 = vpop.f32.mrb[0].mxu0
    %v3305 = vadd.f32 0.0, %v3304
    %v3306 = vpop.f32.mrb[0].mxu0
    %3307 = vdwg.mxu0
    %v3309 = vsel %vm2513, %v3234, 0
    %3311 = vmatprep.subr.mxu0 0.0
    %3312 = vmatpush1.msra.mxu0 %v2518
    %3313 = vmatprep.subr.mxu0 0.0
    %3314 = vmatpush1.msra.mxu0 0.0
    %3315 = vmatprep.subr.mxu0 0.0
    %3316 = vmatpush1.msra.mxu0 0.0
    %3317 = vmatprep.subr.mxu0 0.0
    %3318 = vmatpush1.msra.mxu0 0.0
    %3319 = vmatprep.subr.mxu0 0.0
    %3320 = vmatpush1.msra.mxu0 0.0
    %3321 = vmatprep.subr.mxu0 0.0
    %3322 = vmatpush1.msra.mxu0 0.0
    %3323 = vmatprep.subr.mxu0 0.0
    %3324 = vmatpush1.msra.mxu0 0.0
    %3325 = vmatprep.subr.mxu0 0.0
    %3326 = vmatpush1.msra.mxu0 0.0
    %3327 = vmatprep.subr.mxu0 0.0
    %3328 = vmatpush1.msra.mxu0 0.0
    %3329 = vmatprep.subr.mxu0 0.0
    %3330 = vmatpush1.msra.mxu0 0.0
    %3331 = vmatprep.subr.mxu0 0.0
    %3332 = vmatpush1.msra.mxu0 0.0
    %3333 = vmatprep.subr.mxu0 0.0
    %3334 = vmatpush1.msra.mxu0 0.0
    %3335 = vmatprep.subr.mxu0 0.0
    %3336 = vmatpush1.msra.mxu0 0.0
    %3337 = vmatprep.subr.mxu0 0.0
    %3338 = vmatpush1.msra.mxu0 0.0
    %3339 = vmatprep.subr.mxu0 0.0
    %3340 = vmatpush1.msra.mxu0 0.0
    %3341 = vmatprep.subr.mxu0 0.0
    %3342 = vmatpush1.msra.mxu0 0.0
    %3343 = vmatprep.subr.mxu0 0.0
    %3344 = vmatpush1.msra.mxu0 0.0
    %3345 = vmatprep.subr.mxu0 0.0
    %3346 = vmatpush1.msra.mxu0 0.0
    %3347 = vmatprep.subr.mxu0 0.0
    %3348 = vmatpush1.msra.mxu0 0.0
    %3349 = vmatprep.subr.mxu0 0.0
    %3350 = vmatpush1.msra.mxu0 0.0
    %3351 = vmatprep.subr.mxu0 0.0
    %3352 = vmatpush1.msra.mxu0 0.0
    %3353 = vmatprep.subr.mxu0 0.0
    %3354 = vmatpush1.msra.mxu0 0.0
    %3355 = vmatprep.subr.mxu0 0.0
    %3356 = vmatpush1.msra.mxu0 0.0
    %3357 = vmatprep.subr.mxu0 0.0
    %3358 = vmatpush1.msra.mxu0 0.0
    %3359 = vmatprep.subr.mxu0 0.0
    %3360 = vmatpush1.msra.mxu0 0.0
    %3361 = vmatprep.subr.mxu0 0.0
    %3362 = vmatpush1.msra.mxu0 0.0
    %3363 = vmatprep.subr.mxu0 0.0
    %3364 = vmatpush1.msra.mxu0 0.0
    %3365 = vmatprep.subr.mxu0 0.0
    %3366 = vmatpush1.msra.mxu0 0.0
    %3367 = vmatprep.subr.mxu0 0.0
    %3368 = vmatpush1.msra.mxu0 0.0
    %3369 = vmatprep.subr.mxu0 0.0
    %3370 = vmatpush1.msra.mxu0 0.0
    %3371 = vmatprep.subr.mxu0 0.0
    %3372 = vmatpush1.msra.mxu0 0.0
    %3373 = vmatprep.subr.mxu0 0.0
    %3374 = vmatpush1.msra.mxu0 0.0
    %3375 = vmatprep.mubr.f32.mxu0 0.0
    %3376 = vmatmul.mubr.f32.gmra.mrb[0].mxu0 %v3309
    %v3377 = vpop.f32.mrb[0].mxu0
    %v3378 = vadd.f32 0.0, %v3377
    %v3379 = vpop.f32.mrb[0].mxu0
    %3380 = vdwg.mxu0
    %v3381 = vlaneseq
    %v3382 = vshrl.u32 %v3381, 7
    %v3383 = vsub.s32 0, %v3382
    %v3384 = vrot.slane %v3305, %v3383
    %v3385 = vmul.f32 %v3051, %v3384
    %v3386 = vmul.f32 %v3052, %v3384
    %v3387 = vlaneseq
    %v3388 = vshrl.u32 %v3387, 7
    %v3389 = vsub.s32 0, %v3388
    %v3390 = vrot.slane %v3378, %v3389
    %v3391 = vadd.f32 %v3385, %v3390
    %v3392 = vadd.f32 %v3386, %v3390
    %v3393 = vmax.f32 %v3391, 0.0
    %v3394 = vmax.f32 %v3392, 0.0
    %v3395 = vsel %vm1057, %v3393, -inf
    %v3396 = vrot.slane %v3395, 4
    %v3397 = vmax.f32 %v3395, %v3396
    %v3398 = vrot.slane %v3397, 2
    %v3399 = vmax.f32 %v3397, %v3398
    %v3400 = vrot.slane %v3399, 1
    %v3401 = vmax.f32 %v3399, %v3400
    %v3402 = vsel %vm1057, %v3394, -inf
    %v3403 = vrot.slane %v3402, 4
    %v3404 = vmax.f32 %v3402, %v3403
    %v3405 = vrot.slane %v3404, 2
    %v3406 = vmax.f32 %v3404, %v3405
    %v3407 = vrot.slane %v3406, 1
    %v3408 = vmax.f32 %v3406, %v3407
    %3411 = vrot.lane.b32.xlu0 %v3401, 96
    %v3412 = vpop.permute.xlu0 %3411
    %3413 = vrot.lane.b32.xlu0 %v3408, 96
    %v3414 = vpop.permute.xlu0 %3413
    %v3417 = vadd.f32 %v3401, %v3412
    %v3418 = vadd.f32 %v3408, %v3414
    %3419 = vrot.lane.b32.xlu0 %v3401, 64
    %v3420 = vpop.permute.xlu0 %3419
    %3421 = vrot.lane.b32.xlu0 %v3408, 64
    %v3422 = vpop.permute.xlu0 %3421
    %v3425 = vadd.f32 %v3417, %v3420
    %v3426 = vadd.f32 %v3418, %v3422
    %3427 = vrot.lane.b32.xlu0 %v3401, 32
    %v3428 = vpop.permute.xlu0 %3427
    %3429 = vrot.lane.b32.xlu0 %v3408, 32
    %v3430 = vpop.permute.xlu0 %3429
    %v3433 = vadd.f32 %v3425, %v3428
    %v3434 = vadd.f32 %v3426, %v3430
    %v3435 = vmul.f32 %v3433, 0.25
    %v3436 = vmul.f32 %v3434, 0.25
    %v3437 = vmul.f32 %v1595, %v3435
    %v3438 = vmul.f32 %v1596, %v3436
    %v3439 = vld [vmem:[%s12] sm:$0xff]
    %v3440 = vld [vmem:[%s12 + $0x8] sm:$0xff]
    %v3441 = vld [vmem:[%s12 + $0x10] sm:$0xff]
    %v3442 = vld [vmem:[%s12 + $0x18] sm:$0xff]
    %v3443 = vld [vmem:[%s13] sm:$0x1]
    %v3445 = vlaneseq
    %v3446 = vshrl.u32 %v3445, 7
    %v3447 = vsub.s32 0, %v3446
    %v3448 = vrot.slane %v3443, %v3447
    %v3452 = vrot.slane %v3438, 7
    %vm3453 = vcmask 1041409
    %v3454 = vsel %vm3453, %v3452, %v3437
    %v3455 = vsel %vm182, %v3454, 0
    %3457 = vmatprep.subr.mxu0 0.0
    %3458 = vmatpush1.msra.mxu0 %v3439
    %3459 = vmatprep.subr.mxu0 0.0
    %3460 = vmatpush1.msra.mxu0 %v3440
    %3461 = vmatprep.subr.mxu0 0.0
    %3462 = vmatpush1.msra.mxu0 %v3441
    %3463 = vmatprep.subr.mxu0 0.0
    %3464 = vmatpush1.msra.mxu0 %v3442
    %3465 = vmatprep.subr.mxu0 0.0
    %3466 = vmatpush1.msra.mxu0 0.0
    %3467 = vmatprep.subr.mxu0 0.0
    %3468 = vmatpush1.msra.mxu0 0.0
    %3469 = vmatprep.subr.mxu0 0.0
    %3470 = vmatpush1.msra.mxu0 0.0
    %3471 = vmatprep.subr.mxu0 0.0
    %3472 = vmatpush1.msra.mxu0 0.0
    %3473 = vmatprep.subr.mxu0 0.0
    %3474 = vmatpush1.msra.mxu0 0.0
    %3475 = vmatprep.subr.mxu0 0.0
    %3476 = vmatpush1.msra.mxu0 0.0
    %3477 = vmatprep.subr.mxu0 0.0
    %3478 = vmatpush1.msra.mxu0 0.0
    %3479 = vmatprep.subr.mxu0 0.0
    %3480 = vmatpush1.msra.mxu0 0.0
    %3481 = vmatprep.subr.mxu0 0.0
    %3482 = vmatpush1.msra.mxu0 0.0
    %3483 = vmatprep.subr.mxu0 0.0
    %3484 = vmatpush1.msra.mxu0 0.0
    %3485 = vmatprep.subr.mxu0 0.0
    %3486 = vmatpush1.msra.mxu0 0.0
    %3487 = vmatprep.subr.mxu0 0.0
    %3488 = vmatpush1.msra.mxu0 0.0
    %3489 = vmatprep.subr.mxu0 0.0
    %3490 = vmatpush1.msra.mxu0 0.0
    %3491 = vmatprep.subr.mxu0 0.0
    %3492 = vmatpush1.msra.mxu0 0.0
    %3493 = vmatprep.subr.mxu0 0.0
    %3494 = vmatpush1.msra.mxu0 0.0
    %3495 = vmatprep.subr.mxu0 0.0
    %3496 = vmatpush1.msra.mxu0 0.0
    %3497 = vmatprep.subr.mxu0 0.0
    %3498 = vmatpush1.msra.mxu0 0.0
    %3499 = vmatprep.subr.mxu0 0.0
    %3500 = vmatpush1.msra.mxu0 0.0
    %3501 = vmatprep.subr.mxu0 0.0
    %3502 = vmatpush1.msra.mxu0 0.0
    %3503 = vmatprep.subr.mxu0 0.0
    %3504 = vmatpush1.msra.mxu0 0.0
    %3505 = vmatprep.subr.mxu0 0.0
    %3506 = vmatpush1.msra.mxu0 0.0
    %3507 = vmatprep.subr.mxu0 0.0
    %3508 = vmatpush1.msra.mxu0 0.0
    %3509 = vmatprep.subr.mxu0 0.0
    %3510 = vmatpush1.msra.mxu0 0.0
    %3511 = vmatprep.subr.mxu0 0.0
    %3512 = vmatpush1.msra.mxu0 0.0
    %3513 = vmatprep.subr.mxu0 0.0
    %3514 = vmatpush1.msra.mxu0 0.0
    %3515 = vmatprep.subr.mxu0 0.0
    %3516 = vmatpush1.msra.mxu0 0.0
    %3517 = vmatprep.subr.mxu0 0.0
    %3518 = vmatpush1.msra.mxu0 0.0
    %3519 = vmatprep.subr.mxu0 0.0
    %3520 = vmatpush1.msra.mxu0 0.0
    %3521 = vmatprep.mubr.f32.mxu0 0.0
    %3522 = vmatmul.mubr.f32.gmra.mrb[0].mxu0 %v3455
    %v3523 = vpop.f32.mrb[0].mxu0
    %v3524 = vadd.f32 %v3448, %v3523
    %v3525 = vpop.f32.mrb[0].mxu0
    %3526 = vdwg.mxu0
    %v3527 = vmax.f32 %v3524, 0.0
    %v3528 = vld [vmem:[%s14] sm:$0x1]
    %v3530 = vlaneseq
    %v3531 = vshrl.u32 %v3530, 7
    %v3532 = vsub.s32 0, %v3531
    %v3533 = vrot.slane %v3528, %v3532
    %v3535 = vmul.f32 %v3527, %v3533
    %vm3536 = vcmask 254976
    %v3537 = vsel %vm3536, %v3535, 0.0
    %3538 = vadd.xlane.f32.xlu0 %v3537
    %v3539 = vpop.xlane.xlu0 %3538
    %s3540 = sld [smem:[#allocation2]]
    %v3541 = vstv %s3540
    %v3542 = vadd.f32 %v3539, %v3541
    %v3545 = vrot.slane %v1596, 7
    %v3546 = vsel %vm3453, %v3545, %v1595
    %v3550 = vrot.slane %v3436, 7
    %v3551 = vsel %vm3453, %v3550, %v3435
    %3552 = vrot.lane.b32.xlu0 %v3551, 32
    %v3553 = vpop.permute.xlu0 %3552
    %v3555 = vsel %vm182, %v3546, %v3553
    %v3556 = vsel %vm187, %v3555, %v3542
    %vm3557 = vcmask 531456
    %v3558 = vsel %vm3557, %v3556, 0.0
    %3559 = vst [vmem:[#allocation14] sm:$0x3] %v3558
    // Predicated region
    $region90: #{tpu_custom_call.1} parent=1 // pred_check
      _
    $region91: #{tpu_custom_call.1} parent=1 // pred_check_branch
      %3561 = sbr.rel (0) target = $region93
    $region92: #{tpu_custom_call.1} parent=1 // pred_region
      %s3563 = ssub.s32 32, 32
      %3564 = vsyncadd [#allocation5], %s3563
      %s3566 = sshll.u32 [#allocation14], 4
      %s3567 = int_to_ptr.vmem [resolvable:$true] %s3566
      %3569 = dma.vmem_to_hbm [thread:$0]  %s3567, 32, %s16, [#allocation5]
    $region93: #{tpu_custom_call.1} parent=1 // pred_fallthru
      _
    // Predicated region
    $region94: #{tpu_custom_call.1} parent=1 // pred_check
      _
    $region95: #{tpu_custom_call.1} parent=1 // pred_check_branch
      %3571 = sbr.rel (0) target = $region97
    $region96: #{tpu_custom_call.1} parent=1 // pred_region
      %3572 = dma.done [#allocation5], 32
    $region97: #{tpu_custom_call.1} parent=1 // pred_fallthru
      _
    %3573 = vsyncpa [#allocation4], 1
    %3574 = vsyncpa [#allocation7], 1
    %3575 = vsyncpa [#allocation10], 1
    %3576 = vsyncpa [#allocation13], 1
    %3577 = vsyncpa [#allocation5], 1

</llo_original>
